<compile_context>
chip_gen: v6e
topology: v6e:2x2x1
jax: 0.10.0
libtpu: 0.0.40
codegen_flags: <defaults>
</compile_context>

<pallas_src>
import jax
import jax.numpy as jnp
from jax import lax
from jax.experimental import pallas as pl
from jax.experimental.pallas import tpu as pltpu

POOL_SIZES = (5, 9, 13)               # realized as a cascade of k=5 pools (SPPF trick)
_RADIUS = POOL_SIZES[0] // 2          # 2
_N_POOLS = len(POOL_SIZES)            # 3


def _spp_kernel(x_ref, o_ref, tmp_ref):
    """x_ref: (1, H, W, Ct); o_ref: (1, 1+_N_POOLS, H, W, Ct); tmp_ref: (H, W, Ct)."""
    H = x_ref.shape[1]
    W = x_ref.shape[2]

    # Identity branch of the concat.
    o_ref[0, 0] = x_ref[0]

    # SPPF cascade: each stage is a k=5 / stride 1 / pad 2 max pool of the previous
    # stage, computed separably (W pass into scratch, H pass into the output slot).
    for i in range(_N_POOLS):
        # ---- windowed max along W (sublane axis), window 5, edges clipped ----
        tmp_ref[...] = o_ref[0, i]
        for s in range(1, _RADIUS + 1):
            if s < W:
                tmp_ref[:, : W - s, :] = jnp.maximum(tmp_ref[:, : W - s, :],
                                                     o_ref[0, i, :, s:, :])
                tmp_ref[:, s:, :] = jnp.maximum(tmp_ref[:, s:, :],
                                                o_ref[0, i, :, : W - s, :])

        # ---- windowed max along H, window 5, written into output slot i+1 ----
        o_ref[0, i + 1] = tmp_ref[...]
        for s in range(1, _RADIUS + 1):
            if s < H:
                o_ref[0, i + 1, : H - s] = jnp.maximum(o_ref[0, i + 1, : H - s],
                                                       tmp_ref[s:])
                o_ref[0, i + 1, s:] = jnp.maximum(o_ref[0, i + 1, s:],
                                                  tmp_ref[: H - s])


def _pick_channel_tile(C, H, W, itemsize, budget_bytes):
    """Largest convenient channel tile that divides C and keeps VMEM bounded."""
    tc = C
    for cand in (512, 256, 128):
        if C % cand == 0:
            tc = cand
            break

    def working_set(t):
        # double-buffered input + double-buffered (1 + n_pools)-wide output + scratch
        return H * W * t * itemsize * (2 * 1 + 2 * (1 + _N_POOLS) + 1)

    while tc > 1 and tc % 2 == 0 and working_set(tc) > budget_bytes:
        tc //= 2
    return tc


def spp(x):
    """x: (N, C, H, W) -> (N, 4*C, H, W) = concat([x, mp5, mp9, mp13], axis=1)."""
    N, C, H, W = x.shape
    itemsize = jnp.dtype(x.dtype).itemsize

    # Lane-dense layout: channels on the last (lane) axis.
    x_nhwc = jnp.transpose(x, (0, 2, 3, 1))                 # (N, H, W, C)

    budget = 24 * 1024 * 1024                               # safe on v5e / v6e / v7x
    tc = _pick_channel_tile(C, H, W, itemsize, budget)
    n_out = 1 + _N_POOLS

    slab = H * W * tc * itemsize
    needed = slab * (2 * 1 + 2 * n_out + 1)
    vmem_limit = int(min(max(2 * needed, 8 * 1024 * 1024), 32 * 1024 * 1024))

    out_nhwc = pl.pallas_call(
        _spp_kernel,
        out_shape=jax.ShapeDtypeStruct((N, n_out, H, W, C), x.dtype),
        grid_spec=pltpu.PrefetchScalarGridSpec(
            num_scalar_prefetch=0,
            grid=(N, C // tc),
            in_specs=[pl.BlockSpec((1, H, W, tc), lambda n, c: (n, 0, 0, c))],
            out_specs=pl.BlockSpec((1, n_out, H, W, tc),
                                   lambda n, c: (n, 0, 0, 0, c)),
            scratch_shapes=[pltpu.VMEM((H, W, tc), x.dtype)],
        ),
        compiler_params=pltpu.CompilerParams(
            dimension_semantics=("parallel", "parallel"),
            vmem_limit_bytes=vmem_limit,
        ),
    )(x_nhwc)

    # (N, n_out, H, W, C) -> (N, n_out, C, H, W) -> (N, n_out*C, H, W)  == torch.cat dim=1
    out = jnp.transpose(out_nhwc, (0, 1, 4, 2, 3)).reshape(N, n_out * C, H, W)
    return out


def _spp_reference(x):
    """Pure-JAX reference matching torch.nn.functional.max_pool2d semantics."""
    outs = [x]
    for k in POOL_SIZES:
        p = k // 2
        pooled = lax.reduce_window(
            x, -jnp.inf, lax.max,
            window_dimensions=(1, 1, k, k),
            window_strides=(1, 1, 1, 1),
            padding=((0, 0), (0, 0), (p, p), (p, p)),
        )
        outs.append(pooled)
    return jnp.concatenate(outs, axis=1)


if __name__ == "__main__":
    key = jax.random.PRNGKey(0)
    x = jax.random.normal(key, (2, 4, 16, 16), dtype=jnp.float32)  # NCHW

    out = jax.block_until_ready(spp(x))
    ref = _spp_reference(x)

    assert out.shape == (2, 16, 16, 16), out.shape
    assert bool(jnp.allclose(out, ref, atol=1e-6, rtol=1e-6)), "mismatch vs reference"

    print("KERNEL_OK")
</pallas_src>

<mosaic_0001>
module attributes {stable_mosaic.version = 11 : i64} {
  func.func @_spp_kernel(%arg0: i32, %arg1: i32, %arg2: memref<1x16x16x4xf32, #tpu.memory_space<vmem>>, %arg3: memref<1x4x16x16x4xf32, #tpu.memory_space<vmem>>, %arg4: memref<16x16x4xf32, #tpu.memory_space<vmem>>) attributes {dimension_semantics = [#tpu.dimension_semantics<parallel>, #tpu.dimension_semantics<parallel>], iteration_bounds = array<i64: 2, 1>, scalar_prefetch = 0 : i64, scratch_operands = 1 : i64, tpu.core_type = #tpu.core_type<tc>, window_params = [{transform_indices = @transform_0, window_bounds = array<i64: 1, 16, 16, 4>}, {transform_indices = @transform_1, window_bounds = array<i64: 1, 4, 16, 16, 4>}]} {
    %c0 = arith.constant 0 : index
    %c0_0 = arith.constant 0 : index
    %c0_1 = arith.constant 0 : index
    %c0_2 = arith.constant 0 : index
    %0 = vector.load %arg2[%c0, %c0_0, %c0_1, %c0_2] : memref<1x16x16x4xf32, #tpu.memory_space<vmem>>, vector<1x16x16x4xf32>
    %1 = vector.shape_cast %0 : vector<1x16x16x4xf32> to vector<16x16x4xf32>
    %c0_3 = arith.constant 0 : index
    %c0_4 = arith.constant 0 : index
    %c0_5 = arith.constant 0 : index
    %c0_6 = arith.constant 0 : index
    %c0_7 = arith.constant 0 : index
    %2 = vector.load %arg3[%c0_3, %c0_4, %c0_5, %c0_6, %c0_7] : memref<1x4x16x16x4xf32, #tpu.memory_space<vmem>>, vector<1x1x16x16x4xf32>
    %3 = vector.shape_cast %2 : vector<1x1x16x16x4xf32> to vector<16x16x4xf32>
    %4 = vector.shape_cast %1 : vector<16x16x4xf32> to vector<1x1x16x16x4xf32>
    tpu.vector_store %arg3[%c0_3, %c0_4, %c0_5, %c0_6, %c0_7], %4 {strides = array<i32>} : memref<1x4x16x16x4xf32, #tpu.memory_space<vmem>>, vector<1x1x16x16x4xf32>,
    %c0_8 = arith.constant 0 : index
    %c0_9 = arith.constant 0 : index
    %c0_10 = arith.constant 0 : index
    %c0_11 = arith.constant 0 : index
    %c0_12 = arith.constant 0 : index
    %5 = vector.load %arg3[%c0_8, %c0_9, %c0_10, %c0_11, %c0_12] : memref<1x4x16x16x4xf32, #tpu.memory_space<vmem>>, vector<1x1x16x16x4xf32>
    %6 = vector.shape_cast %5 : vector<1x1x16x16x4xf32> to vector<16x16x4xf32>
    %c0_13 = arith.constant 0 : index
    %c0_14 = arith.constant 0 : index
    %c0_15 = arith.constant 0 : index
    %7 = vector.load %arg4[%c0_13, %c0_14, %c0_15] : memref<16x16x4xf32, #tpu.memory_space<vmem>>, vector<16x16x4xf32>
    tpu.vector_store %arg4[%c0_13, %c0_14, %c0_15], %6 {strides = array<i32>} : memref<16x16x4xf32, #tpu.memory_space<vmem>>, vector<16x16x4xf32>,
    %c0_16 = arith.constant 0 : index
    %c0_17 = arith.constant 0 : index
    %c0_18 = arith.constant 0 : index
    %8 = vector.load %arg4[%c0_16, %c0_17, %c0_18] : memref<16x16x4xf32, #tpu.memory_space<vmem>>, vector<16x15x4xf32>
    %c0_19 = arith.constant 0 : index
    %c0_20 = arith.constant 0 : index
    %c0_21 = arith.constant 0 : index
    %c1 = arith.constant 1 : index
    %c0_22 = arith.constant 0 : index
    %9 = vector.load %arg3[%c0_19, %c0_20, %c0_21, %c1, %c0_22] : memref<1x4x16x16x4xf32, #tpu.memory_space<vmem>>, vector<1x1x16x15x4xf32>
    %10 = vector.shape_cast %9 : vector<1x1x16x15x4xf32> to vector<16x15x4xf32>
    %11 = arith.maximumf %8, %10 : vector<16x15x4xf32>
    %c0_23 = arith.constant 0 : index
    %c0_24 = arith.constant 0 : index
    %c0_25 = arith.constant 0 : index
    %12 = vector.load %arg4[%c0_23, %c0_24, %c0_25] : memref<16x16x4xf32, #tpu.memory_space<vmem>>, vector<16x15x4xf32>
    tpu.vector_store %arg4[%c0_23, %c0_24, %c0_25], %11 {strides = array<i32>} : memref<16x16x4xf32, #tpu.memory_space<vmem>>, vector<16x15x4xf32>,
    %c0_26 = arith.constant 0 : index
    %c1_27 = arith.constant 1 : index
    %c0_28 = arith.constant 0 : index
    %13 = vector.load %arg4[%c0_26, %c1_27, %c0_28] : memref<16x16x4xf32, #tpu.memory_space<vmem>>, vector<16x15x4xf32>
    %c0_29 = arith.constant 0 : index
    %c0_30 = arith.constant 0 : index
    %c0_31 = arith.constant 0 : index
    %c0_32 = arith.constant 0 : index
    %c0_33 = arith.constant 0 : index
    %14 = vector.load %arg3[%c0_29, %c0_30, %c0_31, %c0_32, %c0_33] : memref<1x4x16x16x4xf32, #tpu.memory_space<vmem>>, vector<1x1x16x15x4xf32>
    %15 = vector.shape_cast %14 : vector<1x1x16x15x4xf32> to vector<16x15x4xf32>
    %16 = arith.maximumf %13, %15 : vector<16x15x4xf32>
    %c0_34 = arith.constant 0 : index
    %c1_35 = arith.constant 1 : index
    %c0_36 = arith.constant 0 : index
    %17 = vector.load %arg4[%c0_34, %c1_35, %c0_36] : memref<16x16x4xf32, #tpu.memory_space<vmem>>, vector<16x15x4xf32>
    tpu.vector_store %arg4[%c0_34, %c1_35, %c0_36], %16 {strides = array<i32>} : memref<16x16x4xf32, #tpu.memory_space<vmem>>, vector<16x15x4xf32>,
    %c0_37 = arith.constant 0 : index
    %c0_38 = arith.constant 0 : index
    %c0_39 = arith.constant 0 : index
    %18 = vector.load %arg4[%c0_37, %c0_38, %c0_39] : memref<16x16x4xf32, #tpu.memory_space<vmem>>, vector<16x14x4xf32>
    %c0_40 = arith.constant 0 : index
    %c0_41 = arith.constant 0 : index
    %c0_42 = arith.constant 0 : index
    %c2 = arith.constant 2 : index
    %c0_43 = arith.constant 0 : index
    %19 = vector.load %arg3[%c0_40, %c0_41, %c0_42, %c2, %c0_43] : memref<1x4x16x16x4xf32, #tpu.memory_space<vmem>>, vector<1x1x16x14x4xf32>
    %20 = vector.shape_cast %19 : vector<1x1x16x14x4xf32> to vector<16x14x4xf32>
    %21 = arith.maximumf %18, %20 : vector<16x14x4xf32>
    %c0_44 = arith.constant 0 : index
    %c0_45 = arith.constant 0 : index
    %c0_46 = arith.constant 0 : index
    %22 = vector.load %arg4[%c0_44, %c0_45, %c0_46] : memref<16x16x4xf32, #tpu.memory_space<vmem>>, vector<16x14x4xf32>
    tpu.vector_store %arg4[%c0_44, %c0_45, %c0_46], %21 {strides = array<i32>} : memref<16x16x4xf32, #tpu.memory_space<vmem>>, vector<16x14x4xf32>,
    %c0_47 = arith.constant 0 : index
    %c2_48 = arith.constant 2 : index
    %c0_49 = arith.constant 0 : index
    %23 = vector.load %arg4[%c0_47, %c2_48, %c0_49] : memref<16x16x4xf32, #tpu.memory_space<vmem>>, vector<16x14x4xf32>
    %c0_50 = arith.constant 0 : index
    %c0_51 = arith.constant 0 : index
    %c0_52 = arith.constant 0 : index
    %c0_53 = arith.constant 0 : index
    %c0_54 = arith.constant 0 : index
    %24 = vector.load %arg3[%c0_50, %c0_51, %c0_52, %c0_53, %c0_54] : memref<1x4x16x16x4xf32, #tpu.memory_space<vmem>>, vector<1x1x16x14x4xf32>
    %25 = vector.shape_cast %24 : vector<1x1x16x14x4xf32> to vector<16x14x4xf32>
    %26 = arith.maximumf %23, %25 : vector<16x14x4xf32>
    %c0_55 = arith.constant 0 : index
    %c2_56 = arith.constant 2 : index
    %c0_57 = arith.constant 0 : index
    %27 = vector.load %arg4[%c0_55, %c2_56, %c0_57] : memref<16x16x4xf32, #tpu.memory_space<vmem>>, vector<16x14x4xf32>
    tpu.vector_store %arg4[%c0_55, %c2_56, %c0_57], %26 {strides = array<i32>} : memref<16x16x4xf32, #tpu.memory_space<vmem>>, vector<16x14x4xf32>,
    %c0_58 = arith.constant 0 : index
    %c0_59 = arith.constant 0 : index
    %c0_60 = arith.constant 0 : index
    %28 = vector.load %arg4[%c0_58, %c0_59, %c0_60] : memref<16x16x4xf32, #tpu.memory_space<vmem>>, vector<16x16x4xf32>
    %c0_61 = arith.constant 0 : index
    %c1_62 = arith.constant 1 : index
    %c0_63 = arith.constant 0 : index
    %c0_64 = arith.constant 0 : index
    %c0_65 = arith.constant 0 : index
    %29 = vector.load %arg3[%c0_61, %c1_62, %c0_63, %c0_64, %c0_65] : memref<1x4x16x16x4xf32, #tpu.memory_space<vmem>>, vector<1x1x16x16x4xf32>
    %30 = vector.shape_cast %29 : vector<1x1x16x16x4xf32> to vector<16x16x4xf32>
    %31 = vector.shape_cast %28 : vector<16x16x4xf32> to vector<1x1x16x16x4xf32>
    tpu.vector_store %arg3[%c0_61, %c1_62, %c0_63, %c0_64, %c0_65], %31 {strides = array<i32>} : memref<1x4x16x16x4xf32, #tpu.memory_space<vmem>>, vector<1x1x16x16x4xf32>,
    %c0_66 = arith.constant 0 : index
    %c1_67 = arith.constant 1 : index
    %c0_68 = arith.constant 0 : index
    %c0_69 = arith.constant 0 : index
    %c0_70 = arith.constant 0 : index
    %32 = vector.load %arg3[%c0_66, %c1_67, %c0_68, %c0_69, %c0_70] : memref<1x4x16x16x4xf32, #tpu.memory_space<vmem>>, vector<1x1x15x16x4xf32>
    %33 = vector.shape_cast %32 : vector<1x1x15x16x4xf32> to vector<15x16x4xf32>
    %c1_71 = arith.constant 1 : index
    %c0_72 = arith.constant 0 : index
    %c0_73 = arith.constant 0 : index
    %34 = vector.load %arg4[%c1_71, %c0_72, %c0_73] : memref<16x16x4xf32, #tpu.memory_space<vmem>>, vector<15x16x4xf32>
    %35 = arith.maximumf %33, %34 : vector<15x16x4xf32>
    %c0_74 = arith.constant 0 : index
    %c1_75 = arith.constant 1 : index
    %c0_76 = arith.constant 0 : index
    %c0_77 = arith.constant 0 : index
    %c0_78 = arith.constant 0 : index
    %36 = vector.load %arg3[%c0_74, %c1_75, %c0_76, %c0_77, %c0_78] : memref<1x4x16x16x4xf32, #tpu.memory_space<vmem>>, vector<1x1x15x16x4xf32>
    %37 = vector.shape_cast %36 : vector<1x1x15x16x4xf32> to vector<15x16x4xf32>
    %38 = vector.shape_cast %35 : vector<15x16x4xf32> to vector<1x1x15x16x4xf32>
    tpu.vector_store %arg3[%c0_74, %c1_75, %c0_76, %c0_77, %c0_78], %38 {strides = array<i32>} : memref<1x4x16x16x4xf32, #tpu.memory_space<vmem>>, vector<1x1x15x16x4xf32>,
    %c0_79 = arith.constant 0 : index
    %c1_80 = arith.constant 1 : index
    %c1_81 = arith.constant 1 : index
    %c0_82 = arith.constant 0 : index
    %c0_83 = arith.constant 0 : index
    %39 = vector.load %arg3[%c0_79, %c1_80, %c1_81, %c0_82, %c0_83] : memref<1x4x16x16x4xf32, #tpu.memory_space<vmem>>, vector<1x1x15x16x4xf32>
    %40 = vector.shape_cast %39 : vector<1x1x15x16x4xf32> to vector<15x16x4xf32>
    %c0_84 = arith.constant 0 : index
    %c0_85 = arith.constant 0 : index
    %c0_86 = arith.constant 0 : index
    %41 = vector.load %arg4[%c0_84, %c0_85, %c0_86] : memref<16x16x4xf32, #tpu.memory_space<vmem>>, vector<15x16x4xf32>
    %42 = arith.maximumf %40, %41 : vector<15x16x4xf32>
    %c0_87 = arith.constant 0 : index
    %c1_88 = arith.constant 1 : index
    %c1_89 = arith.constant 1 : index
    %c0_90 = arith.constant 0 : index
    %c0_91 = arith.constant 0 : index
    %43 = vector.load %arg3[%c0_87, %c1_88, %c1_89, %c0_90, %c0_91] : memref<1x4x16x16x4xf32, #tpu.memory_space<vmem>>, vector<1x1x15x16x4xf32>
    %44 = vector.shape_cast %43 : vector<1x1x15x16x4xf32> to vector<15x16x4xf32>
    %45 = vector.shape_cast %42 : vector<15x16x4xf32> to vector<1x1x15x16x4xf32>
    tpu.vector_store %arg3[%c0_87, %c1_88, %c1_89, %c0_90, %c0_91], %45 {strides = array<i32>} : memref<1x4x16x16x4xf32, #tpu.memory_space<vmem>>, vector<1x1x15x16x4xf32>,
    %c0_92 = arith.constant 0 : index
    %c1_93 = arith.constant 1 : index
    %c0_94 = arith.constant 0 : index
    %c0_95 = arith.constant 0 : index
    %c0_96 = arith.constant 0 : index
    %46 = vector.load %arg3[%c0_92, %c1_93, %c0_94, %c0_95, %c0_96] : memref<1x4x16x16x4xf32, #tpu.memory_space<vmem>>, vector<1x1x14x16x4xf32>
    %47 = vector.shape_cast %46 : vector<1x1x14x16x4xf32> to vector<14x16x4xf32>
    %c2_97 = arith.constant 2 : index
    %c0_98 = arith.constant 0 : index
    %c0_99 = arith.constant 0 : index
    %48 = vector.load %arg4[%c2_97, %c0_98, %c0_99] : memref<16x16x4xf32, #tpu.memory_space<vmem>>, vector<14x16x4xf32>
    %49 = arith.maximumf %47, %48 : vector<14x16x4xf32>
    %c0_100 = arith.constant 0 : index
    %c1_101 = arith.constant 1 : index
    %c0_102 = arith.constant 0 : index
    %c0_103 = arith.constant 0 : index
    %c0_104 = arith.constant 0 : index
    %50 = vector.load %arg3[%c0_100, %c1_101, %c0_102, %c0_103, %c0_104] : memref<1x4x16x16x4xf32, #tpu.memory_space<vmem>>, vector<1x1x14x16x4xf32>
    %51 = vector.shape_cast %50 : vector<1x1x14x16x4xf32> to vector<14x16x4xf32>
    %52 = vector.shape_cast %49 : vector<14x16x4xf32> to vector<1x1x14x16x4xf32>
    tpu.vector_store %arg3[%c0_100, %c1_101, %c0_102, %c0_103, %c0_104], %52 {strides = array<i32>} : memref<1x4x16x16x4xf32, #tpu.memory_space<vmem>>, vector<1x1x14x16x4xf32>,
    %c0_105 = arith.constant 0 : index
    %c1_106 = arith.constant 1 : index
    %c2_107 = arith.constant 2 : index
    %c0_108 = arith.constant 0 : index
    %c0_109 = arith.constant 0 : index
    %53 = vector.load %arg3[%c0_105, %c1_106, %c2_107, %c0_108, %c0_109] : memref<1x4x16x16x4xf32, #tpu.memory_space<vmem>>, vector<1x1x14x16x4xf32>
    %54 = vector.shape_cast %53 : vector<1x1x14x16x4xf32> to vector<14x16x4xf32>
    %c0_110 = arith.constant 0 : index
    %c0_111 = arith.constant 0 : index
    %c0_112 = arith.constant 0 : index
    %55 = vector.load %arg4[%c0_110, %c0_111, %c0_112] : memref<16x16x4xf32, #tpu.memory_space<vmem>>, vector<14x16x4xf32>
    %56 = arith.maximumf %54, %55 : vector<14x16x4xf32>
    %c0_113 = arith.constant 0 : index
    %c1_114 = arith.constant 1 : index
    %c2_115 = arith.constant 2 : index
    %c0_116 = arith.constant 0 : index
    %c0_117 = arith.constant 0 : index
    %57 = vector.load %arg3[%c0_113, %c1_114, %c2_115, %c0_116, %c0_117] : memref<1x4x16x16x4xf32, #tpu.memory_space<vmem>>, vector<1x1x14x16x4xf32>
    %58 = vector.shape_cast %57 : vector<1x1x14x16x4xf32> to vector<14x16x4xf32>
    %59 = vector.shape_cast %56 : vector<14x16x4xf32> to vector<1x1x14x16x4xf32>
    tpu.vector_store %arg3[%c0_113, %c1_114, %c2_115, %c0_116, %c0_117], %59 {strides = array<i32>} : memref<1x4x16x16x4xf32, #tpu.memory_space<vmem>>, vector<1x1x14x16x4xf32>,
    %c0_118 = arith.constant 0 : index
    %c1_119 = arith.constant 1 : index
    %c0_120 = arith.constant 0 : index
    %c0_121 = arith.constant 0 : index
    %c0_122 = arith.constant 0 : index
    %60 = vector.load %arg3[%c0_118, %c1_119, %c0_120, %c0_121, %c0_122] : memref<1x4x16x16x4xf32, #tpu.memory_space<vmem>>, vector<1x1x16x16x4xf32>
    %61 = vector.shape_cast %60 : vector<1x1x16x16x4xf32> to vector<16x16x4xf32>
    %c0_123 = arith.constant 0 : index
    %c0_124 = arith.constant 0 : index
    %c0_125 = arith.constant 0 : index
    %62 = vector.load %arg4[%c0_123, %c0_124, %c0_125] : memref<16x16x4xf32, #tpu.memory_space<vmem>>, vector<16x16x4xf32>
    tpu.vector_store %arg4[%c0_123, %c0_124, %c0_125], %61 {strides = array<i32>} : memref<16x16x4xf32, #tpu.memory_space<vmem>>, vector<16x16x4xf32>,
    %c0_126 = arith.constant 0 : index
    %c0_127 = arith.constant 0 : index
    %c0_128 = arith.constant 0 : index
    %63 = vector.load %arg4[%c0_126, %c0_127, %c0_128] : memref<16x16x4xf32, #tpu.memory_space<vmem>>, vector<16x15x4xf32>
    %c0_129 = arith.constant 0 : index
    %c1_130 = arith.constant 1 : index
    %c0_131 = arith.constant 0 : index
    %c1_132 = arith.constant 1 : index
    %c0_133 = arith.constant 0 : index
    %64 = vector.load %arg3[%c0_129, %c1_130, %c0_131, %c1_132, %c0_133] : memref<1x4x16x16x4xf32, #tpu.memory_space<vmem>>, vector<1x1x16x15x4xf32>
    %65 = vector.shape_cast %64 : vector<1x1x16x15x4xf32> to vector<16x15x4xf32>
    %66 = arith.maximumf %63, %65 : vector<16x15x4xf32>
    %c0_134 = arith.constant 0 : index
    %c0_135 = arith.constant 0 : index
    %c0_136 = arith.constant 0 : index
    %67 = vector.load %arg4[%c0_134, %c0_135, %c0_136] : memref<16x16x4xf32, #tpu.memory_space<vmem>>, vector<16x15x4xf32>
    tpu.vector_store %arg4[%c0_134, %c0_135, %c0_136], %66 {strides = array<i32>} : memref<16x16x4xf32, #tpu.memory_space<vmem>>, vector<16x15x4xf32>,
    %c0_137 = arith.constant 0 : index
    %c1_138 = arith.constant 1 : index
    %c0_139 = arith.constant 0 : index
    %68 = vector.load %arg4[%c0_137, %c1_138, %c0_139] : memref<16x16x4xf32, #tpu.memory_space<vmem>>, vector<16x15x4xf32>
    %c0_140 = arith.constant 0 : index
    %c1_141 = arith.constant 1 : index
    %c0_142 = arith.constant 0 : index
    %c0_143 = arith.constant 0 : index
    %c0_144 = arith.constant 0 : index
    %69 = vector.load %arg3[%c0_140, %c1_141, %c0_142, %c0_143, %c0_144] : memref<1x4x16x16x4xf32, #tpu.memory_space<vmem>>, vector<1x1x16x15x4xf32>
    %70 = vector.shape_cast %69 : vector<1x1x16x15x4xf32> to vector<16x15x4xf32>
    %71 = arith.maximumf %68, %70 : vector<16x15x4xf32>
    %c0_145 = arith.constant 0 : index
    %c1_146 = arith.constant 1 : index
    %c0_147 = arith.constant 0 : index
    %72 = vector.load %arg4[%c0_145, %c1_146, %c0_147] : memref<16x16x4xf32, #tpu.memory_space<vmem>>, vector<16x15x4xf32>
    tpu.vector_store %arg4[%c0_145, %c1_146, %c0_147], %71 {strides = array<i32>} : memref<16x16x4xf32, #tpu.memory_space<vmem>>, vector<16x15x4xf32>,
    %c0_148 = arith.constant 0 : index
    %c0_149 = arith.constant 0 : index
    %c0_150 = arith.constant 0 : index
    %73 = vector.load %arg4[%c0_148, %c0_149, %c0_150] : memref<16x16x4xf32, #tpu.memory_space<vmem>>, vector<16x14x4xf32>
    %c0_151 = arith.constant 0 : index
    %c1_152 = arith.constant 1 : index
    %c0_153 = arith.constant 0 : index
    %c2_154 = arith.constant 2 : index
    %c0_155 = arith.constant 0 : index
    %74 = vector.load %arg3[%c0_151, %c1_152, %c0_153, %c2_154, %c0_155] : memref<1x4x16x16x4xf32, #tpu.memory_space<vmem>>, vector<1x1x16x14x4xf32>
    %75 = vector.shape_cast %74 : vector<1x1x16x14x4xf32> to vector<16x14x4xf32>
    %76 = arith.maximumf %73, %75 : vector<16x14x4xf32>
    %c0_156 = arith.constant 0 : index
    %c0_157 = arith.constant 0 : index
    %c0_158 = arith.constant 0 : index
    %77 = vector.load %arg4[%c0_156, %c0_157, %c0_158] : memref<16x16x4xf32, #tpu.memory_space<vmem>>, vector<16x14x4xf32>
    tpu.vector_store %arg4[%c0_156, %c0_157, %c0_158], %76 {strides = array<i32>} : memref<16x16x4xf32, #tpu.memory_space<vmem>>, vector<16x14x4xf32>,
    %c0_159 = arith.constant 0 : index
    %c2_160 = arith.constant 2 : index
    %c0_161 = arith.constant 0 : index
    %78 = vector.load %arg4[%c0_159, %c2_160, %c0_161] : memref<16x16x4xf32, #tpu.memory_space<vmem>>, vector<16x14x4xf32>
    %c0_162 = arith.constant 0 : index
    %c1_163 = arith.constant 1 : index
    %c0_164 = arith.constant 0 : index
    %c0_165 = arith.constant 0 : index
    %c0_166 = arith.constant 0 : index
    %79 = vector.load %arg3[%c0_162, %c1_163, %c0_164, %c0_165, %c0_166] : memref<1x4x16x16x4xf32, #tpu.memory_space<vmem>>, vector<1x1x16x14x4xf32>
    %80 = vector.shape_cast %79 : vector<1x1x16x14x4xf32> to vector<16x14x4xf32>
    %81 = arith.maximumf %78, %80 : vector<16x14x4xf32>
    %c0_167 = arith.constant 0 : index
    %c2_168 = arith.constant 2 : index
    %c0_169 = arith.constant 0 : index
    %82 = vector.load %arg4[%c0_167, %c2_168, %c0_169] : memref<16x16x4xf32, #tpu.memory_space<vmem>>, vector<16x14x4xf32>
    tpu.vector_store %arg4[%c0_167, %c2_168, %c0_169], %81 {strides = array<i32>} : memref<16x16x4xf32, #tpu.memory_space<vmem>>, vector<16x14x4xf32>,
    %c0_170 = arith.constant 0 : index
    %c0_171 = arith.constant 0 : index
    %c0_172 = arith.constant 0 : index
    %83 = vector.load %arg4[%c0_170, %c0_171, %c0_172] : memref<16x16x4xf32, #tpu.memory_space<vmem>>, vector<16x16x4xf32>
    %c0_173 = arith.constant 0 : index
    %c2_174 = arith.constant 2 : index
    %c0_175 = arith.constant 0 : index
    %c0_176 = arith.constant 0 : index
    %c0_177 = arith.constant 0 : index
    %84 = vector.load %arg3[%c0_173, %c2_174, %c0_175, %c0_176, %c0_177] : memref<1x4x16x16x4xf32, #tpu.memory_space<vmem>>, vector<1x1x16x16x4xf32>
    %85 = vector.shape_cast %84 : vector<1x1x16x16x4xf32> to vector<16x16x4xf32>
    %86 = vector.shape_cast %83 : vector<16x16x4xf32> to vector<1x1x16x16x4xf32>
    tpu.vector_store %arg3[%c0_173, %c2_174, %c0_175, %c0_176, %c0_177], %86 {strides = array<i32>} : memref<1x4x16x16x4xf32, #tpu.memory_space<vmem>>, vector<1x1x16x16x4xf32>,
    %c0_178 = arith.constant 0 : index
    %c2_179 = arith.constant 2 : index
    %c0_180 = arith.constant 0 : index
    %c0_181 = arith.constant 0 : index
    %c0_182 = arith.constant 0 : index
    %87 = vector.load %arg3[%c0_178, %c2_179, %c0_180, %c0_181, %c0_182] : memref<1x4x16x16x4xf32, #tpu.memory_space<vmem>>, vector<1x1x15x16x4xf32>
    %88 = vector.shape_cast %87 : vector<1x1x15x16x4xf32> to vector<15x16x4xf32>
    %c1_183 = arith.constant 1 : index
    %c0_184 = arith.constant 0 : index
    %c0_185 = arith.constant 0 : index
    %89 = vector.load %arg4[%c1_183, %c0_184, %c0_185] : memref<16x16x4xf32, #tpu.memory_space<vmem>>, vector<15x16x4xf32>
    %90 = arith.maximumf %88, %89 : vector<15x16x4xf32>
    %c0_186 = arith.constant 0 : index
    %c2_187 = arith.constant 2 : index
    %c0_188 = arith.constant 0 : index
    %c0_189 = arith.constant 0 : index
    %c0_190 = arith.constant 0 : index
    %91 = vector.load %arg3[%c0_186, %c2_187, %c0_188, %c0_189, %c0_190] : memref<1x4x16x16x4xf32, #tpu.memory_space<vmem>>, vector<1x1x15x16x4xf32>
    %92 = vector.shape_cast %91 : vector<1x1x15x16x4xf32> to vector<15x16x4xf32>
    %93 = vector.shape_cast %90 : vector<15x16x4xf32> to vector<1x1x15x16x4xf32>
    tpu.vector_store %arg3[%c0_186, %c2_187, %c0_188, %c0_189, %c0_190], %93 {strides = array<i32>} : memref<1x4x16x16x4xf32, #tpu.memory_space<vmem>>, vector<1x1x15x16x4xf32>,
    %c0_191 = arith.constant 0 : index
    %c2_192 = arith.constant 2 : index
    %c1_193 = arith.constant 1 : index
    %c0_194 = arith.constant 0 : index
    %c0_195 = arith.constant 0 : index
    %94 = vector.load %arg3[%c0_191, %c2_192, %c1_193, %c0_194, %c0_195] : memref<1x4x16x16x4xf32, #tpu.memory_space<vmem>>, vector<1x1x15x16x4xf32>
    %95 = vector.shape_cast %94 : vector<1x1x15x16x4xf32> to vector<15x16x4xf32>
    %c0_196 = arith.constant 0 : index
    %c0_197 = arith.constant 0 : index
    %c0_198 = arith.constant 0 : index
    %96 = vector.load %arg4[%c0_196, %c0_197, %c0_198] : memref<16x16x4xf32, #tpu.memory_space<vmem>>, vector<15x16x4xf32>
    %97 = arith.maximumf %95, %96 : vector<15x16x4xf32>
    %c0_199 = arith.constant 0 : index
    %c2_200 = arith.constant 2 : index
    %c1_201 = arith.constant 1 : index
    %c0_202 = arith.constant 0 : index
    %c0_203 = arith.constant 0 : index
    %98 = vector.load %arg3[%c0_199, %c2_200, %c1_201, %c0_202, %c0_203] : memref<1x4x16x16x4xf32, #tpu.memory_space<vmem>>, vector<1x1x15x16x4xf32>
    %99 = vector.shape_cast %98 : vector<1x1x15x16x4xf32> to vector<15x16x4xf32>
    %100 = vector.shape_cast %97 : vector<15x16x4xf32> to vector<1x1x15x16x4xf32>
    tpu.vector_store %arg3[%c0_199, %c2_200, %c1_201, %c0_202, %c0_203], %100 {strides = array<i32>} : memref<1x4x16x16x4xf32, #tpu.memory_space<vmem>>, vector<1x1x15x16x4xf32>,
    %c0_204 = arith.constant 0 : index
    %c2_205 = arith.constant 2 : index
    %c0_206 = arith.constant 0 : index
    %c0_207 = arith.constant 0 : index
    %c0_208 = arith.constant 0 : index
    %101 = vector.load %arg3[%c0_204, %c2_205, %c0_206, %c0_207, %c0_208] : memref<1x4x16x16x4xf32, #tpu.memory_space<vmem>>, vector<1x1x14x16x4xf32>
    %102 = vector.shape_cast %101 : vector<1x1x14x16x4xf32> to vector<14x16x4xf32>
    %c2_209 = arith.constant 2 : index
    %c0_210 = arith.constant 0 : index
    %c0_211 = arith.constant 0 : index
    %103 = vector.load %arg4[%c2_209, %c0_210, %c0_211] : memref<16x16x4xf32, #tpu.memory_space<vmem>>, vector<14x16x4xf32>
    %104 = arith.maximumf %102, %103 : vector<14x16x4xf32>
    %c0_212 = arith.constant 0 : index
    %c2_213 = arith.constant 2 : index
    %c0_214 = arith.constant 0 : index
    %c0_215 = arith.constant 0 : index
    %c0_216 = arith.constant 0 : index
    %105 = vector.load %arg3[%c0_212, %c2_213, %c0_214, %c0_215, %c0_216] : memref<1x4x16x16x4xf32, #tpu.memory_space<vmem>>, vector<1x1x14x16x4xf32>
    %106 = vector.shape_cast %105 : vector<1x1x14x16x4xf32> to vector<14x16x4xf32>
    %107 = vector.shape_cast %104 : vector<14x16x4xf32> to vector<1x1x14x16x4xf32>
    tpu.vector_store %arg3[%c0_212, %c2_213, %c0_214, %c0_215, %c0_216], %107 {strides = array<i32>} : memref<1x4x16x16x4xf32, #tpu.memory_space<vmem>>, vector<1x1x14x16x4xf32>,
    %c0_217 = arith.constant 0 : index
    %c2_218 = arith.constant 2 : index
    %c2_219 = arith.constant 2 : index
    %c0_220 = arith.constant 0 : index
    %c0_221 = arith.constant 0 : index
    %108 = vector.load %arg3[%c0_217, %c2_218, %c2_219, %c0_220, %c0_221] : memref<1x4x16x16x4xf32, #tpu.memory_space<vmem>>, vector<1x1x14x16x4xf32>
    %109 = vector.shape_cast %108 : vector<1x1x14x16x4xf32> to vector<14x16x4xf32>
    %c0_222 = arith.constant 0 : index
    %c0_223 = arith.constant 0 : index
    %c0_224 = arith.constant 0 : index
    %110 = vector.load %arg4[%c0_222, %c0_223, %c0_224] : memref<16x16x4xf32, #tpu.memory_space<vmem>>, vector<14x16x4xf32>
    %111 = arith.maximumf %109, %110 : vector<14x16x4xf32>
    %c0_225 = arith.constant 0 : index
    %c2_226 = arith.constant 2 : index
    %c2_227 = arith.constant 2 : index
    %c0_228 = arith.constant 0 : index
    %c0_229 = arith.constant 0 : index
    %112 = vector.load %arg3[%c0_225, %c2_226, %c2_227, %c0_228, %c0_229] : memref<1x4x16x16x4xf32, #tpu.memory_space<vmem>>, vector<1x1x14x16x4xf32>
    %113 = vector.shape_cast %112 : vector<1x1x14x16x4xf32> to vector<14x16x4xf32>
    %114 = vector.shape_cast %111 : vector<14x16x4xf32> to vector<1x1x14x16x4xf32>
    tpu.vector_store %arg3[%c0_225, %c2_226, %c2_227, %c0_228, %c0_229], %114 {strides = array<i32>} : memref<1x4x16x16x4xf32, #tpu.memory_space<vmem>>, vector<1x1x14x16x4xf32>,
    %c0_230 = arith.constant 0 : index
    %c2_231 = arith.constant 2 : index
    %c0_232 = arith.constant 0 : index
    %c0_233 = arith.constant 0 : index
    %c0_234 = arith.constant 0 : index
    %115 = vector.load %arg3[%c0_230, %c2_231, %c0_232, %c0_233, %c0_234] : memref<1x4x16x16x4xf32, #tpu.memory_space<vmem>>, vector<1x1x16x16x4xf32>
    %116 = vector.shape_cast %115 : vector<1x1x16x16x4xf32> to vector<16x16x4xf32>
    %c0_235 = arith.constant 0 : index
    %c0_236 = arith.constant 0 : index
    %c0_237 = arith.constant 0 : index
    %117 = vector.load %arg4[%c0_235, %c0_236, %c0_237] : memref<16x16x4xf32, #tpu.memory_space<vmem>>, vector<16x16x4xf32>
    tpu.vector_store %arg4[%c0_235, %c0_236, %c0_237], %116 {strides = array<i32>} : memref<16x16x4xf32, #tpu.memory_space<vmem>>, vector<16x16x4xf32>,
    %c0_238 = arith.constant 0 : index
    %c0_239 = arith.constant 0 : index
    %c0_240 = arith.constant 0 : index
    %118 = vector.load %arg4[%c0_238, %c0_239, %c0_240] : memref<16x16x4xf32, #tpu.memory_space<vmem>>, vector<16x15x4xf32>
    %c0_241 = arith.constant 0 : index
    %c2_242 = arith.constant 2 : index
    %c0_243 = arith.constant 0 : index
    %c1_244 = arith.constant 1 : index
    %c0_245 = arith.constant 0 : index
    %119 = vector.load %arg3[%c0_241, %c2_242, %c0_243, %c1_244, %c0_245] : memref<1x4x16x16x4xf32, #tpu.memory_space<vmem>>, vector<1x1x16x15x4xf32>
    %120 = vector.shape_cast %119 : vector<1x1x16x15x4xf32> to vector<16x15x4xf32>
    %121 = arith.maximumf %118, %120 : vector<16x15x4xf32>
    %c0_246 = arith.constant 0 : index
    %c0_247 = arith.constant 0 : index
    %c0_248 = arith.constant 0 : index
    %122 = vector.load %arg4[%c0_246, %c0_247, %c0_248] : memref<16x16x4xf32, #tpu.memory_space<vmem>>, vector<16x15x4xf32>
    tpu.vector_store %arg4[%c0_246, %c0_247, %c0_248], %121 {strides = array<i32>} : memref<16x16x4xf32, #tpu.memory_space<vmem>>, vector<16x15x4xf32>,
    %c0_249 = arith.constant 0 : index
    %c1_250 = arith.constant 1 : index
    %c0_251 = arith.constant 0 : index
    %123 = vector.load %arg4[%c0_249, %c1_250, %c0_251] : memref<16x16x4xf32, #tpu.memory_space<vmem>>, vector<16x15x4xf32>
    %c0_252 = arith.constant 0 : index
    %c2_253 = arith.constant 2 : index
    %c0_254 = arith.constant 0 : index
    %c0_255 = arith.constant 0 : index
    %c0_256 = arith.constant 0 : index
    %124 = vector.load %arg3[%c0_252, %c2_253, %c0_254, %c0_255, %c0_256] : memref<1x4x16x16x4xf32, #tpu.memory_space<vmem>>, vector<1x1x16x15x4xf32>
    %125 = vector.shape_cast %124 : vector<1x1x16x15x4xf32> to vector<16x15x4xf32>
    %126 = arith.maximumf %123, %125 : vector<16x15x4xf32>
    %c0_257 = arith.constant 0 : index
    %c1_258 = arith.constant 1 : index
    %c0_259 = arith.constant 0 : index
    %127 = vector.load %arg4[%c0_257, %c1_258, %c0_259] : memref<16x16x4xf32, #tpu.memory_space<vmem>>, vector<16x15x4xf32>
    tpu.vector_store %arg4[%c0_257, %c1_258, %c0_259], %126 {strides = array<i32>} : memref<16x16x4xf32, #tpu.memory_space<vmem>>, vector<16x15x4xf32>,
    %c0_260 = arith.constant 0 : index
    %c0_261 = arith.constant 0 : index
    %c0_262 = arith.constant 0 : index
    %128 = vector.load %arg4[%c0_260, %c0_261, %c0_262] : memref<16x16x4xf32, #tpu.memory_space<vmem>>, vector<16x14x4xf32>
    %c0_263 = arith.constant 0 : index
    %c2_264 = arith.constant 2 : index
    %c0_265 = arith.constant 0 : index
    %c2_266 = arith.constant 2 : index
    %c0_267 = arith.constant 0 : index
    %129 = vector.load %arg3[%c0_263, %c2_264, %c0_265, %c2_266, %c0_267] : memref<1x4x16x16x4xf32, #tpu.memory_space<vmem>>, vector<1x1x16x14x4xf32>
    %130 = vector.shape_cast %129 : vector<1x1x16x14x4xf32> to vector<16x14x4xf32>
    %131 = arith.maximumf %128, %130 : vector<16x14x4xf32>
    %c0_268 = arith.constant 0 : index
    %c0_269 = arith.constant 0 : index
    %c0_270 = arith.constant 0 : index
    %132 = vector.load %arg4[%c0_268, %c0_269, %c0_270] : memref<16x16x4xf32, #tpu.memory_space<vmem>>, vector<16x14x4xf32>
    tpu.vector_store %arg4[%c0_268, %c0_269, %c0_270], %131 {strides = array<i32>} : memref<16x16x4xf32, #tpu.memory_space<vmem>>, vector<16x14x4xf32>,
    %c0_271 = arith.constant 0 : index
    %c2_272 = arith.constant 2 : index
    %c0_273 = arith.constant 0 : index
    %133 = vector.load %arg4[%c0_271, %c2_272, %c0_273] : memref<16x16x4xf32, #tpu.memory_space<vmem>>, vector<16x14x4xf32>
    %c0_274 = arith.constant 0 : index
    %c2_275 = arith.constant 2 : index
    %c0_276 = arith.constant 0 : index
    %c0_277 = arith.constant 0 : index
    %c0_278 = arith.constant 0 : index
    %134 = vector.load %arg3[%c0_274, %c2_275, %c0_276, %c0_277, %c0_278] : memref<1x4x16x16x4xf32, #tpu.memory_space<vmem>>, vector<1x1x16x14x4xf32>
    %135 = vector.shape_cast %134 : vector<1x1x16x14x4xf32> to vector<16x14x4xf32>
    %136 = arith.maximumf %133, %135 : vector<16x14x4xf32>
    %c0_279 = arith.constant 0 : index
    %c2_280 = arith.constant 2 : index
    %c0_281 = arith.constant 0 : index
    %137 = vector.load %arg4[%c0_279, %c2_280, %c0_281] : memref<16x16x4xf32, #tpu.memory_space<vmem>>, vector<16x14x4xf32>
    tpu.vector_store %arg4[%c0_279, %c2_280, %c0_281], %136 {strides = array<i32>} : memref<16x16x4xf32, #tpu.memory_space<vmem>>, vector<16x14x4xf32>,
    %c0_282 = arith.constant 0 : index
    %c0_283 = arith.constant 0 : index
    %c0_284 = arith.constant 0 : index
    %138 = vector.load %arg4[%c0_282, %c0_283, %c0_284] : memref<16x16x4xf32, #tpu.memory_space<vmem>>, vector<16x16x4xf32>
    %c0_285 = arith.constant 0 : index
    %c3 = arith.constant 3 : index
    %c0_286 = arith.constant 0 : index
    %c0_287 = arith.constant 0 : index
    %c0_288 = arith.constant 0 : index
    %139 = vector.load %arg3[%c0_285, %c3, %c0_286, %c0_287, %c0_288] : memref<1x4x16x16x4xf32, #tpu.memory_space<vmem>>, vector<1x1x16x16x4xf32>
    %140 = vector.shape_cast %139 : vector<1x1x16x16x4xf32> to vector<16x16x4xf32>
    %141 = vector.shape_cast %138 : vector<16x16x4xf32> to vector<1x1x16x16x4xf32>
    tpu.vector_store %arg3[%c0_285, %c3, %c0_286, %c0_287, %c0_288], %141 {strides = array<i32>} : memref<1x4x16x16x4xf32, #tpu.memory_space<vmem>>, vector<1x1x16x16x4xf32>,
    %c0_289 = arith.constant 0 : index
    %c3_290 = arith.constant 3 : index
    %c0_291 = arith.constant 0 : index
    %c0_292 = arith.constant 0 : index
    %c0_293 = arith.constant 0 : index
    %142 = vector.load %arg3[%c0_289, %c3_290, %c0_291, %c0_292, %c0_293] : memref<1x4x16x16x4xf32, #tpu.memory_space<vmem>>, vector<1x1x15x16x4xf32>
    %143 = vector.shape_cast %142 : vector<1x1x15x16x4xf32> to vector<15x16x4xf32>
    %c1_294 = arith.constant 1 : index
    %c0_295 = arith.constant 0 : index
    %c0_296 = arith.constant 0 : index
    %144 = vector.load %arg4[%c1_294, %c0_295, %c0_296] : memref<16x16x4xf32, #tpu.memory_space<vmem>>, vector<15x16x4xf32>
    %145 = arith.maximumf %143, %144 : vector<15x16x4xf32>
    %c0_297 = arith.constant 0 : index
    %c3_298 = arith.constant 3 : index
    %c0_299 = arith.constant 0 : index
    %c0_300 = arith.constant 0 : index
    %c0_301 = arith.constant 0 : index
    %146 = vector.load %arg3[%c0_297, %c3_298, %c0_299, %c0_300, %c0_301] : memref<1x4x16x16x4xf32, #tpu.memory_space<vmem>>, vector<1x1x15x16x4xf32>
    %147 = vector.shape_cast %146 : vector<1x1x15x16x4xf32> to vector<15x16x4xf32>
    %148 = vector.shape_cast %145 : vector<15x16x4xf32> to vector<1x1x15x16x4xf32>
    tpu.vector_store %arg3[%c0_297, %c3_298, %c0_299, %c0_300, %c0_301], %148 {strides = array<i32>} : memref<1x4x16x16x4xf32, #tpu.memory_space<vmem>>, vector<1x1x15x16x4xf32>,
    %c0_302 = arith.constant 0 : index
    %c3_303 = arith.constant 3 : index
    %c1_304 = arith.constant 1 : index
    %c0_305 = arith.constant 0 : index
    %c0_306 = arith.constant 0 : index
    %149 = vector.load %arg3[%c0_302, %c3_303, %c1_304, %c0_305, %c0_306] : memref<1x4x16x16x4xf32, #tpu.memory_space<vmem>>, vector<1x1x15x16x4xf32>
    %150 = vector.shape_cast %149 : vector<1x1x15x16x4xf32> to vector<15x16x4xf32>
    %c0_307 = arith.constant 0 : index
    %c0_308 = arith.constant 0 : index
    %c0_309 = arith.constant 0 : index
    %151 = vector.load %arg4[%c0_307, %c0_308, %c0_309] : memref<16x16x4xf32, #tpu.memory_space<vmem>>, vector<15x16x4xf32>
    %152 = arith.maximumf %150, %151 : vector<15x16x4xf32>
    %c0_310 = arith.constant 0 : index
    %c3_311 = arith.constant 3 : index
    %c1_312 = arith.constant 1 : index
    %c0_313 = arith.constant 0 : index
    %c0_314 = arith.constant 0 : index
    %153 = vector.load %arg3[%c0_310, %c3_311, %c1_312, %c0_313, %c0_314] : memref<1x4x16x16x4xf32, #tpu.memory_space<vmem>>, vector<1x1x15x16x4xf32>
    %154 = vector.shape_cast %153 : vector<1x1x15x16x4xf32> to vector<15x16x4xf32>
    %155 = vector.shape_cast %152 : vector<15x16x4xf32> to vector<1x1x15x16x4xf32>
    tpu.vector_store %arg3[%c0_310, %c3_311, %c1_312, %c0_313, %c0_314], %155 {strides = array<i32>} : memref<1x4x16x16x4xf32, #tpu.memory_space<vmem>>, vector<1x1x15x16x4xf32>,
    %c0_315 = arith.constant 0 : index
    %c3_316 = arith.constant 3 : index
    %c0_317 = arith.constant 0 : index
    %c0_318 = arith.constant 0 : index
    %c0_319 = arith.constant 0 : index
    %156 = vector.load %arg3[%c0_315, %c3_316, %c0_317, %c0_318, %c0_319] : memref<1x4x16x16x4xf32, #tpu.memory_space<vmem>>, vector<1x1x14x16x4xf32>
    %157 = vector.shape_cast %156 : vector<1x1x14x16x4xf32> to vector<14x16x4xf32>
    %c2_320 = arith.constant 2 : index
    %c0_321 = arith.constant 0 : index
    %c0_322 = arith.constant 0 : index
    %158 = vector.load %arg4[%c2_320, %c0_321, %c0_322] : memref<16x16x4xf32, #tpu.memory_space<vmem>>, vector<14x16x4xf32>
    %159 = arith.maximumf %157, %158 : vector<14x16x4xf32>
    %c0_323 = arith.constant 0 : index
    %c3_324 = arith.constant 3 : index
    %c0_325 = arith.constant 0 : index
    %c0_326 = arith.constant 0 : index
    %c0_327 = arith.constant 0 : index
    %160 = vector.load %arg3[%c0_323, %c3_324, %c0_325, %c0_326, %c0_327] : memref<1x4x16x16x4xf32, #tpu.memory_space<vmem>>, vector<1x1x14x16x4xf32>
    %161 = vector.shape_cast %160 : vector<1x1x14x16x4xf32> to vector<14x16x4xf32>
    %162 = vector.shape_cast %159 : vector<14x16x4xf32> to vector<1x1x14x16x4xf32>
    tpu.vector_store %arg3[%c0_323, %c3_324, %c0_325, %c0_326, %c0_327], %162 {strides = array<i32>} : memref<1x4x16x16x4xf32, #tpu.memory_space<vmem>>, vector<1x1x14x16x4xf32>,
    %c0_328 = arith.constant 0 : index
    %c3_329 = arith.constant 3 : index
    %c2_330 = arith.constant 2 : index
    %c0_331 = arith.constant 0 : index
    %c0_332 = arith.constant 0 : index
    %163 = vector.load %arg3[%c0_328, %c3_329, %c2_330, %c0_331, %c0_332] : memref<1x4x16x16x4xf32, #tpu.memory_space<vmem>>, vector<1x1x14x16x4xf32>
    %164 = vector.shape_cast %163 : vector<1x1x14x16x4xf32> to vector<14x16x4xf32>
    %c0_333 = arith.constant 0 : index
    %c0_334 = arith.constant 0 : index
    %c0_335 = arith.constant 0 : index
    %165 = vector.load %arg4[%c0_333, %c0_334, %c0_335] : memref<16x16x4xf32, #tpu.memory_space<vmem>>, vector<14x16x4xf32>
    %166 = arith.maximumf %164, %165 : vector<14x16x4xf32>
    %c0_336 = arith.constant 0 : index
    %c3_337 = arith.constant 3 : index
    %c2_338 = arith.constant 2 : index
    %c0_339 = arith.constant 0 : index
    %c0_340 = arith.constant 0 : index
    %167 = vector.load %arg3[%c0_336, %c3_337, %c2_338, %c0_339, %c0_340] : memref<1x4x16x16x4xf32, #tpu.memory_space<vmem>>, vector<1x1x14x16x4xf32>
    %168 = vector.shape_cast %167 : vector<1x1x14x16x4xf32> to vector<14x16x4xf32>
    %169 = vector.shape_cast %166 : vector<14x16x4xf32> to vector<1x1x14x16x4xf32>
    tpu.vector_store %arg3[%c0_336, %c3_337, %c2_338, %c0_339, %c0_340], %169 {strides = array<i32>} : memref<1x4x16x16x4xf32, #tpu.memory_space<vmem>>, vector<1x1x14x16x4xf32>,
    return
  }
  func.func @transform_0(%arg0: i32, %arg1: i32) -> (i32, i32, i32, i32) {
    %c0_i32 = arith.constant 0 : i32
    %c0_i32_0 = arith.constant 0 : i32
    %c0_i32_1 = arith.constant 0 : i32
    return %arg0, %c0_i32, %c0_i32_0, %arg1 : i32, i32, i32, i32
  }
  func.func @transform_1(%arg0: i32, %arg1: i32) -> (i32, i32, i32, i32, i32) {
    %c0_i32 = arith.constant 0 : i32
    %c0_i32_0 = arith.constant 0 : i32
    %c0_i32_1 = arith.constant 0 : i32
    %c0_i32_2 = arith.constant 0 : i32
    return %arg0, %c0_i32, %c0_i32_0, %c0_i32_1, %arg1 : i32, i32, i32, i32, i32
  }
}

</mosaic_0001>

<llo_original>
// kernel: tpu_custom_call.1
$region0: #{tpu_custom_call.1}
  #allocation0 [shape = 'u32[]', space=smem, size = 0x4, offset = 0x4, fixed_abs, tag = 'smem constant byte address 0x4 - core index']
  #allocation1 [shape = 'u32[144,128]{1,0:T(1,128)}', space=vmem, size = 0x12000, scoped, tag = 'internal scratch']
  #allocation2 [shape = 'f32[16,16,4]{2,1,0:T(8,128)}', space=vmem, size = 0x20000, scoped, tag = 'scratch operand']
  %s0 = inlined_call_operand.vmem [shape: f32[2,16,16,4], index: 0, kind: input, shape index: {}]
  %s1 = inlined_call_operand.vmem [shape: f32[2,4,16,16,4], index: 1, kind: output, shape index: {}]
  %s2 = sld [smem:[#allocation0]]
  $region37: #{tpu_custom_call.1} parent=0
    _
  %s4 = ssub.s32 1, %s2
  %s5 = scalar_select 0, %s4, %s2
  loop: start=0, step=1, limit=4
  $region2: #{tpu_custom_call.1} parent=0 // loop_pre_header
    _
  $region3: #{tpu_custom_call.1} parent=0 // loop_header
    %s7 = sphi 0, %s11
    %p8 = scmp.ge.s32.totalorder %s7, 4
    %s14 = sphi 0, %s26
    %s15 = sphi 0, %s22
    %s16 = sphi 0, %s14
    %s17 = sphi 0, %s15
    %s18 = sphi 0, %s16
    %s19 = sphi 0, %s17
    %s31 = sphi 0, %s33
    %s34 = sphi 0, %s31
    %s35 = sphi 0, %s34
    %s51 = sphi 0, %s35
    %s59 = sphi 0, %s61
    %s62 = sphi 0, %s59
    %s63 = sphi 0, %s62
    %s79 = sphi 0, %s63
  $region4: #{tpu_custom_call.1} parent=0 // loop_header_branch
    %10 = sbr.rel (%p8) target = $region8
  $region5: #{tpu_custom_call.1} parent=0 // loop_body
    %s12 = ssub.s32 %s7, 1
    %s13 = ssub.s32 %s7, 2
    %s20 = sadd.s32 1, %s15
    %p21 = scmp.ge.s32.totalorder %s20, 1
    %s22 = scalar_select %p21, 0, %s20
    %s23 = sadd.s32 1, %s14
    %s24 = scalar_select %p21, %s23, %s14
    %p25 = scmp.ge.s32.totalorder %s24, 2
    %s26 = scalar_select %p25, 0, %s24
    %s27 = ssub.s32 %s14, %s26
    %s28 = ssub.s32 %s15, %s22
    %s29 = sor.u32 %s27, %s28
    %p30 = scmp.eq.s32.totalorder %s29, 0
    %s32 = sadd.s32 %s31, 1
    %s33 = scalar_select %p30, %s31, %s32
    %p36 = pneg %p30
    %p37 = scmp.eq.s32.totalorder %s7, 1
    %p38 = por %p36, %p37
    %p39 = scmp.ne.s32.totalorder %s31, %s34
    %p40 = scmp.eq.s32.totalorder %s7, 0
    %p41 = por %p39, %p40
    %p42 = scmp.ne.s32.totalorder %s31, %s34
    %p43 = scmp.eq.s32.totalorder %s12, 1
    %p44 = por %p42, %p43
    %p45 = scmp.ne.s32.totalorder %s34, %s35
    %p46 = scmp.eq.s32.totalorder %s12, 0
    %p47 = por %p45, %p46
    %p48 = scmp.ne.s32.totalorder %s34, %s35
    %p49 = scmp.eq.s32.totalorder %s13, 1
    %p50 = por %p48, %p49
    %p52 = scmp.ne.s32.totalorder %s35, %s51
    %p53 = scmp.eq.s32.totalorder %s13, 0
    %p54 = por %p52, %p53
    %s55 = ssub.s32 %s14, %s26
    %s56 = ssub.s32 %s15, %s22
    %s57 = sor.u32 %s55, %s56
    %p58 = scmp.eq.s32.totalorder %s57, 0
    %s60 = sadd.s32 %s59, 1
    %s61 = scalar_select %p58, %s59, %s60
    %p64 = pneg %p58
    %p65 = scmp.eq.s32.totalorder %s7, 1
    %p66 = por %p64, %p65
    %p67 = scmp.ne.s32.totalorder %s59, %s62
    %p68 = scmp.eq.s32.totalorder %s7, 0
    %p69 = por %p67, %p68
    %p70 = scmp.ne.s32.totalorder %s59, %s62
    %p71 = scmp.eq.s32.totalorder %s12, 1
    %p72 = por %p70, %p71
    %p73 = scmp.ne.s32.totalorder %s62, %s63
    %p74 = scmp.eq.s32.totalorder %s12, 0
    %p75 = por %p73, %p74
    %p76 = scmp.ne.s32.totalorder %s62, %s63
    %p77 = scmp.eq.s32.totalorder %s13, 1
    %p78 = por %p76, %p77
    %p80 = scmp.ne.s32.totalorder %s63, %s79
    %p81 = scmp.eq.s32.totalorder %s13, 0
    %p82 = por %p80, %p81
    %p83 = scmp.le.s32.totalorder 1, %s7
    %p84 = scmp.lt.s32.totalorder %s7, 3
    %p85 = pnand %p83, %p84
    %p86 = pneg %p85
    // Predicated region
    $region9: #{tpu_custom_call.1} parent=5 // pred_check
      _
    $region10: #{tpu_custom_call.1} parent=5 // pred_check_branch
      %88 = sbr.rel (%p85) target = $region12
    $region11: #{tpu_custom_call.1} parent=5 // pred_region
      %s89 = ssub.s32 %s7, 1
    $region12: #{tpu_custom_call.1} parent=5 // pred_fallthru
      _
    %p90 = scmp.lt.s32.totalorder %s7, 2
    // Predicated region
    $region13: #{tpu_custom_call.1} parent=5 // pred_check
      %p91 = pneg %p90
    $region14: #{tpu_custom_call.1} parent=5 // pred_check_branch
      %93 = sbr.rel (%p91) target = $region16
    $region15: #{tpu_custom_call.1} parent=5 // pred_region
      // Predicated region
      $region17: #{tpu_custom_call.1} parent=15 // pred_check
        %p94 = pneg %p41
      $region18: #{tpu_custom_call.1} parent=15 // pred_check_branch
        %96 = sbr.rel (%p94) target = $region20
      $region19: #{tpu_custom_call.1} parent=15 // pred_region
        %p97 = scmp.lt.s32.totalorder %s14, 1
        %s98 = scalar_select %p97, %s14, 1
        %p99 = scmp.lt.s32.totalorder %s15, 0
        %s100 = scalar_select %p99, %s15, 0
        %s101 = smul.addr %s98, 32
        %s102 = sadd.s32 %s100, %s101
        %s103 = smul.addr %s102, 8
        %s104 = scalar_lea.vmem %s0, %s103
      $region20: #{tpu_custom_call.1} parent=15 // pred_fallthru
        _
    $region16: #{tpu_custom_call.1} parent=5 // pred_fallthru
      _
    %p105 = scmp.le.s32.totalorder 1, %s7
    %p106 = scmp.lt.s32.totalorder %s7, 3
    %p107 = pnand %p105, %p106
    %p108 = pneg %p107
    // Predicated region
    $region21: #{tpu_custom_call.1} parent=5 // pred_check
      _
    $region22: #{tpu_custom_call.1} parent=5 // pred_check_branch
      %110 = sbr.rel (%p107) target = $region24
    $region23: #{tpu_custom_call.1} parent=5 // pred_region
      %s111 = ssub.s32 %s7, 1
      %p112 = scmp.lt.s32.totalorder %s16, 1
      %s113 = scalar_select %p112, %s16, 1
      %p114 = scmp.lt.s32.totalorder %s17, 0
      %s115 = scalar_select %p114, %s17, 0
      %s116 = smul.addr %s113, 32
      %s117 = sadd.s32 %s115, %s116
      %s118 = smul.addr %s117, 8
      %s119 = scalar_lea.vmem %s0, %s118
      %p120 = pneg %p47
      %p121 = pneg %p44
      %p122 = pneg %p75
      %p123 = pneg %p72
      %p124 = scmp.lt.s32.totalorder %s16, 1
      %s125 = scalar_select %p124, %s16, 1
      %p126 = scmp.lt.s32.totalorder %s17, 0
      %s127 = scalar_select %p126, %s17, 0
      %s128 = smul.addr %s125, 128
      %s129 = sadd.s32 %s127, %s128
      %s130 = smul.addr %s129, 8
      %s131 = scalar_lea.vmem %s1, %s130
      %p132 = scmp.lt.s32.totalorder %s16, 1
      %s133 = scalar_select %p132, %s16, 1
      %p134 = scmp.lt.s32.totalorder %s17, 0
      %s135 = scalar_select %p134, %s17, 0
      %s136 = smul.addr %s133, 32
      %s137 = sadd.s32 %s135, %s136
      %s138 = smul.addr %s137, 8
      %s139 = scalar_lea.vmem %s0, %s138
      %p140 = scmp.lt.s32.totalorder %s16, 1
      %s141 = scalar_select %p140, %s16, 1
      %p142 = scmp.lt.s32.totalorder %s17, 0
      %s143 = scalar_select %p142, %s17, 0
      %s144 = smul.addr %s141, 128
      %s145 = sadd.s32 %s143, %s144
      %s146 = smul.addr %s145, 8
      %s147 = scalar_lea.vmem %s1, %s146
      %v148 = vld [vmem:[%s139] sm:$0xff]
      %v149 = vld [vmem:[%s139 + $0x8] sm:$0xff]
      %v150 = vld [vmem:[%s139 + $0x10] sm:$0xff]
      %v151 = vld [vmem:[%s139 + $0x18] sm:$0xff]
      %v152 = vld [vmem:[%s139 + $0x20] sm:$0xff]
      %v153 = vld [vmem:[%s139 + $0x28] sm:$0xff]
      %v154 = vld [vmem:[%s139 + $0x30] sm:$0xff]
      %v155 = vld [vmem:[%s139 + $0x38] sm:$0xff]
      %v156 = vld [vmem:[%s139 + $0x40] sm:$0xff]
      %v157 = vld [vmem:[%s139 + $0x48] sm:$0xff]
      %v158 = vld [vmem:[%s139 + $0x50] sm:$0xff]
      %v159 = vld [vmem:[%s139 + $0x58] sm:$0xff]
      %v160 = vld [vmem:[%s139 + $0x60] sm:$0xff]
      %v161 = vld [vmem:[%s139 + $0x68] sm:$0xff]
      %v162 = vld [vmem:[%s139 + $0x70] sm:$0xff]
      %v163 = vld [vmem:[%s139 + $0x78] sm:$0xff]
      %v164 = vld [vmem:[%s139 + $0x80] sm:$0xff]
      %v165 = vld [vmem:[%s139 + $0x88] sm:$0xff]
      %v166 = vld [vmem:[%s139 + $0x90] sm:$0xff]
      %v167 = vld [vmem:[%s139 + $0x98] sm:$0xff]
      %v168 = vld [vmem:[%s139 + $0xa0] sm:$0xff]
      %v169 = vld [vmem:[%s139 + $0xa8] sm:$0xff]
      %v170 = vld [vmem:[%s139 + $0xb0] sm:$0xff]
      %v171 = vld [vmem:[%s139 + $0xb8] sm:$0xff]
      %v172 = vld [vmem:[%s139 + $0xc0] sm:$0xff]
      %v173 = vld [vmem:[%s139 + $0xc8] sm:$0xff]
      %v174 = vld [vmem:[%s139 + $0xd0] sm:$0xff]
      %v175 = vld [vmem:[%s139 + $0xd8] sm:$0xff]
      %v176 = vld [vmem:[%s139 + $0xe0] sm:$0xff]
      %v177 = vld [vmem:[%s139 + $0xe8] sm:$0xff]
      %v178 = vld [vmem:[%s139 + $0xf0] sm:$0xff]
      %v179 = vld [vmem:[%s139 + $0xf8] sm:$0xff]
      %vm180 = vcmask 31744
      %181 = vst.msk [vmem:[%s147] sm:$0xff] %vm180, %v148
      %182 = vst.msk [vmem:[%s147 + $0x8] sm:$0xff] %vm180, %v149
      %183 = vst.msk [vmem:[%s147 + $0x10] sm:$0xff] %vm180, %v150
      %184 = vst.msk [vmem:[%s147 + $0x18] sm:$0xff] %vm180, %v151
      %185 = vst.msk [vmem:[%s147 + $0x20] sm:$0xff] %vm180, %v152
      %186 = vst.msk [vmem:[%s147 + $0x28] sm:$0xff] %vm180, %v153
      %187 = vst.msk [vmem:[%s147 + $0x30] sm:$0xff] %vm180, %v154
      %188 = vst.msk [vmem:[%s147 + $0x38] sm:$0xff] %vm180, %v155
      %189 = vst.msk [vmem:[%s147 + $0x40] sm:$0xff] %vm180, %v156
      %190 = vst.msk [vmem:[%s147 + $0x48] sm:$0xff] %vm180, %v157
      %191 = vst.msk [vmem:[%s147 + $0x50] sm:$0xff] %vm180, %v158
      %192 = vst.msk [vmem:[%s147 + $0x58] sm:$0xff] %vm180, %v159
      %193 = vst.msk [vmem:[%s147 + $0x60] sm:$0xff] %vm180, %v160
      %194 = vst.msk [vmem:[%s147 + $0x68] sm:$0xff] %vm180, %v161
      %195 = vst.msk [vmem:[%s147 + $0x70] sm:$0xff] %vm180, %v162
      %196 = vst.msk [vmem:[%s147 + $0x78] sm:$0xff] %vm180, %v163
      %197 = vst.msk [vmem:[%s147 + $0x80] sm:$0xff] %vm180, %v164
      %198 = vst.msk [vmem:[%s147 + $0x88] sm:$0xff] %vm180, %v165
      %199 = vst.msk [vmem:[%s147 + $0x90] sm:$0xff] %vm180, %v166
      %200 = vst.msk [vmem:[%s147 + $0x98] sm:$0xff] %vm180, %v167
      %201 = vst.msk [vmem:[%s147 + $0xa0] sm:$0xff] %vm180, %v168
      %202 = vst.msk [vmem:[%s147 + $0xa8] sm:$0xff] %vm180, %v169
      %203 = vst.msk [vmem:[%s147 + $0xb0] sm:$0xff] %vm180, %v170
      %204 = vst.msk [vmem:[%s147 + $0xb8] sm:$0xff] %vm180, %v171
      %205 = vst.msk [vmem:[%s147 + $0xc0] sm:$0xff] %vm180, %v172
      %206 = vst.msk [vmem:[%s147 + $0xc8] sm:$0xff] %vm180, %v173
      %207 = vst.msk [vmem:[%s147 + $0xd0] sm:$0xff] %vm180, %v174
      %208 = vst.msk [vmem:[%s147 + $0xd8] sm:$0xff] %vm180, %v175
      %209 = vst.msk [vmem:[%s147 + $0xe0] sm:$0xff] %vm180, %v176
      %210 = vst.msk [vmem:[%s147 + $0xe8] sm:$0xff] %vm180, %v177
      %211 = vst.msk [vmem:[%s147 + $0xf0] sm:$0xff] %vm180, %v178
      %212 = vst.msk [vmem:[%s147 + $0xf8] sm:$0xff] %vm180, %v179
      %v213 = vld [vmem:[%s147] sm:$0xff]
      %v214 = vld [vmem:[%s147 + $0x8] sm:$0xff]
      %v215 = vld [vmem:[%s147 + $0x10] sm:$0xff]
      %v216 = vld [vmem:[%s147 + $0x18] sm:$0xff]
      %v217 = vld [vmem:[%s147 + $0x20] sm:$0xff]
      %v218 = vld [vmem:[%s147 + $0x28] sm:$0xff]
      %v219 = vld [vmem:[%s147 + $0x30] sm:$0xff]
      %v220 = vld [vmem:[%s147 + $0x38] sm:$0xff]
      %v221 = vld [vmem:[%s147 + $0x40] sm:$0xff]
      %v222 = vld [vmem:[%s147 + $0x48] sm:$0xff]
      %v223 = vld [vmem:[%s147 + $0x50] sm:$0xff]
      %v224 = vld [vmem:[%s147 + $0x58] sm:$0xff]
      %v225 = vld [vmem:[%s147 + $0x60] sm:$0xff]
      %v226 = vld [vmem:[%s147 + $0x68] sm:$0xff]
      %v227 = vld [vmem:[%s147 + $0x70] sm:$0xff]
      %v228 = vld [vmem:[%s147 + $0x78] sm:$0xff]
      %v229 = vld [vmem:[%s147 + $0x80] sm:$0xff]
      %v230 = vld [vmem:[%s147 + $0x88] sm:$0xff]
      %v231 = vld [vmem:[%s147 + $0x90] sm:$0xff]
      %v232 = vld [vmem:[%s147 + $0x98] sm:$0xff]
      %v233 = vld [vmem:[%s147 + $0xa0] sm:$0xff]
      %v234 = vld [vmem:[%s147 + $0xa8] sm:$0xff]
      %v235 = vld [vmem:[%s147 + $0xb0] sm:$0xff]
      %v236 = vld [vmem:[%s147 + $0xb8] sm:$0xff]
      %v237 = vld [vmem:[%s147 + $0xc0] sm:$0xff]
      %v238 = vld [vmem:[%s147 + $0xc8] sm:$0xff]
      %v239 = vld [vmem:[%s147 + $0xd0] sm:$0xff]
      %v240 = vld [vmem:[%s147 + $0xd8] sm:$0xff]
      %v241 = vld [vmem:[%s147 + $0xe0] sm:$0xff]
      %v242 = vld [vmem:[%s147 + $0xe8] sm:$0xff]
      %v243 = vld [vmem:[%s147 + $0xf0] sm:$0xff]
      %v244 = vld [vmem:[%s147 + $0xf8] sm:$0xff]
      %245 = vst.msk [vmem:[#allocation2] sm:$0xff] %vm180, %v213
      %246 = vst.msk [vmem:[#allocation2 + $0x8] sm:$0xff] %vm180, %v214
      %247 = vst.msk [vmem:[#allocation2 + $0x10] sm:$0xff] %vm180, %v215
      %248 = vst.msk [vmem:[#allocation2 + $0x18] sm:$0xff] %vm180, %v216
      %249 = vst.msk [vmem:[#allocation2 + $0x20] sm:$0xff] %vm180, %v217
      %250 = vst.msk [vmem:[#allocation2 + $0x28] sm:$0xff] %vm180, %v218
      %251 = vst.msk [vmem:[#allocation2 + $0x30] sm:$0xff] %vm180, %v219
      %252 = vst.msk [vmem:[#allocation2 + $0x38] sm:$0xff] %vm180, %v220
      %253 = vst.msk [vmem:[#allocation2 + $0x40] sm:$0xff] %vm180, %v221
      %254 = vst.msk [vmem:[#allocation2 + $0x48] sm:$0xff] %vm180, %v222
      %255 = vst.msk [vmem:[#allocation2 + $0x50] sm:$0xff] %vm180, %v223
      %256 = vst.msk [vmem:[#allocation2 + $0x58] sm:$0xff] %vm180, %v224
      %257 = vst.msk [vmem:[#allocation2 + $0x60] sm:$0xff] %vm180, %v225
      %258 = vst.msk [vmem:[#allocation2 + $0x68] sm:$0xff] %vm180, %v226
      %259 = vst.msk [vmem:[#allocation2 + $0x70] sm:$0xff] %vm180, %v227
      %260 = vst.msk [vmem:[#allocation2 + $0x78] sm:$0xff] %vm180, %v228
      %261 = vst.msk [vmem:[#allocation2 + $0x80] sm:$0xff] %vm180, %v229
      %262 = vst.msk [vmem:[#allocation2 + $0x88] sm:$0xff] %vm180, %v230
      %263 = vst.msk [vmem:[#allocation2 + $0x90] sm:$0xff] %vm180, %v231
      %264 = vst.msk [vmem:[#allocation2 + $0x98] sm:$0xff] %vm180, %v232
      %265 = vst.msk [vmem:[#allocation2 + $0xa0] sm:$0xff] %vm180, %v233
      %266 = vst.msk [vmem:[#allocation2 + $0xa8] sm:$0xff] %vm180, %v234
      %267 = vst.msk [vmem:[#allocation2 + $0xb0] sm:$0xff] %vm180, %v235
      %268 = vst.msk [vmem:[#allocation2 + $0xb8] sm:$0xff] %vm180, %v236
      %269 = vst.msk [vmem:[#allocation2 + $0xc0] sm:$0xff] %vm180, %v237
      %270 = vst.msk [vmem:[#allocation2 + $0xc8] sm:$0xff] %vm180, %v238
      %271 = vst.msk [vmem:[#allocation2 + $0xd0] sm:$0xff] %vm180, %v239
      %272 = vst.msk [vmem:[#allocation2 + $0xd8] sm:$0xff] %vm180, %v240
      %273 = vst.msk [vmem:[#allocation2 + $0xe0] sm:$0xff] %vm180, %v241
      %274 = vst.msk [vmem:[#allocation2 + $0xe8] sm:$0xff] %vm180, %v242
      %275 = vst.msk [vmem:[#allocation2 + $0xf0] sm:$0xff] %vm180, %v243
      %276 = vst.msk [vmem:[#allocation2 + $0xf8] sm:$0xff] %vm180, %v244
      %v277 = vld [vmem:[#allocation2] sm:$0xff]
      %v278 = vld [vmem:[#allocation2 + $0x8] sm:$0x7f]
      %v279 = vld [vmem:[#allocation2 + $0x10] sm:$0xff]
      %v280 = vld [vmem:[#allocation2 + $0x18] sm:$0x7f]
      %v281 = vld [vmem:[#allocation2 + $0x20] sm:$0xff]
      %v282 = vld [vmem:[#allocation2 + $0x28] sm:$0x7f]
      %v283 = vld [vmem:[#allocation2 + $0x30] sm:$0xff]
      %v284 = vld [vmem:[#allocation2 + $0x38] sm:$0x7f]
      %v285 = vld [vmem:[#allocation2 + $0x40] sm:$0xff]
      %v286 = vld [vmem:[#allocation2 + $0x48] sm:$0x7f]
      %v287 = vld [vmem:[#allocation2 + $0x50] sm:$0xff]
      %v288 = vld [vmem:[#allocation2 + $0x58] sm:$0x7f]
      %v289 = vld [vmem:[#allocation2 + $0x60] sm:$0xff]
      %v290 = vld [vmem:[#allocation2 + $0x68] sm:$0x7f]
      %v291 = vld [vmem:[#allocation2 + $0x70] sm:$0xff]
      %v292 = vld [vmem:[#allocation2 + $0x78] sm:$0x7f]
      %v293 = vld [vmem:[#allocation2 + $0x80] sm:$0xff]
      %v294 = vld [vmem:[#allocation2 + $0x88] sm:$0x7f]
      %v295 = vld [vmem:[#allocation2 + $0x90] sm:$0xff]
      %v296 = vld [vmem:[#allocation2 + $0x98] sm:$0x7f]
      %v297 = vld [vmem:[#allocation2 + $0xa0] sm:$0xff]
      %v298 = vld [vmem:[#allocation2 + $0xa8] sm:$0x7f]
      %v299 = vld [vmem:[#allocation2 + $0xb0] sm:$0xff]
      %v300 = vld [vmem:[#allocation2 + $0xb8] sm:$0x7f]
      %v301 = vld [vmem:[#allocation2 + $0xc0] sm:$0xff]
      %v302 = vld [vmem:[#allocation2 + $0xc8] sm:$0x7f]
      %v303 = vld [vmem:[#allocation2 + $0xd0] sm:$0xff]
      %v304 = vld [vmem:[#allocation2 + $0xd8] sm:$0x7f]
      %v305 = vld [vmem:[#allocation2 + $0xe0] sm:$0xff]
      %v306 = vld [vmem:[#allocation2 + $0xe8] sm:$0x7f]
      %v307 = vld [vmem:[#allocation2 + $0xf0] sm:$0xff]
      %v308 = vld [vmem:[#allocation2 + $0xf8] sm:$0x7f]
      %v309 = vld [vmem:[%s147 + $0x1] sm:$0xff]
      %v310 = vld [vmem:[%s147 + $0x9] sm:$0x7f]
      %v311 = vld [vmem:[%s147 + $0x11] sm:$0xff]
      %v312 = vld [vmem:[%s147 + $0x19] sm:$0x7f]
      %v313 = vld [vmem:[%s147 + $0x21] sm:$0xff]
      %v314 = vld [vmem:[%s147 + $0x29] sm:$0x7f]
      %v315 = vld [vmem:[%s147 + $0x31] sm:$0xff]
      %v316 = vld [vmem:[%s147 + $0x39] sm:$0x7f]
      %v317 = vld [vmem:[%s147 + $0x41] sm:$0xff]
      %v318 = vld [vmem:[%s147 + $0x49] sm:$0x7f]
      %v319 = vld [vmem:[%s147 + $0x51] sm:$0xff]
      %v320 = vld [vmem:[%s147 + $0x59] sm:$0x7f]
      %v321 = vld [vmem:[%s147 + $0x61] sm:$0xff]
      %v322 = vld [vmem:[%s147 + $0x69] sm:$0x7f]
      %v323 = vld [vmem:[%s147 + $0x71] sm:$0xff]
      %v324 = vld [vmem:[%s147 + $0x79] sm:$0x7f]
      %v325 = vld [vmem:[%s147 + $0x81] sm:$0xff]
      %v326 = vld [vmem:[%s147 + $0x89] sm:$0x7f]
      %v327 = vld [vmem:[%s147 + $0x91] sm:$0xff]
      %v328 = vld [vmem:[%s147 + $0x99] sm:$0x7f]
      %v329 = vld [vmem:[%s147 + $0xa1] sm:$0xff]
      %v330 = vld [vmem:[%s147 + $0xa9] sm:$0x7f]
      %v331 = vld [vmem:[%s147 + $0xb1] sm:$0xff]
      %v332 = vld [vmem:[%s147 + $0xb9] sm:$0x7f]
      %v333 = vld [vmem:[%s147 + $0xc1] sm:$0xff]
      %v334 = vld [vmem:[%s147 + $0xc9] sm:$0x7f]
      %v335 = vld [vmem:[%s147 + $0xd1] sm:$0xff]
      %v336 = vld [vmem:[%s147 + $0xd9] sm:$0x7f]
      %v337 = vld [vmem:[%s147 + $0xe1] sm:$0xff]
      %v338 = vld [vmem:[%s147 + $0xe9] sm:$0x7f]
      %v339 = vld [vmem:[%s147 + $0xf1] sm:$0xff]
      %v340 = vld [vmem:[%s147 + $0xf9] sm:$0x7f]
      %v341 = vmax.f32 %v277, %v309
      %v342 = vmax.f32 %v278, %v310
      %v343 = vmax.f32 %v279, %v311
      %v344 = vmax.f32 %v280, %v312
      %v345 = vmax.f32 %v281, %v313
      %v346 = vmax.f32 %v282, %v314
      %v347 = vmax.f32 %v283, %v315
      %v348 = vmax.f32 %v284, %v316
      %v349 = vmax.f32 %v285, %v317
      %v350 = vmax.f32 %v286, %v318
      %v351 = vmax.f32 %v287, %v319
      %v352 = vmax.f32 %v288, %v320
      %v353 = vmax.f32 %v289, %v321
      %v354 = vmax.f32 %v290, %v322
      %v355 = vmax.f32 %v291, %v323
      %v356 = vmax.f32 %v292, %v324
      %v357 = vmax.f32 %v293, %v325
      %v358 = vmax.f32 %v294, %v326
      %v359 = vmax.f32 %v295, %v327
      %v360 = vmax.f32 %v296, %v328
      %v361 = vmax.f32 %v297, %v329
      %v362 = vmax.f32 %v298, %v330
      %v363 = vmax.f32 %v299, %v331
      %v364 = vmax.f32 %v300, %v332
      %v365 = vmax.f32 %v301, %v333
      %v366 = vmax.f32 %v302, %v334
      %v367 = vmax.f32 %v303, %v335
      %v368 = vmax.f32 %v304, %v336
      %v369 = vmax.f32 %v305, %v337
      %v370 = vmax.f32 %v306, %v338
      %v371 = vmax.f32 %v307, %v339
      %v372 = vmax.f32 %v308, %v340
      %373 = vst.msk [vmem:[#allocation2] sm:$0xff] %vm180, %v341
      %vm374 = vcmask 30720
      %375 = vst.msk [vmem:[#allocation2 + $0x8] sm:$0x7f] %vm374, %v342
      %376 = vst.msk [vmem:[#allocation2 + $0x10] sm:$0xff] %vm180, %v343
      %377 = vst.msk [vmem:[#allocation2 + $0x18] sm:$0x7f] %vm374, %v344
      %378 = vst.msk [vmem:[#allocation2 + $0x20] sm:$0xff] %vm180, %v345
      %379 = vst.msk [vmem:[#allocation2 + $0x28] sm:$0x7f] %vm374, %v346
      %380 = vst.msk [vmem:[#allocation2 + $0x30] sm:$0xff] %vm180, %v347
      %381 = vst.msk [vmem:[#allocation2 + $0x38] sm:$0x7f] %vm374, %v348
      %382 = vst.msk [vmem:[#allocation2 + $0x40] sm:$0xff] %vm180, %v349
      %383 = vst.msk [vmem:[#allocation2 + $0x48] sm:$0x7f] %vm374, %v350
      %384 = vst.msk [vmem:[#allocation2 + $0x50] sm:$0xff] %vm180, %v351
      %385 = vst.msk [vmem:[#allocation2 + $0x58] sm:$0x7f] %vm374, %v352
      %386 = vst.msk [vmem:[#allocation2 + $0x60] sm:$0xff] %vm180, %v353
      %387 = vst.msk [vmem:[#allocation2 + $0x68] sm:$0x7f] %vm374, %v354
      %388 = vst.msk [vmem:[#allocation2 + $0x70] sm:$0xff] %vm180, %v355
      %389 = vst.msk [vmem:[#allocation2 + $0x78] sm:$0x7f] %vm374, %v356
      %390 = vst.msk [vmem:[#allocation2 + $0x80] sm:$0xff] %vm180, %v357
      %391 = vst.msk [vmem:[#allocation2 + $0x88] sm:$0x7f] %vm374, %v358
      %392 = vst.msk [vmem:[#allocation2 + $0x90] sm:$0xff] %vm180, %v359
      %393 = vst.msk [vmem:[#allocation2 + $0x98] sm:$0x7f] %vm374, %v360
      %394 = vst.msk [vmem:[#allocation2 + $0xa0] sm:$0xff] %vm180, %v361
      %395 = vst.msk [vmem:[#allocation2 + $0xa8] sm:$0x7f] %vm374, %v362
      %396 = vst.msk [vmem:[#allocation2 + $0xb0] sm:$0xff] %vm180, %v363
      %397 = vst.msk [vmem:[#allocation2 + $0xb8] sm:$0x7f] %vm374, %v364
      %398 = vst.msk [vmem:[#allocation2 + $0xc0] sm:$0xff] %vm180, %v365
      %399 = vst.msk [vmem:[#allocation2 + $0xc8] sm:$0x7f] %vm374, %v366
      %400 = vst.msk [vmem:[#allocation2 + $0xd0] sm:$0xff] %vm180, %v367
      %401 = vst.msk [vmem:[#allocation2 + $0xd8] sm:$0x7f] %vm374, %v368
      %402 = vst.msk [vmem:[#allocation2 + $0xe0] sm:$0xff] %vm180, %v369
      %403 = vst.msk [vmem:[#allocation2 + $0xe8] sm:$0x7f] %vm374, %v370
      %404 = vst.msk [vmem:[#allocation2 + $0xf0] sm:$0xff] %vm180, %v371
      %405 = vst.msk [vmem:[#allocation2 + $0xf8] sm:$0x7f] %vm374, %v372
      %v406 = vld [vmem:[#allocation2 + $0x1] sm:$0xff]
      %v407 = vld [vmem:[#allocation2 + $0x9] sm:$0x7f]
      %v408 = vld [vmem:[#allocation2 + $0x11] sm:$0xff]
      %v409 = vld [vmem:[#allocation2 + $0x19] sm:$0x7f]
      %v410 = vld [vmem:[#allocation2 + $0x21] sm:$0xff]
      %v411 = vld [vmem:[#allocation2 + $0x29] sm:$0x7f]
      %v412 = vld [vmem:[#allocation2 + $0x31] sm:$0xff]
      %v413 = vld [vmem:[#allocation2 + $0x39] sm:$0x7f]
      %v414 = vld [vmem:[#allocation2 + $0x41] sm:$0xff]
      %v415 = vld [vmem:[#allocation2 + $0x49] sm:$0x7f]
      %v416 = vld [vmem:[#allocation2 + $0x51] sm:$0xff]
      %v417 = vld [vmem:[#allocation2 + $0x59] sm:$0x7f]
      %v418 = vld [vmem:[#allocation2 + $0x61] sm:$0xff]
      %v419 = vld [vmem:[#allocation2 + $0x69] sm:$0x7f]
      %v420 = vld [vmem:[#allocation2 + $0x71] sm:$0xff]
      %v421 = vld [vmem:[#allocation2 + $0x79] sm:$0x7f]
      %v422 = vld [vmem:[#allocation2 + $0x81] sm:$0xff]
      %v423 = vld [vmem:[#allocation2 + $0x89] sm:$0x7f]
      %v424 = vld [vmem:[#allocation2 + $0x91] sm:$0xff]
      %v425 = vld [vmem:[#allocation2 + $0x99] sm:$0x7f]
      %v426 = vld [vmem:[#allocation2 + $0xa1] sm:$0xff]
      %v427 = vld [vmem:[#allocation2 + $0xa9] sm:$0x7f]
      %v428 = vld [vmem:[#allocation2 + $0xb1] sm:$0xff]
      %v429 = vld [vmem:[#allocation2 + $0xb9] sm:$0x7f]
      %v430 = vld [vmem:[#allocation2 + $0xc1] sm:$0xff]
      %v431 = vld [vmem:[#allocation2 + $0xc9] sm:$0x7f]
      %v432 = vld [vmem:[#allocation2 + $0xd1] sm:$0xff]
      %v433 = vld [vmem:[#allocation2 + $0xd9] sm:$0x7f]
      %v434 = vld [vmem:[#allocation2 + $0xe1] sm:$0xff]
      %v435 = vld [vmem:[#allocation2 + $0xe9] sm:$0x7f]
      %v436 = vld [vmem:[#allocation2 + $0xf1] sm:$0xff]
      %v437 = vld [vmem:[#allocation2 + $0xf9] sm:$0x7f]
      %v438 = vld [vmem:[%s147] sm:$0xff]
      %v439 = vld [vmem:[%s147 + $0x8] sm:$0x7f]
      %v440 = vld [vmem:[%s147 + $0x10] sm:$0xff]
      %v441 = vld [vmem:[%s147 + $0x18] sm:$0x7f]
      %v442 = vld [vmem:[%s147 + $0x20] sm:$0xff]
      %v443 = vld [vmem:[%s147 + $0x28] sm:$0x7f]
      %v444 = vld [vmem:[%s147 + $0x30] sm:$0xff]
      %v445 = vld [vmem:[%s147 + $0x38] sm:$0x7f]
      %v446 = vld [vmem:[%s147 + $0x40] sm:$0xff]
      %v447 = vld [vmem:[%s147 + $0x48] sm:$0x7f]
      %v448 = vld [vmem:[%s147 + $0x50] sm:$0xff]
      %v449 = vld [vmem:[%s147 + $0x58] sm:$0x7f]
      %v450 = vld [vmem:[%s147 + $0x60] sm:$0xff]
      %v451 = vld [vmem:[%s147 + $0x68] sm:$0x7f]
      %v452 = vld [vmem:[%s147 + $0x70] sm:$0xff]
      %v453 = vld [vmem:[%s147 + $0x78] sm:$0x7f]
      %v454 = vld [vmem:[%s147 + $0x80] sm:$0xff]
      %v455 = vld [vmem:[%s147 + $0x88] sm:$0x7f]
      %v456 = vld [vmem:[%s147 + $0x90] sm:$0xff]
      %v457 = vld [vmem:[%s147 + $0x98] sm:$0x7f]
      %v458 = vld [vmem:[%s147 + $0xa0] sm:$0xff]
      %v459 = vld [vmem:[%s147 + $0xa8] sm:$0x7f]
      %v460 = vld [vmem:[%s147 + $0xb0] sm:$0xff]
      %v461 = vld [vmem:[%s147 + $0xb8] sm:$0x7f]
      %v462 = vld [vmem:[%s147 + $0xc0] sm:$0xff]
      %v463 = vld [vmem:[%s147 + $0xc8] sm:$0x7f]
      %v464 = vld [vmem:[%s147 + $0xd0] sm:$0xff]
      %v465 = vld [vmem:[%s147 + $0xd8] sm:$0x7f]
      %v466 = vld [vmem:[%s147 + $0xe0] sm:$0xff]
      %v467 = vld [vmem:[%s147 + $0xe8] sm:$0x7f]
      %v468 = vld [vmem:[%s147 + $0xf0] sm:$0xff]
      %v469 = vld [vmem:[%s147 + $0xf8] sm:$0x7f]
      %v470 = vmax.f32 %v406, %v438
      %v471 = vmax.f32 %v407, %v439
      %v472 = vmax.f32 %v408, %v440
      %v473 = vmax.f32 %v409, %v441
      %v474 = vmax.f32 %v410, %v442
      %v475 = vmax.f32 %v411, %v443
      %v476 = vmax.f32 %v412, %v444
      %v477 = vmax.f32 %v413, %v445
      %v478 = vmax.f32 %v414, %v446
      %v479 = vmax.f32 %v415, %v447
      %v480 = vmax.f32 %v416, %v448
      %v481 = vmax.f32 %v417, %v449
      %v482 = vmax.f32 %v418, %v450
      %v483 = vmax.f32 %v419, %v451
      %v484 = vmax.f32 %v420, %v452
      %v485 = vmax.f32 %v421, %v453
      %v486 = vmax.f32 %v422, %v454
      %v487 = vmax.f32 %v423, %v455
      %v488 = vmax.f32 %v424, %v456
      %v489 = vmax.f32 %v425, %v457
      %v490 = vmax.f32 %v426, %v458
      %v491 = vmax.f32 %v427, %v459
      %v492 = vmax.f32 %v428, %v460
      %v493 = vmax.f32 %v429, %v461
      %v494 = vmax.f32 %v430, %v462
      %v495 = vmax.f32 %v431, %v463
      %v496 = vmax.f32 %v432, %v464
      %v497 = vmax.f32 %v433, %v465
      %v498 = vmax.f32 %v434, %v466
      %v499 = vmax.f32 %v435, %v467
      %v500 = vmax.f32 %v436, %v468
      %v501 = vmax.f32 %v437, %v469
      %502 = vst.msk [vmem:[#allocation2 + $0x1] sm:$0xff] %vm180, %v470
      %503 = vst.msk [vmem:[#allocation2 + $0x9] sm:$0x7f] %vm374, %v471
      %504 = vst.msk [vmem:[#allocation2 + $0x11] sm:$0xff] %vm180, %v472
      %505 = vst.msk [vmem:[#allocation2 + $0x19] sm:$0x7f] %vm374, %v473
      %506 = vst.msk [vmem:[#allocation2 + $0x21] sm:$0xff] %vm180, %v474
      %507 = vst.msk [vmem:[#allocation2 + $0x29] sm:$0x7f] %vm374, %v475
      %508 = vst.msk [vmem:[#allocation2 + $0x31] sm:$0xff] %vm180, %v476
      %509 = vst.msk [vmem:[#allocation2 + $0x39] sm:$0x7f] %vm374, %v477
      %510 = vst.msk [vmem:[#allocation2 + $0x41] sm:$0xff] %vm180, %v478
      %511 = vst.msk [vmem:[#allocation2 + $0x49] sm:$0x7f] %vm374, %v479
      %512 = vst.msk [vmem:[#allocation2 + $0x51] sm:$0xff] %vm180, %v480
      %513 = vst.msk [vmem:[#allocation2 + $0x59] sm:$0x7f] %vm374, %v481
      %514 = vst.msk [vmem:[#allocation2 + $0x61] sm:$0xff] %vm180, %v482
      %515 = vst.msk [vmem:[#allocation2 + $0x69] sm:$0x7f] %vm374, %v483
      %516 = vst.msk [vmem:[#allocation2 + $0x71] sm:$0xff] %vm180, %v484
      %517 = vst.msk [vmem:[#allocation2 + $0x79] sm:$0x7f] %vm374, %v485
      %518 = vst.msk [vmem:[#allocation2 + $0x81] sm:$0xff] %vm180, %v486
      %519 = vst.msk [vmem:[#allocation2 + $0x89] sm:$0x7f] %vm374, %v487
      %520 = vst.msk [vmem:[#allocation2 + $0x91] sm:$0xff] %vm180, %v488
      %521 = vst.msk [vmem:[#allocation2 + $0x99] sm:$0x7f] %vm374, %v489
      %522 = vst.msk [vmem:[#allocation2 + $0xa1] sm:$0xff] %vm180, %v490
      %523 = vst.msk [vmem:[#allocation2 + $0xa9] sm:$0x7f] %vm374, %v491
      %524 = vst.msk [vmem:[#allocation2 + $0xb1] sm:$0xff] %vm180, %v492
      %525 = vst.msk [vmem:[#allocation2 + $0xb9] sm:$0x7f] %vm374, %v493
      %526 = vst.msk [vmem:[#allocation2 + $0xc1] sm:$0xff] %vm180, %v494
      %527 = vst.msk [vmem:[#allocation2 + $0xc9] sm:$0x7f] %vm374, %v495
      %528 = vst.msk [vmem:[#allocation2 + $0xd1] sm:$0xff] %vm180, %v496
      %529 = vst.msk [vmem:[#allocation2 + $0xd9] sm:$0x7f] %vm374, %v497
      %530 = vst.msk [vmem:[#allocation2 + $0xe1] sm:$0xff] %vm180, %v498
      %531 = vst.msk [vmem:[#allocation2 + $0xe9] sm:$0x7f] %vm374, %v499
      %532 = vst.msk [vmem:[#allocation2 + $0xf1] sm:$0xff] %vm180, %v500
      %533 = vst.msk [vmem:[#allocation2 + $0xf9] sm:$0x7f] %vm374, %v501
      %v534 = vld [vmem:[#allocation2] sm:$0xff]
      %v535 = vld [vmem:[#allocation2 + $0x8] sm:$0x3f]
      %v536 = vld [vmem:[#allocation2 + $0x10] sm:$0xff]
      %v537 = vld [vmem:[#allocation2 + $0x18] sm:$0x3f]
      %v538 = vld [vmem:[#allocation2 + $0x20] sm:$0xff]
      %v539 = vld [vmem:[#allocation2 + $0x28] sm:$0x3f]
      %v540 = vld [vmem:[#allocation2 + $0x30] sm:$0xff]
      %v541 = vld [vmem:[#allocation2 + $0x38] sm:$0x3f]
      %v542 = vld [vmem:[#allocation2 + $0x40] sm:$0xff]
      %v543 = vld [vmem:[#allocation2 + $0x48] sm:$0x3f]
      %v544 = vld [vmem:[#allocation2 + $0x50] sm:$0xff]
      %v545 = vld [vmem:[#allocation2 + $0x58] sm:$0x3f]
      %v546 = vld [vmem:[#allocation2 + $0x60] sm:$0xff]
      %v547 = vld [vmem:[#allocation2 + $0x68] sm:$0x3f]
      %v548 = vld [vmem:[#allocation2 + $0x70] sm:$0xff]
      %v549 = vld [vmem:[#allocation2 + $0x78] sm:$0x3f]
      %v550 = vld [vmem:[#allocation2 + $0x80] sm:$0xff]
      %v551 = vld [vmem:[#allocation2 + $0x88] sm:$0x3f]
      %v552 = vld [vmem:[#allocation2 + $0x90] sm:$0xff]
      %v553 = vld [vmem:[#allocation2 + $0x98] sm:$0x3f]
      %v554 = vld [vmem:[#allocation2 + $0xa0] sm:$0xff]
      %v555 = vld [vmem:[#allocation2 + $0xa8] sm:$0x3f]
      %v556 = vld [vmem:[#allocation2 + $0xb0] sm:$0xff]
      %v557 = vld [vmem:[#allocation2 + $0xb8] sm:$0x3f]
      %v558 = vld [vmem:[#allocation2 + $0xc0] sm:$0xff]
      %v559 = vld [vmem:[#allocation2 + $0xc8] sm:$0x3f]
      %v560 = vld [vmem:[#allocation2 + $0xd0] sm:$0xff]
      %v561 = vld [vmem:[#allocation2 + $0xd8] sm:$0x3f]
      %v562 = vld [vmem:[#allocation2 + $0xe0] sm:$0xff]
      %v563 = vld [vmem:[#allocation2 + $0xe8] sm:$0x3f]
      %v564 = vld [vmem:[#allocation2 + $0xf0] sm:$0xff]
      %v565 = vld [vmem:[#allocation2 + $0xf8] sm:$0x3f]
      %v566 = vld [vmem:[%s147 + $0x2] sm:$0xff]
      %v567 = vld [vmem:[%s147 + $0xa] sm:$0x3f]
      %v568 = vld [vmem:[%s147 + $0x12] sm:$0xff]
      %v569 = vld [vmem:[%s147 + $0x1a] sm:$0x3f]
      %v570 = vld [vmem:[%s147 + $0x22] sm:$0xff]
      %v571 = vld [vmem:[%s147 + $0x2a] sm:$0x3f]
      %v572 = vld [vmem:[%s147 + $0x32] sm:$0xff]
      %v573 = vld [vmem:[%s147 + $0x3a] sm:$0x3f]
      %v574 = vld [vmem:[%s147 + $0x42] sm:$0xff]
      %v575 = vld [vmem:[%s147 + $0x4a] sm:$0x3f]
      %v576 = vld [vmem:[%s147 + $0x52] sm:$0xff]
      %v577 = vld [vmem:[%s147 + $0x5a] sm:$0x3f]
      %v578 = vld [vmem:[%s147 + $0x62] sm:$0xff]
      %v579 = vld [vmem:[%s147 + $0x6a] sm:$0x3f]
      %v580 = vld [vmem:[%s147 + $0x72] sm:$0xff]
      %v581 = vld [vmem:[%s147 + $0x7a] sm:$0x3f]
      %v582 = vld [vmem:[%s147 + $0x82] sm:$0xff]
      %v583 = vld [vmem:[%s147 + $0x8a] sm:$0x3f]
      %v584 = vld [vmem:[%s147 + $0x92] sm:$0xff]
      %v585 = vld [vmem:[%s147 + $0x9a] sm:$0x3f]
      %v586 = vld [vmem:[%s147 + $0xa2] sm:$0xff]
      %v587 = vld [vmem:[%s147 + $0xaa] sm:$0x3f]
      %v588 = vld [vmem:[%s147 + $0xb2] sm:$0xff]
      %v589 = vld [vmem:[%s147 + $0xba] sm:$0x3f]
      %v590 = vld [vmem:[%s147 + $0xc2] sm:$0xff]
      %v591 = vld [vmem:[%s147 + $0xca] sm:$0x3f]
      %v592 = vld [vmem:[%s147 + $0xd2] sm:$0xff]
      %v593 = vld [vmem:[%s147 + $0xda] sm:$0x3f]
      %v594 = vld [vmem:[%s147 + $0xe2] sm:$0xff]
      %v595 = vld [vmem:[%s147 + $0xea] sm:$0x3f]
      %v596 = vld [vmem:[%s147 + $0xf2] sm:$0xff]
      %v597 = vld [vmem:[%s147 + $0xfa] sm:$0x3f]
      %v598 = vmax.f32 %v534, %v566
      %v599 = vmax.f32 %v535, %v567
      %v600 = vmax.f32 %v536, %v568
      %v601 = vmax.f32 %v537, %v569
      %v602 = vmax.f32 %v538, %v570
      %v603 = vmax.f32 %v539, %v571
      %v604 = vmax.f32 %v540, %v572
      %v605 = vmax.f32 %v541, %v573
      %v606 = vmax.f32 %v542, %v574
      %v607 = vmax.f32 %v543, %v575
      %v608 = vmax.f32 %v544, %v576
      %v609 = vmax.f32 %v545, %v577
      %v610 = vmax.f32 %v546, %v578
      %v611 = vmax.f32 %v547, %v579
      %v612 = vmax.f32 %v548, %v580
      %v613 = vmax.f32 %v549, %v581
      %v614 = vmax.f32 %v550, %v582
      %v615 = vmax.f32 %v551, %v583
      %v616 = vmax.f32 %v552, %v584
      %v617 = vmax.f32 %v553, %v585
      %v618 = vmax.f32 %v554, %v586
      %v619 = vmax.f32 %v555, %v587
      %v620 = vmax.f32 %v556, %v588
      %v621 = vmax.f32 %v557, %v589
      %v622 = vmax.f32 %v558, %v590
      %v623 = vmax.f32 %v559, %v591
      %v624 = vmax.f32 %v560, %v592
      %v625 = vmax.f32 %v561, %v593
      %v626 = vmax.f32 %v562, %v594
      %v627 = vmax.f32 %v563, %v595
      %v628 = vmax.f32 %v564, %v596
      %v629 = vmax.f32 %v565, %v597
      %630 = vst.msk [vmem:[#allocation2] sm:$0xff] %vm180, %v598
      %vm631 = vcmask 29696
      %632 = vst.msk [vmem:[#allocation2 + $0x8] sm:$0x3f] %vm631, %v599
      %633 = vst.msk [vmem:[#allocation2 + $0x10] sm:$0xff] %vm180, %v600
      %634 = vst.msk [vmem:[#allocation2 + $0x18] sm:$0x3f] %vm631, %v601
      %635 = vst.msk [vmem:[#allocation2 + $0x20] sm:$0xff] %vm180, %v602
      %636 = vst.msk [vmem:[#allocation2 + $0x28] sm:$0x3f] %vm631, %v603
      %637 = vst.msk [vmem:[#allocation2 + $0x30] sm:$0xff] %vm180, %v604
      %638 = vst.msk [vmem:[#allocation2 + $0x38] sm:$0x3f] %vm631, %v605
      %639 = vst.msk [vmem:[#allocation2 + $0x40] sm:$0xff] %vm180, %v606
      %640 = vst.msk [vmem:[#allocation2 + $0x48] sm:$0x3f] %vm631, %v607
      %641 = vst.msk [vmem:[#allocation2 + $0x50] sm:$0xff] %vm180, %v608
      %642 = vst.msk [vmem:[#allocation2 + $0x58] sm:$0x3f] %vm631, %v609
      %643 = vst.msk [vmem:[#allocation2 + $0x60] sm:$0xff] %vm180, %v610
      %644 = vst.msk [vmem:[#allocation2 + $0x68] sm:$0x3f] %vm631, %v611
      %645 = vst.msk [vmem:[#allocation2 + $0x70] sm:$0xff] %vm180, %v612
      %646 = vst.msk [vmem:[#allocation2 + $0x78] sm:$0x3f] %vm631, %v613
      %647 = vst.msk [vmem:[#allocation2 + $0x80] sm:$0xff] %vm180, %v614
      %648 = vst.msk [vmem:[#allocation2 + $0x88] sm:$0x3f] %vm631, %v615
      %649 = vst.msk [vmem:[#allocation2 + $0x90] sm:$0xff] %vm180, %v616
      %650 = vst.msk [vmem:[#allocation2 + $0x98] sm:$0x3f] %vm631, %v617
      %651 = vst.msk [vmem:[#allocation2 + $0xa0] sm:$0xff] %vm180, %v618
      %652 = vst.msk [vmem:[#allocation2 + $0xa8] sm:$0x3f] %vm631, %v619
      %653 = vst.msk [vmem:[#allocation2 + $0xb0] sm:$0xff] %vm180, %v620
      %654 = vst.msk [vmem:[#allocation2 + $0xb8] sm:$0x3f] %vm631, %v621
      %655 = vst.msk [vmem:[#allocation2 + $0xc0] sm:$0xff] %vm180, %v622
      %656 = vst.msk [vmem:[#allocation2 + $0xc8] sm:$0x3f] %vm631, %v623
      %657 = vst.msk [vmem:[#allocation2 + $0xd0] sm:$0xff] %vm180, %v624
      %658 = vst.msk [vmem:[#allocation2 + $0xd8] sm:$0x3f] %vm631, %v625
      %659 = vst.msk [vmem:[#allocation2 + $0xe0] sm:$0xff] %vm180, %v626
      %660 = vst.msk [vmem:[#allocation2 + $0xe8] sm:$0x3f] %vm631, %v627
      %661 = vst.msk [vmem:[#allocation2 + $0xf0] sm:$0xff] %vm180, %v628
      %662 = vst.msk [vmem:[#allocation2 + $0xf8] sm:$0x3f] %vm631, %v629
      %v663 = vld [vmem:[#allocation2 + $0x2] sm:$0xff]
      %v664 = vld [vmem:[#allocation2 + $0xa] sm:$0x3f]
      %v665 = vld [vmem:[#allocation2 + $0x12] sm:$0xff]
      %v666 = vld [vmem:[#allocation2 + $0x1a] sm:$0x3f]
      %v667 = vld [vmem:[#allocation2 + $0x22] sm:$0xff]
      %v668 = vld [vmem:[#allocation2 + $0x2a] sm:$0x3f]
      %v669 = vld [vmem:[#allocation2 + $0x32] sm:$0xff]
      %v670 = vld [vmem:[#allocation2 + $0x3a] sm:$0x3f]
      %v671 = vld [vmem:[#allocation2 + $0x42] sm:$0xff]
      %v672 = vld [vmem:[#allocation2 + $0x4a] sm:$0x3f]
      %v673 = vld [vmem:[#allocation2 + $0x52] sm:$0xff]
      %v674 = vld [vmem:[#allocation2 + $0x5a] sm:$0x3f]
      %v675 = vld [vmem:[#allocation2 + $0x62] sm:$0xff]
      %v676 = vld [vmem:[#allocation2 + $0x6a] sm:$0x3f]
      %v677 = vld [vmem:[#allocation2 + $0x72] sm:$0xff]
      %v678 = vld [vmem:[#allocation2 + $0x7a] sm:$0x3f]
      %v679 = vld [vmem:[#allocation2 + $0x82] sm:$0xff]
      %v680 = vld [vmem:[#allocation2 + $0x8a] sm:$0x3f]
      %v681 = vld [vmem:[#allocation2 + $0x92] sm:$0xff]
      %v682 = vld [vmem:[#allocation2 + $0x9a] sm:$0x3f]
      %v683 = vld [vmem:[#allocation2 + $0xa2] sm:$0xff]
      %v684 = vld [vmem:[#allocation2 + $0xaa] sm:$0x3f]
      %v685 = vld [vmem:[#allocation2 + $0xb2] sm:$0xff]
      %v686 = vld [vmem:[#allocation2 + $0xba] sm:$0x3f]
      %v687 = vld [vmem:[#allocation2 + $0xc2] sm:$0xff]
      %v688 = vld [vmem:[#allocation2 + $0xca] sm:$0x3f]
      %v689 = vld [vmem:[#allocation2 + $0xd2] sm:$0xff]
      %v690 = vld [vmem:[#allocation2 + $0xda] sm:$0x3f]
      %v691 = vld [vmem:[#allocation2 + $0xe2] sm:$0xff]
      %v692 = vld [vmem:[#allocation2 + $0xea] sm:$0x3f]
      %v693 = vld [vmem:[#allocation2 + $0xf2] sm:$0xff]
      %v694 = vld [vmem:[#allocation2 + $0xfa] sm:$0x3f]
      %v695 = vld [vmem:[%s147] sm:$0xff]
      %v696 = vld [vmem:[%s147 + $0x8] sm:$0x3f]
      %v697 = vld [vmem:[%s147 + $0x10] sm:$0xff]
      %v698 = vld [vmem:[%s147 + $0x18] sm:$0x3f]
      %v699 = vld [vmem:[%s147 + $0x20] sm:$0xff]
      %v700 = vld [vmem:[%s147 + $0x28] sm:$0x3f]
      %v701 = vld [vmem:[%s147 + $0x30] sm:$0xff]
      %v702 = vld [vmem:[%s147 + $0x38] sm:$0x3f]
      %v703 = vld [vmem:[%s147 + $0x40] sm:$0xff]
      %v704 = vld [vmem:[%s147 + $0x48] sm:$0x3f]
      %v705 = vld [vmem:[%s147 + $0x50] sm:$0xff]
      %v706 = vld [vmem:[%s147 + $0x58] sm:$0x3f]
      %v707 = vld [vmem:[%s147 + $0x60] sm:$0xff]
      %v708 = vld [vmem:[%s147 + $0x68] sm:$0x3f]
      %v709 = vld [vmem:[%s147 + $0x70] sm:$0xff]
      %v710 = vld [vmem:[%s147 + $0x78] sm:$0x3f]
      %v711 = vld [vmem:[%s147 + $0x80] sm:$0xff]
      %v712 = vld [vmem:[%s147 + $0x88] sm:$0x3f]
      %v713 = vld [vmem:[%s147 + $0x90] sm:$0xff]
      %v714 = vld [vmem:[%s147 + $0x98] sm:$0x3f]
      %v715 = vld [vmem:[%s147 + $0xa0] sm:$0xff]
      %v716 = vld [vmem:[%s147 + $0xa8] sm:$0x3f]
      %v717 = vld [vmem:[%s147 + $0xb0] sm:$0xff]
      %v718 = vld [vmem:[%s147 + $0xb8] sm:$0x3f]
      %v719 = vld [vmem:[%s147 + $0xc0] sm:$0xff]
      %v720 = vld [vmem:[%s147 + $0xc8] sm:$0x3f]
      %v721 = vld [vmem:[%s147 + $0xd0] sm:$0xff]
      %v722 = vld [vmem:[%s147 + $0xd8] sm:$0x3f]
      %v723 = vld [vmem:[%s147 + $0xe0] sm:$0xff]
      %v724 = vld [vmem:[%s147 + $0xe8] sm:$0x3f]
      %v725 = vld [vmem:[%s147 + $0xf0] sm:$0xff]
      %v726 = vld [vmem:[%s147 + $0xf8] sm:$0x3f]
      %v727 = vmax.f32 %v663, %v695
      %v728 = vmax.f32 %v664, %v696
      %v729 = vmax.f32 %v665, %v697
      %v730 = vmax.f32 %v666, %v698
      %v731 = vmax.f32 %v667, %v699
      %v732 = vmax.f32 %v668, %v700
      %v733 = vmax.f32 %v669, %v701
      %v734 = vmax.f32 %v670, %v702
      %v735 = vmax.f32 %v671, %v703
      %v736 = vmax.f32 %v672, %v704
      %v737 = vmax.f32 %v673, %v705
      %v738 = vmax.f32 %v674, %v706
      %v739 = vmax.f32 %v675, %v707
      %v740 = vmax.f32 %v676, %v708
      %v741 = vmax.f32 %v677, %v709
      %v742 = vmax.f32 %v678, %v710
      %v743 = vmax.f32 %v679, %v711
      %v744 = vmax.f32 %v680, %v712
      %v745 = vmax.f32 %v681, %v713
      %v746 = vmax.f32 %v682, %v714
      %v747 = vmax.f32 %v683, %v715
      %v748 = vmax.f32 %v684, %v716
      %v749 = vmax.f32 %v685, %v717
      %v750 = vmax.f32 %v686, %v718
      %v751 = vmax.f32 %v687, %v719
      %v752 = vmax.f32 %v688, %v720
      %v753 = vmax.f32 %v689, %v721
      %v754 = vmax.f32 %v690, %v722
      %v755 = vmax.f32 %v691, %v723
      %v756 = vmax.f32 %v692, %v724
      %v757 = vmax.f32 %v693, %v725
      %v758 = vmax.f32 %v694, %v726
      %759 = vst.msk [vmem:[#allocation2 + $0x2] sm:$0xff] %vm180, %v727
      %760 = vst.msk [vmem:[#allocation2 + $0xa] sm:$0x3f] %vm631, %v728
      %761 = vst.msk [vmem:[#allocation2 + $0x12] sm:$0xff] %vm180, %v729
      %762 = vst.msk [vmem:[#allocation2 + $0x1a] sm:$0x3f] %vm631, %v730
      %763 = vst.msk [vmem:[#allocation2 + $0x22] sm:$0xff] %vm180, %v731
      %764 = vst.msk [vmem:[#allocation2 + $0x2a] sm:$0x3f] %vm631, %v732
      %765 = vst.msk [vmem:[#allocation2 + $0x32] sm:$0xff] %vm180, %v733
      %766 = vst.msk [vmem:[#allocation2 + $0x3a] sm:$0x3f] %vm631, %v734
      %767 = vst.msk [vmem:[#allocation2 + $0x42] sm:$0xff] %vm180, %v735
      %768 = vst.msk [vmem:[#allocation2 + $0x4a] sm:$0x3f] %vm631, %v736
      %769 = vst.msk [vmem:[#allocation2 + $0x52] sm:$0xff] %vm180, %v737
      %770 = vst.msk [vmem:[#allocation2 + $0x5a] sm:$0x3f] %vm631, %v738
      %771 = vst.msk [vmem:[#allocation2 + $0x62] sm:$0xff] %vm180, %v739
      %772 = vst.msk [vmem:[#allocation2 + $0x6a] sm:$0x3f] %vm631, %v740
      %773 = vst.msk [vmem:[#allocation2 + $0x72] sm:$0xff] %vm180, %v741
      %774 = vst.msk [vmem:[#allocation2 + $0x7a] sm:$0x3f] %vm631, %v742
      %775 = vst.msk [vmem:[#allocation2 + $0x82] sm:$0xff] %vm180, %v743
      %776 = vst.msk [vmem:[#allocation2 + $0x8a] sm:$0x3f] %vm631, %v744
      %777 = vst.msk [vmem:[#allocation2 + $0x92] sm:$0xff] %vm180, %v745
      %778 = vst.msk [vmem:[#allocation2 + $0x9a] sm:$0x3f] %vm631, %v746
      %779 = vst.msk [vmem:[#allocation2 + $0xa2] sm:$0xff] %vm180, %v747
      %780 = vst.msk [vmem:[#allocation2 + $0xaa] sm:$0x3f] %vm631, %v748
      %781 = vst.msk [vmem:[#allocation2 + $0xb2] sm:$0xff] %vm180, %v749
      %782 = vst.msk [vmem:[#allocation2 + $0xba] sm:$0x3f] %vm631, %v750
      %783 = vst.msk [vmem:[#allocation2 + $0xc2] sm:$0xff] %vm180, %v751
      %784 = vst.msk [vmem:[#allocation2 + $0xca] sm:$0x3f] %vm631, %v752
      %785 = vst.msk [vmem:[#allocation2 + $0xd2] sm:$0xff] %vm180, %v753
      %786 = vst.msk [vmem:[#allocation2 + $0xda] sm:$0x3f] %vm631, %v754
      %787 = vst.msk [vmem:[#allocation2 + $0xe2] sm:$0xff] %vm180, %v755
      %788 = vst.msk [vmem:[#allocation2 + $0xea] sm:$0x3f] %vm631, %v756
      %789 = vst.msk [vmem:[#allocation2 + $0xf2] sm:$0xff] %vm180, %v757
      %790 = vst.msk [vmem:[#allocation2 + $0xfa] sm:$0x3f] %vm631, %v758
      %v791 = vld [vmem:[#allocation2] sm:$0xff]
      %v792 = vld [vmem:[#allocation2 + $0x8] sm:$0xff]
      %v793 = vld [vmem:[#allocation2 + $0x10] sm:$0xff]
      %v794 = vld [vmem:[#allocation2 + $0x18] sm:$0xff]
      %v795 = vld [vmem:[#allocation2 + $0x20] sm:$0xff]
      %v796 = vld [vmem:[#allocation2 + $0x28] sm:$0xff]
      %v797 = vld [vmem:[#allocation2 + $0x30] sm:$0xff]
      %v798 = vld [vmem:[#allocation2 + $0x38] sm:$0xff]
      %v799 = vld [vmem:[#allocation2 + $0x40] sm:$0xff]
      %v800 = vld [vmem:[#allocation2 + $0x48] sm:$0xff]
      %v801 = vld [vmem:[#allocation2 + $0x50] sm:$0xff]
      %v802 = vld [vmem:[#allocation2 + $0x58] sm:$0xff]
      %v803 = vld [vmem:[#allocation2 + $0x60] sm:$0xff]
      %v804 = vld [vmem:[#allocation2 + $0x68] sm:$0xff]
      %v805 = vld [vmem:[#allocation2 + $0x70] sm:$0xff]
      %v806 = vld [vmem:[#allocation2 + $0x78] sm:$0xff]
      %v807 = vld [vmem:[#allocation2 + $0x80] sm:$0xff]
      %v808 = vld [vmem:[#allocation2 + $0x88] sm:$0xff]
      %v809 = vld [vmem:[#allocation2 + $0x90] sm:$0xff]
      %v810 = vld [vmem:[#allocation2 + $0x98] sm:$0xff]
      %v811 = vld [vmem:[#allocation2 + $0xa0] sm:$0xff]
      %v812 = vld [vmem:[#allocation2 + $0xa8] sm:$0xff]
      %v813 = vld [vmem:[#allocation2 + $0xb0] sm:$0xff]
      %v814 = vld [vmem:[#allocation2 + $0xb8] sm:$0xff]
      %v815 = vld [vmem:[#allocation2 + $0xc0] sm:$0xff]
      %v816 = vld [vmem:[#allocation2 + $0xc8] sm:$0xff]
      %v817 = vld [vmem:[#allocation2 + $0xd0] sm:$0xff]
      %v818 = vld [vmem:[#allocation2 + $0xd8] sm:$0xff]
      %v819 = vld [vmem:[#allocation2 + $0xe0] sm:$0xff]
      %v820 = vld [vmem:[#allocation2 + $0xe8] sm:$0xff]
      %v821 = vld [vmem:[#allocation2 + $0xf0] sm:$0xff]
      %v822 = vld [vmem:[#allocation2 + $0xf8] sm:$0xff]
      %s823 = scalar_lea.vmem %s147, 256
      %824 = vst.msk [vmem:[%s823] sm:$0xff] %vm180, %v791
      %825 = vst.msk [vmem:[%s823 + $0x8] sm:$0xff] %vm180, %v792
      %826 = vst.msk [vmem:[%s823 + $0x10] sm:$0xff] %vm180, %v793
      %827 = vst.msk [vmem:[%s823 + $0x18] sm:$0xff] %vm180, %v794
      %828 = vst.msk [vmem:[%s823 + $0x20] sm:$0xff] %vm180, %v795
      %829 = vst.msk [vmem:[%s823 + $0x28] sm:$0xff] %vm180, %v796
      %830 = vst.msk [vmem:[%s823 + $0x30] sm:$0xff] %vm180, %v797
      %831 = vst.msk [vmem:[%s823 + $0x38] sm:$0xff] %vm180, %v798
      %832 = vst.msk [vmem:[%s823 + $0x40] sm:$0xff] %vm180, %v799
      %833 = vst.msk [vmem:[%s823 + $0x48] sm:$0xff] %vm180, %v800
      %834 = vst.msk [vmem:[%s823 + $0x50] sm:$0xff] %vm180, %v801
      %835 = vst.msk [vmem:[%s823 + $0x58] sm:$0xff] %vm180, %v802
      %836 = vst.msk [vmem:[%s823 + $0x60] sm:$0xff] %vm180, %v803
      %837 = vst.msk [vmem:[%s823 + $0x68] sm:$0xff] %vm180, %v804
      %838 = vst.msk [vmem:[%s823 + $0x70] sm:$0xff] %vm180, %v805
      %839 = vst.msk [vmem:[%s823 + $0x78] sm:$0xff] %vm180, %v806
      %840 = vst.msk [vmem:[%s823 + $0x80] sm:$0xff] %vm180, %v807
      %841 = vst.msk [vmem:[%s823 + $0x88] sm:$0xff] %vm180, %v808
      %842 = vst.msk [vmem:[%s823 + $0x90] sm:$0xff] %vm180, %v809
      %843 = vst.msk [vmem:[%s823 + $0x98] sm:$0xff] %vm180, %v810
      %844 = vst.msk [vmem:[%s823 + $0xa0] sm:$0xff] %vm180, %v811
      %845 = vst.msk [vmem:[%s823 + $0xa8] sm:$0xff] %vm180, %v812
      %846 = vst.msk [vmem:[%s823 + $0xb0] sm:$0xff] %vm180, %v813
      %847 = vst.msk [vmem:[%s823 + $0xb8] sm:$0xff] %vm180, %v814
      %848 = vst.msk [vmem:[%s823 + $0xc0] sm:$0xff] %vm180, %v815
      %849 = vst.msk [vmem:[%s823 + $0xc8] sm:$0xff] %vm180, %v816
      %850 = vst.msk [vmem:[%s823 + $0xd0] sm:$0xff] %vm180, %v817
      %851 = vst.msk [vmem:[%s823 + $0xd8] sm:$0xff] %vm180, %v818
      %852 = vst.msk [vmem:[%s823 + $0xe0] sm:$0xff] %vm180, %v819
      %853 = vst.msk [vmem:[%s823 + $0xe8] sm:$0xff] %vm180, %v820
      %854 = vst.msk [vmem:[%s823 + $0xf0] sm:$0xff] %vm180, %v821
      %855 = vst.msk [vmem:[%s823 + $0xf8] sm:$0xff] %vm180, %v822
      %v856 = vld [vmem:[%s823] sm:$0xff]
      %v857 = vld [vmem:[%s823 + $0x8] sm:$0xff]
      %v858 = vld [vmem:[%s823 + $0x10] sm:$0xff]
      %v859 = vld [vmem:[%s823 + $0x18] sm:$0xff]
      %v860 = vld [vmem:[%s823 + $0x20] sm:$0xff]
      %v861 = vld [vmem:[%s823 + $0x28] sm:$0xff]
      %v862 = vld [vmem:[%s823 + $0x30] sm:$0xff]
      %v863 = vld [vmem:[%s823 + $0x38] sm:$0xff]
      %v864 = vld [vmem:[%s823 + $0x40] sm:$0xff]
      %v865 = vld [vmem:[%s823 + $0x48] sm:$0xff]
      %v866 = vld [vmem:[%s823 + $0x50] sm:$0xff]
      %v867 = vld [vmem:[%s823 + $0x58] sm:$0xff]
      %v868 = vld [vmem:[%s823 + $0x60] sm:$0xff]
      %v869 = vld [vmem:[%s823 + $0x68] sm:$0xff]
      %v870 = vld [vmem:[%s823 + $0x70] sm:$0xff]
      %v871 = vld [vmem:[%s823 + $0x78] sm:$0xff]
      %v872 = vld [vmem:[%s823 + $0x80] sm:$0xff]
      %v873 = vld [vmem:[%s823 + $0x88] sm:$0xff]
      %v874 = vld [vmem:[%s823 + $0x90] sm:$0xff]
      %v875 = vld [vmem:[%s823 + $0x98] sm:$0xff]
      %v876 = vld [vmem:[%s823 + $0xa0] sm:$0xff]
      %v877 = vld [vmem:[%s823 + $0xa8] sm:$0xff]
      %v878 = vld [vmem:[%s823 + $0xb0] sm:$0xff]
      %v879 = vld [vmem:[%s823 + $0xb8] sm:$0xff]
      %v880 = vld [vmem:[%s823 + $0xc0] sm:$0xff]
      %v881 = vld [vmem:[%s823 + $0xc8] sm:$0xff]
      %v882 = vld [vmem:[%s823 + $0xd0] sm:$0xff]
      %v883 = vld [vmem:[%s823 + $0xd8] sm:$0xff]
      %v884 = vld [vmem:[%s823 + $0xe0] sm:$0xff]
      %v885 = vld [vmem:[%s823 + $0xe8] sm:$0xff]
      %s886 = scalar_lea.vmem [#allocation2], 16
      %v887 = vld [vmem:[%s886] sm:$0xff]
      %v888 = vld [vmem:[%s886 + $0x8] sm:$0xff]
      %v889 = vld [vmem:[%s886 + $0x10] sm:$0xff]
      %v890 = vld [vmem:[%s886 + $0x18] sm:$0xff]
      %v891 = vld [vmem:[%s886 + $0x20] sm:$0xff]
      %v892 = vld [vmem:[%s886 + $0x28] sm:$0xff]
      %v893 = vld [vmem:[%s886 + $0x30] sm:$0xff]
      %v894 = vld [vmem:[%s886 + $0x38] sm:$0xff]
      %v895 = vld [vmem:[%s886 + $0x40] sm:$0xff]
      %v896 = vld [vmem:[%s886 + $0x48] sm:$0xff]
      %v897 = vld [vmem:[%s886 + $0x50] sm:$0xff]
      %v898 = vld [vmem:[%s886 + $0x58] sm:$0xff]
      %v899 = vld [vmem:[%s886 + $0x60] sm:$0xff]
      %v900 = vld [vmem:[%s886 + $0x68] sm:$0xff]
      %v901 = vld [vmem:[%s886 + $0x70] sm:$0xff]
      %v902 = vld [vmem:[%s886 + $0x78] sm:$0xff]
      %v903 = vld [vmem:[%s886 + $0x80] sm:$0xff]
      %v904 = vld [vmem:[%s886 + $0x88] sm:$0xff]
      %v905 = vld [vmem:[%s886 + $0x90] sm:$0xff]
      %v906 = vld [vmem:[%s886 + $0x98] sm:$0xff]
      %v907 = vld [vmem:[%s886 + $0xa0] sm:$0xff]
      %v908 = vld [vmem:[%s886 + $0xa8] sm:$0xff]
      %v909 = vld [vmem:[%s886 + $0xb0] sm:$0xff]
      %v910 = vld [vmem:[%s886 + $0xb8] sm:$0xff]
      %v911 = vld [vmem:[%s886 + $0xc0] sm:$0xff]
      %v912 = vld [vmem:[%s886 + $0xc8] sm:$0xff]
      %v913 = vld [vmem:[%s886 + $0xd0] sm:$0xff]
      %v914 = vld [vmem:[%s886 + $0xd8] sm:$0xff]
      %v915 = vld [vmem:[%s886 + $0xe0] sm:$0xff]
      %v916 = vld [vmem:[%s886 + $0xe8] sm:$0xff]
      %v917 = vmax.f32 %v856, %v887
      %v918 = vmax.f32 %v857, %v888
      %v919 = vmax.f32 %v858, %v889
      %v920 = vmax.f32 %v859, %v890
      %v921 = vmax.f32 %v860, %v891
      %v922 = vmax.f32 %v861, %v892
      %v923 = vmax.f32 %v862, %v893
      %v924 = vmax.f32 %v863, %v894
      %v925 = vmax.f32 %v864, %v895
      %v926 = vmax.f32 %v865, %v896
      %v927 = vmax.f32 %v866, %v897
      %v928 = vmax.f32 %v867, %v898
      %v929 = vmax.f32 %v868, %v899
      %v930 = vmax.f32 %v869, %v900
      %v931 = vmax.f32 %v870, %v901
      %v932 = vmax.f32 %v871, %v902
      %v933 = vmax.f32 %v872, %v903
      %v934 = vmax.f32 %v873, %v904
      %v935 = vmax.f32 %v874, %v905
      %v936 = vmax.f32 %v875, %v906
      %v937 = vmax.f32 %v876, %v907
      %v938 = vmax.f32 %v877, %v908
      %v939 = vmax.f32 %v878, %v909
      %v940 = vmax.f32 %v879, %v910
      %v941 = vmax.f32 %v880, %v911
      %v942 = vmax.f32 %v881, %v912
      %v943 = vmax.f32 %v882, %v913
      %v944 = vmax.f32 %v883, %v914
      %v945 = vmax.f32 %v884, %v915
      %v946 = vmax.f32 %v885, %v916
      %947 = vst.msk [vmem:[%s823] sm:$0xff] %vm180, %v917
      %948 = vst.msk [vmem:[%s823 + $0x8] sm:$0xff] %vm180, %v918
      %949 = vst.msk [vmem:[%s823 + $0x10] sm:$0xff] %vm180, %v919
      %950 = vst.msk [vmem:[%s823 + $0x18] sm:$0xff] %vm180, %v920
      %951 = vst.msk [vmem:[%s823 + $0x20] sm:$0xff] %vm180, %v921
      %952 = vst.msk [vmem:[%s823 + $0x28] sm:$0xff] %vm180, %v922
      %953 = vst.msk [vmem:[%s823 + $0x30] sm:$0xff] %vm180, %v923
      %954 = vst.msk [vmem:[%s823 + $0x38] sm:$0xff] %vm180, %v924
      %955 = vst.msk [vmem:[%s823 + $0x40] sm:$0xff] %vm180, %v925
      %956 = vst.msk [vmem:[%s823 + $0x48] sm:$0xff] %vm180, %v926
      %957 = vst.msk [vmem:[%s823 + $0x50] sm:$0xff] %vm180, %v927
      %958 = vst.msk [vmem:[%s823 + $0x58] sm:$0xff] %vm180, %v928
      %959 = vst.msk [vmem:[%s823 + $0x60] sm:$0xff] %vm180, %v929
      %960 = vst.msk [vmem:[%s823 + $0x68] sm:$0xff] %vm180, %v930
      %961 = vst.msk [vmem:[%s823 + $0x70] sm:$0xff] %vm180, %v931
      %962 = vst.msk [vmem:[%s823 + $0x78] sm:$0xff] %vm180, %v932
      %963 = vst.msk [vmem:[%s823 + $0x80] sm:$0xff] %vm180, %v933
      %964 = vst.msk [vmem:[%s823 + $0x88] sm:$0xff] %vm180, %v934
      %965 = vst.msk [vmem:[%s823 + $0x90] sm:$0xff] %vm180, %v935
      %966 = vst.msk [vmem:[%s823 + $0x98] sm:$0xff] %vm180, %v936
      %967 = vst.msk [vmem:[%s823 + $0xa0] sm:$0xff] %vm180, %v937
      %968 = vst.msk [vmem:[%s823 + $0xa8] sm:$0xff] %vm180, %v938
      %969 = vst.msk [vmem:[%s823 + $0xb0] sm:$0xff] %vm180, %v939
      %970 = vst.msk [vmem:[%s823 + $0xb8] sm:$0xff] %vm180, %v940
      %971 = vst.msk [vmem:[%s823 + $0xc0] sm:$0xff] %vm180, %v941
      %972 = vst.msk [vmem:[%s823 + $0xc8] sm:$0xff] %vm180, %v942
      %973 = vst.msk [vmem:[%s823 + $0xd0] sm:$0xff] %vm180, %v943
      %974 = vst.msk [vmem:[%s823 + $0xd8] sm:$0xff] %vm180, %v944
      %975 = vst.msk [vmem:[%s823 + $0xe0] sm:$0xff] %vm180, %v945
      %976 = vst.msk [vmem:[%s823 + $0xe8] sm:$0xff] %vm180, %v946
      %s977 = scalar_lea.vmem %s147, 272
      %v978 = vld [vmem:[%s977] sm:$0xff]
      %v979 = vld [vmem:[%s977 + $0x8] sm:$0xff]
      %v980 = vld [vmem:[%s977 + $0x10] sm:$0xff]
      %v981 = vld [vmem:[%s977 + $0x18] sm:$0xff]
      %v982 = vld [vmem:[%s977 + $0x20] sm:$0xff]
      %v983 = vld [vmem:[%s977 + $0x28] sm:$0xff]
      %v984 = vld [vmem:[%s977 + $0x30] sm:$0xff]
      %v985 = vld [vmem:[%s977 + $0x38] sm:$0xff]
      %v986 = vld [vmem:[%s977 + $0x40] sm:$0xff]
      %v987 = vld [vmem:[%s977 + $0x48] sm:$0xff]
      %v988 = vld [vmem:[%s977 + $0x50] sm:$0xff]
      %v989 = vld [vmem:[%s977 + $0x58] sm:$0xff]
      %v990 = vld [vmem:[%s977 + $0x60] sm:$0xff]
      %v991 = vld [vmem:[%s977 + $0x68] sm:$0xff]
      %v992 = vld [vmem:[%s977 + $0x70] sm:$0xff]
      %v993 = vld [vmem:[%s977 + $0x78] sm:$0xff]
      %v994 = vld [vmem:[%s977 + $0x80] sm:$0xff]
      %v995 = vld [vmem:[%s977 + $0x88] sm:$0xff]
      %v996 = vld [vmem:[%s977 + $0x90] sm:$0xff]
      %v997 = vld [vmem:[%s977 + $0x98] sm:$0xff]
      %v998 = vld [vmem:[%s977 + $0xa0] sm:$0xff]
      %v999 = vld [vmem:[%s977 + $0xa8] sm:$0xff]
      %v1000 = vld [vmem:[%s977 + $0xb0] sm:$0xff]
      %v1001 = vld [vmem:[%s977 + $0xb8] sm:$0xff]
      %v1002 = vld [vmem:[%s977 + $0xc0] sm:$0xff]
      %v1003 = vld [vmem:[%s977 + $0xc8] sm:$0xff]
      %v1004 = vld [vmem:[%s977 + $0xd0] sm:$0xff]
      %v1005 = vld [vmem:[%s977 + $0xd8] sm:$0xff]
      %v1006 = vld [vmem:[%s977 + $0xe0] sm:$0xff]
      %v1007 = vld [vmem:[%s977 + $0xe8] sm:$0xff]
      %v1008 = vld [vmem:[#allocation2] sm:$0xff]
      %v1009 = vld [vmem:[#allocation2 + $0x8] sm:$0xff]
      %v1010 = vld [vmem:[#allocation2 + $0x10] sm:$0xff]
      %v1011 = vld [vmem:[#allocation2 + $0x18] sm:$0xff]
      %v1012 = vld [vmem:[#allocation2 + $0x20] sm:$0xff]
      %v1013 = vld [vmem:[#allocation2 + $0x28] sm:$0xff]
      %v1014 = vld [vmem:[#allocation2 + $0x30] sm:$0xff]
      %v1015 = vld [vmem:[#allocation2 + $0x38] sm:$0xff]
      %v1016 = vld [vmem:[#allocation2 + $0x40] sm:$0xff]
      %v1017 = vld [vmem:[#allocation2 + $0x48] sm:$0xff]
      %v1018 = vld [vmem:[#allocation2 + $0x50] sm:$0xff]
      %v1019 = vld [vmem:[#allocation2 + $0x58] sm:$0xff]
      %v1020 = vld [vmem:[#allocation2 + $0x60] sm:$0xff]
      %v1021 = vld [vmem:[#allocation2 + $0x68] sm:$0xff]
      %v1022 = vld [vmem:[#allocation2 + $0x70] sm:$0xff]
      %v1023 = vld [vmem:[#allocation2 + $0x78] sm:$0xff]
      %v1024 = vld [vmem:[#allocation2 + $0x80] sm:$0xff]
      %v1025 = vld [vmem:[#allocation2 + $0x88] sm:$0xff]
      %v1026 = vld [vmem:[#allocation2 + $0x90] sm:$0xff]
      %v1027 = vld [vmem:[#allocation2 + $0x98] sm:$0xff]
      %v1028 = vld [vmem:[#allocation2 + $0xa0] sm:$0xff]
      %v1029 = vld [vmem:[#allocation2 + $0xa8] sm:$0xff]
      %v1030 = vld [vmem:[#allocation2 + $0xb0] sm:$0xff]
      %v1031 = vld [vmem:[#allocation2 + $0xb8] sm:$0xff]
      %v1032 = vld [vmem:[#allocation2 + $0xc0] sm:$0xff]
      %v1033 = vld [vmem:[#allocation2 + $0xc8] sm:$0xff]
      %v1034 = vld [vmem:[#allocation2 + $0xd0] sm:$0xff]
      %v1035 = vld [vmem:[#allocation2 + $0xd8] sm:$0xff]
      %v1036 = vld [vmem:[#allocation2 + $0xe0] sm:$0xff]
      %v1037 = vld [vmem:[#allocation2 + $0xe8] sm:$0xff]
      %v1038 = vmax.f32 %v978, %v1008
      %v1039 = vmax.f32 %v979, %v1009
      %v1040 = vmax.f32 %v980, %v1010
      %v1041 = vmax.f32 %v981, %v1011
      %v1042 = vmax.f32 %v982, %v1012
      %v1043 = vmax.f32 %v983, %v1013
      %v1044 = vmax.f32 %v984, %v1014
      %v1045 = vmax.f32 %v985, %v1015
      %v1046 = vmax.f32 %v986, %v1016
      %v1047 = vmax.f32 %v987, %v1017
      %v1048 = vmax.f32 %v988, %v1018
      %v1049 = vmax.f32 %v989, %v1019
      %v1050 = vmax.f32 %v990, %v1020
      %v1051 = vmax.f32 %v991, %v1021
      %v1052 = vmax.f32 %v992, %v1022
      %v1053 = vmax.f32 %v993, %v1023
      %v1054 = vmax.f32 %v994, %v1024
      %v1055 = vmax.f32 %v995, %v1025
      %v1056 = vmax.f32 %v996, %v1026
      %v1057 = vmax.f32 %v997, %v1027
      %v1058 = vmax.f32 %v998, %v1028
      %v1059 = vmax.f32 %v999, %v1029
      %v1060 = vmax.f32 %v1000, %v1030
      %v1061 = vmax.f32 %v1001, %v1031
      %v1062 = vmax.f32 %v1002, %v1032
      %v1063 = vmax.f32 %v1003, %v1033
      %v1064 = vmax.f32 %v1004, %v1034
      %v1065 = vmax.f32 %v1005, %v1035
      %v1066 = vmax.f32 %v1006, %v1036
      %v1067 = vmax.f32 %v1007, %v1037
      %1068 = vst.msk [vmem:[%s977] sm:$0xff] %vm180, %v1038
      %1069 = vst.msk [vmem:[%s977 + $0x8] sm:$0xff] %vm180, %v1039
      %1070 = vst.msk [vmem:[%s977 + $0x10] sm:$0xff] %vm180, %v1040
      %1071 = vst.msk [vmem:[%s977 + $0x18] sm:$0xff] %vm180, %v1041
      %1072 = vst.msk [vmem:[%s977 + $0x20] sm:$0xff] %vm180, %v1042
      %1073 = vst.msk [vmem:[%s977 + $0x28] sm:$0xff] %vm180, %v1043
      %1074 = vst.msk [vmem:[%s977 + $0x30] sm:$0xff] %vm180, %v1044
      %1075 = vst.msk [vmem:[%s977 + $0x38] sm:$0xff] %vm180, %v1045
      %1076 = vst.msk [vmem:[%s977 + $0x40] sm:$0xff] %vm180, %v1046
      %1077 = vst.msk [vmem:[%s977 + $0x48] sm:$0xff] %vm180, %v1047
      %1078 = vst.msk [vmem:[%s977 + $0x50] sm:$0xff] %vm180, %v1048
      %1079 = vst.msk [vmem:[%s977 + $0x58] sm:$0xff] %vm180, %v1049
      %1080 = vst.msk [vmem:[%s977 + $0x60] sm:$0xff] %vm180, %v1050
      %1081 = vst.msk [vmem:[%s977 + $0x68] sm:$0xff] %vm180, %v1051
      %1082 = vst.msk [vmem:[%s977 + $0x70] sm:$0xff] %vm180, %v1052
      %1083 = vst.msk [vmem:[%s977 + $0x78] sm:$0xff] %vm180, %v1053
      %1084 = vst.msk [vmem:[%s977 + $0x80] sm:$0xff] %vm180, %v1054
      %1085 = vst.msk [vmem:[%s977 + $0x88] sm:$0xff] %vm180, %v1055
      %1086 = vst.msk [vmem:[%s977 + $0x90] sm:$0xff] %vm180, %v1056
      %1087 = vst.msk [vmem:[%s977 + $0x98] sm:$0xff] %vm180, %v1057
      %1088 = vst.msk [vmem:[%s977 + $0xa0] sm:$0xff] %vm180, %v1058
      %1089 = vst.msk [vmem:[%s977 + $0xa8] sm:$0xff] %vm180, %v1059
      %1090 = vst.msk [vmem:[%s977 + $0xb0] sm:$0xff] %vm180, %v1060
      %1091 = vst.msk [vmem:[%s977 + $0xb8] sm:$0xff] %vm180, %v1061
      %1092 = vst.msk [vmem:[%s977 + $0xc0] sm:$0xff] %vm180, %v1062
      %1093 = vst.msk [vmem:[%s977 + $0xc8] sm:$0xff] %vm180, %v1063
      %1094 = vst.msk [vmem:[%s977 + $0xd0] sm:$0xff] %vm180, %v1064
      %1095 = vst.msk [vmem:[%s977 + $0xd8] sm:$0xff] %vm180, %v1065
      %1096 = vst.msk [vmem:[%s977 + $0xe0] sm:$0xff] %vm180, %v1066
      %1097 = vst.msk [vmem:[%s977 + $0xe8] sm:$0xff] %vm180, %v1067
      %v1098 = vld [vmem:[%s823] sm:$0xff]
      %v1099 = vld [vmem:[%s823 + $0x8] sm:$0xff]
      %v1100 = vld [vmem:[%s823 + $0x10] sm:$0xff]
      %v1101 = vld [vmem:[%s823 + $0x18] sm:$0xff]
      %v1102 = vld [vmem:[%s823 + $0x20] sm:$0xff]
      %v1103 = vld [vmem:[%s823 + $0x28] sm:$0xff]
      %v1104 = vld [vmem:[%s823 + $0x30] sm:$0xff]
      %v1105 = vld [vmem:[%s823 + $0x38] sm:$0xff]
      %v1106 = vld [vmem:[%s823 + $0x40] sm:$0xff]
      %v1107 = vld [vmem:[%s823 + $0x48] sm:$0xff]
      %v1108 = vld [vmem:[%s823 + $0x50] sm:$0xff]
      %v1109 = vld [vmem:[%s823 + $0x58] sm:$0xff]
      %v1110 = vld [vmem:[%s823 + $0x60] sm:$0xff]
      %v1111 = vld [vmem:[%s823 + $0x68] sm:$0xff]
      %v1112 = vld [vmem:[%s823 + $0x70] sm:$0xff]
      %v1113 = vld [vmem:[%s823 + $0x78] sm:$0xff]
      %v1114 = vld [vmem:[%s823 + $0x80] sm:$0xff]
      %v1115 = vld [vmem:[%s823 + $0x88] sm:$0xff]
      %v1116 = vld [vmem:[%s823 + $0x90] sm:$0xff]
      %v1117 = vld [vmem:[%s823 + $0x98] sm:$0xff]
      %v1118 = vld [vmem:[%s823 + $0xa0] sm:$0xff]
      %v1119 = vld [vmem:[%s823 + $0xa8] sm:$0xff]
      %v1120 = vld [vmem:[%s823 + $0xb0] sm:$0xff]
      %v1121 = vld [vmem:[%s823 + $0xb8] sm:$0xff]
      %v1122 = vld [vmem:[%s823 + $0xc0] sm:$0xff]
      %v1123 = vld [vmem:[%s823 + $0xc8] sm:$0xff]
      %v1124 = vld [vmem:[%s823 + $0xd0] sm:$0xff]
      %v1125 = vld [vmem:[%s823 + $0xd8] sm:$0xff]
      %s1126 = scalar_lea.vmem [#allocation2], 32
      %v1127 = vld [vmem:[%s1126] sm:$0xff]
      %v1128 = vld [vmem:[%s1126 + $0x8] sm:$0xff]
      %v1129 = vld [vmem:[%s1126 + $0x10] sm:$0xff]
      %v1130 = vld [vmem:[%s1126 + $0x18] sm:$0xff]
      %v1131 = vld [vmem:[%s1126 + $0x20] sm:$0xff]
      %v1132 = vld [vmem:[%s1126 + $0x28] sm:$0xff]
      %v1133 = vld [vmem:[%s1126 + $0x30] sm:$0xff]
      %v1134 = vld [vmem:[%s1126 + $0x38] sm:$0xff]
      %v1135 = vld [vmem:[%s1126 + $0x40] sm:$0xff]
      %v1136 = vld [vmem:[%s1126 + $0x48] sm:$0xff]
      %v1137 = vld [vmem:[%s1126 + $0x50] sm:$0xff]
      %v1138 = vld [vmem:[%s1126 + $0x58] sm:$0xff]
      %v1139 = vld [vmem:[%s1126 + $0x60] sm:$0xff]
      %v1140 = vld [vmem:[%s1126 + $0x68] sm:$0xff]
      %v1141 = vld [vmem:[%s1126 + $0x70] sm:$0xff]
      %v1142 = vld [vmem:[%s1126 + $0x78] sm:$0xff]
      %v1143 = vld [vmem:[%s1126 + $0x80] sm:$0xff]
      %v1144 = vld [vmem:[%s1126 + $0x88] sm:$0xff]
      %v1145 = vld [vmem:[%s1126 + $0x90] sm:$0xff]
      %v1146 = vld [vmem:[%s1126 + $0x98] sm:$0xff]
      %v1147 = vld [vmem:[%s1126 + $0xa0] sm:$0xff]
      %v1148 = vld [vmem:[%s1126 + $0xa8] sm:$0xff]
      %v1149 = vld [vmem:[%s1126 + $0xb0] sm:$0xff]
      %v1150 = vld [vmem:[%s1126 + $0xb8] sm:$0xff]
      %v1151 = vld [vmem:[%s1126 + $0xc0] sm:$0xff]
      %v1152 = vld [vmem:[%s1126 + $0xc8] sm:$0xff]
      %v1153 = vld [vmem:[%s1126 + $0xd0] sm:$0xff]
      %v1154 = vld [vmem:[%s1126 + $0xd8] sm:$0xff]
      %v1155 = vmax.f32 %v1098, %v1127
      %v1156 = vmax.f32 %v1099, %v1128
      %v1157 = vmax.f32 %v1100, %v1129
      %v1158 = vmax.f32 %v1101, %v1130
      %v1159 = vmax.f32 %v1102, %v1131
      %v1160 = vmax.f32 %v1103, %v1132
      %v1161 = vmax.f32 %v1104, %v1133
      %v1162 = vmax.f32 %v1105, %v1134
      %v1163 = vmax.f32 %v1106, %v1135
      %v1164 = vmax.f32 %v1107, %v1136
      %v1165 = vmax.f32 %v1108, %v1137
      %v1166 = vmax.f32 %v1109, %v1138
      %v1167 = vmax.f32 %v1110, %v1139
      %v1168 = vmax.f32 %v1111, %v1140
      %v1169 = vmax.f32 %v1112, %v1141
      %v1170 = vmax.f32 %v1113, %v1142
      %v1171 = vmax.f32 %v1114, %v1143
      %v1172 = vmax.f32 %v1115, %v1144
      %v1173 = vmax.f32 %v1116, %v1145
      %v1174 = vmax.f32 %v1117, %v1146
      %v1175 = vmax.f32 %v1118, %v1147
      %v1176 = vmax.f32 %v1119, %v1148
      %v1177 = vmax.f32 %v1120, %v1149
      %v1178 = vmax.f32 %v1121, %v1150
      %v1179 = vmax.f32 %v1122, %v1151
      %v1180 = vmax.f32 %v1123, %v1152
      %v1181 = vmax.f32 %v1124, %v1153
      %v1182 = vmax.f32 %v1125, %v1154
      %1183 = vst.msk [vmem:[%s823] sm:$0xff] %vm180, %v1155
      %1184 = vst.msk [vmem:[%s823 + $0x8] sm:$0xff] %vm180, %v1156
      %1185 = vst.msk [vmem:[%s823 + $0x10] sm:$0xff] %vm180, %v1157
      %1186 = vst.msk [vmem:[%s823 + $0x18] sm:$0xff] %vm180, %v1158
      %1187 = vst.msk [vmem:[%s823 + $0x20] sm:$0xff] %vm180, %v1159
      %1188 = vst.msk [vmem:[%s823 + $0x28] sm:$0xff] %vm180, %v1160
      %1189 = vst.msk [vmem:[%s823 + $0x30] sm:$0xff] %vm180, %v1161
      %1190 = vst.msk [vmem:[%s823 + $0x38] sm:$0xff] %vm180, %v1162
      %1191 = vst.msk [vmem:[%s823 + $0x40] sm:$0xff] %vm180, %v1163
      %1192 = vst.msk [vmem:[%s823 + $0x48] sm:$0xff] %vm180, %v1164
      %1193 = vst.msk [vmem:[%s823 + $0x50] sm:$0xff] %vm180, %v1165
      %1194 = vst.msk [vmem:[%s823 + $0x58] sm:$0xff] %vm180, %v1166
      %1195 = vst.msk [vmem:[%s823 + $0x60] sm:$0xff] %vm180, %v1167
      %1196 = vst.msk [vmem:[%s823 + $0x68] sm:$0xff] %vm180, %v1168
      %1197 = vst.msk [vmem:[%s823 + $0x70] sm:$0xff] %vm180, %v1169
      %1198 = vst.msk [vmem:[%s823 + $0x78] sm:$0xff] %vm180, %v1170
      %1199 = vst.msk [vmem:[%s823 + $0x80] sm:$0xff] %vm180, %v1171
      %1200 = vst.msk [vmem:[%s823 + $0x88] sm:$0xff] %vm180, %v1172
      %1201 = vst.msk [vmem:[%s823 + $0x90] sm:$0xff] %vm180, %v1173
      %1202 = vst.msk [vmem:[%s823 + $0x98] sm:$0xff] %vm180, %v1174
      %1203 = vst.msk [vmem:[%s823 + $0xa0] sm:$0xff] %vm180, %v1175
      %1204 = vst.msk [vmem:[%s823 + $0xa8] sm:$0xff] %vm180, %v1176
      %1205 = vst.msk [vmem:[%s823 + $0xb0] sm:$0xff] %vm180, %v1177
      %1206 = vst.msk [vmem:[%s823 + $0xb8] sm:$0xff] %vm180, %v1178
      %1207 = vst.msk [vmem:[%s823 + $0xc0] sm:$0xff] %vm180, %v1179
      %1208 = vst.msk [vmem:[%s823 + $0xc8] sm:$0xff] %vm180, %v1180
      %1209 = vst.msk [vmem:[%s823 + $0xd0] sm:$0xff] %vm180, %v1181
      %1210 = vst.msk [vmem:[%s823 + $0xd8] sm:$0xff] %vm180, %v1182
      %s1211 = scalar_lea.vmem %s147, 288
      %v1212 = vld [vmem:[%s1211] sm:$0xff]
      %v1213 = vld [vmem:[%s1211 + $0x8] sm:$0xff]
      %v1214 = vld [vmem:[%s1211 + $0x10] sm:$0xff]
      %v1215 = vld [vmem:[%s1211 + $0x18] sm:$0xff]
      %v1216 = vld [vmem:[%s1211 + $0x20] sm:$0xff]
      %v1217 = vld [vmem:[%s1211 + $0x28] sm:$0xff]
      %v1218 = vld [vmem:[%s1211 + $0x30] sm:$0xff]
      %v1219 = vld [vmem:[%s1211 + $0x38] sm:$0xff]
      %v1220 = vld [vmem:[%s1211 + $0x40] sm:$0xff]
      %v1221 = vld [vmem:[%s1211 + $0x48] sm:$0xff]
      %v1222 = vld [vmem:[%s1211 + $0x50] sm:$0xff]
      %v1223 = vld [vmem:[%s1211 + $0x58] sm:$0xff]
      %v1224 = vld [vmem:[%s1211 + $0x60] sm:$0xff]
      %v1225 = vld [vmem:[%s1211 + $0x68] sm:$0xff]
      %v1226 = vld [vmem:[%s1211 + $0x70] sm:$0xff]
      %v1227 = vld [vmem:[%s1211 + $0x78] sm:$0xff]
      %v1228 = vld [vmem:[%s1211 + $0x80] sm:$0xff]
      %v1229 = vld [vmem:[%s1211 + $0x88] sm:$0xff]
      %v1230 = vld [vmem:[%s1211 + $0x90] sm:$0xff]
      %v1231 = vld [vmem:[%s1211 + $0x98] sm:$0xff]
      %v1232 = vld [vmem:[%s1211 + $0xa0] sm:$0xff]
      %v1233 = vld [vmem:[%s1211 + $0xa8] sm:$0xff]
      %v1234 = vld [vmem:[%s1211 + $0xb0] sm:$0xff]
      %v1235 = vld [vmem:[%s1211 + $0xb8] sm:$0xff]
      %v1236 = vld [vmem:[%s1211 + $0xc0] sm:$0xff]
      %v1237 = vld [vmem:[%s1211 + $0xc8] sm:$0xff]
      %v1238 = vld [vmem:[%s1211 + $0xd0] sm:$0xff]
      %v1239 = vld [vmem:[%s1211 + $0xd8] sm:$0xff]
      %v1240 = vld [vmem:[#allocation2] sm:$0xff]
      %v1241 = vld [vmem:[#allocation2 + $0x8] sm:$0xff]
      %v1242 = vld [vmem:[#allocation2 + $0x10] sm:$0xff]
      %v1243 = vld [vmem:[#allocation2 + $0x18] sm:$0xff]
      %v1244 = vld [vmem:[#allocation2 + $0x20] sm:$0xff]
      %v1245 = vld [vmem:[#allocation2 + $0x28] sm:$0xff]
      %v1246 = vld [vmem:[#allocation2 + $0x30] sm:$0xff]
      %v1247 = vld [vmem:[#allocation2 + $0x38] sm:$0xff]
      %v1248 = vld [vmem:[#allocation2 + $0x40] sm:$0xff]
      %v1249 = vld [vmem:[#allocation2 + $0x48] sm:$0xff]
      %v1250 = vld [vmem:[#allocation2 + $0x50] sm:$0xff]
      %v1251 = vld [vmem:[#allocation2 + $0x58] sm:$0xff]
      %v1252 = vld [vmem:[#allocation2 + $0x60] sm:$0xff]
      %v1253 = vld [vmem:[#allocation2 + $0x68] sm:$0xff]
      %v1254 = vld [vmem:[#allocation2 + $0x70] sm:$0xff]
      %v1255 = vld [vmem:[#allocation2 + $0x78] sm:$0xff]
      %v1256 = vld [vmem:[#allocation2 + $0x80] sm:$0xff]
      %v1257 = vld [vmem:[#allocation2 + $0x88] sm:$0xff]
      %v1258 = vld [vmem:[#allocation2 + $0x90] sm:$0xff]
      %v1259 = vld [vmem:[#allocation2 + $0x98] sm:$0xff]
      %v1260 = vld [vmem:[#allocation2 + $0xa0] sm:$0xff]
      %v1261 = vld [vmem:[#allocation2 + $0xa8] sm:$0xff]
      %v1262 = vld [vmem:[#allocation2 + $0xb0] sm:$0xff]
      %v1263 = vld [vmem:[#allocation2 + $0xb8] sm:$0xff]
      %v1264 = vld [vmem:[#allocation2 + $0xc0] sm:$0xff]
      %v1265 = vld [vmem:[#allocation2 + $0xc8] sm:$0xff]
      %v1266 = vld [vmem:[#allocation2 + $0xd0] sm:$0xff]
      %v1267 = vld [vmem:[#allocation2 + $0xd8] sm:$0xff]
      %v1268 = vmax.f32 %v1212, %v1240
      %v1269 = vmax.f32 %v1213, %v1241
      %v1270 = vmax.f32 %v1214, %v1242
      %v1271 = vmax.f32 %v1215, %v1243
      %v1272 = vmax.f32 %v1216, %v1244
      %v1273 = vmax.f32 %v1217, %v1245
      %v1274 = vmax.f32 %v1218, %v1246
      %v1275 = vmax.f32 %v1219, %v1247
      %v1276 = vmax.f32 %v1220, %v1248
      %v1277 = vmax.f32 %v1221, %v1249
      %v1278 = vmax.f32 %v1222, %v1250
      %v1279 = vmax.f32 %v1223, %v1251
      %v1280 = vmax.f32 %v1224, %v1252
      %v1281 = vmax.f32 %v1225, %v1253
      %v1282 = vmax.f32 %v1226, %v1254
      %v1283 = vmax.f32 %v1227, %v1255
      %v1284 = vmax.f32 %v1228, %v1256
      %v1285 = vmax.f32 %v1229, %v1257
      %v1286 = vmax.f32 %v1230, %v1258
      %v1287 = vmax.f32 %v1231, %v1259
      %v1288 = vmax.f32 %v1232, %v1260
      %v1289 = vmax.f32 %v1233, %v1261
      %v1290 = vmax.f32 %v1234, %v1262
      %v1291 = vmax.f32 %v1235, %v1263
      %v1292 = vmax.f32 %v1236, %v1264
      %v1293 = vmax.f32 %v1237, %v1265
      %v1294 = vmax.f32 %v1238, %v1266
      %v1295 = vmax.f32 %v1239, %v1267
      %1296 = vst.msk [vmem:[%s1211] sm:$0xff] %vm180, %v1268
      %1297 = vst.msk [vmem:[%s1211 + $0x8] sm:$0xff] %vm180, %v1269
      %1298 = vst.msk [vmem:[%s1211 + $0x10] sm:$0xff] %vm180, %v1270
      %1299 = vst.msk [vmem:[%s1211 + $0x18] sm:$0xff] %vm180, %v1271
      %1300 = vst.msk [vmem:[%s1211 + $0x20] sm:$0xff] %vm180, %v1272
      %1301 = vst.msk [vmem:[%s1211 + $0x28] sm:$0xff] %vm180, %v1273
      %1302 = vst.msk [vmem:[%s1211 + $0x30] sm:$0xff] %vm180, %v1274
      %1303 = vst.msk [vmem:[%s1211 + $0x38] sm:$0xff] %vm180, %v1275
      %1304 = vst.msk [vmem:[%s1211 + $0x40] sm:$0xff] %vm180, %v1276
      %1305 = vst.msk [vmem:[%s1211 + $0x48] sm:$0xff] %vm180, %v1277
      %1306 = vst.msk [vmem:[%s1211 + $0x50] sm:$0xff] %vm180, %v1278
      %1307 = vst.msk [vmem:[%s1211 + $0x58] sm:$0xff] %vm180, %v1279
      %1308 = vst.msk [vmem:[%s1211 + $0x60] sm:$0xff] %vm180, %v1280
      %1309 = vst.msk [vmem:[%s1211 + $0x68] sm:$0xff] %vm180, %v1281
      %1310 = vst.msk [vmem:[%s1211 + $0x70] sm:$0xff] %vm180, %v1282
      %1311 = vst.msk [vmem:[%s1211 + $0x78] sm:$0xff] %vm180, %v1283
      %1312 = vst.msk [vmem:[%s1211 + $0x80] sm:$0xff] %vm180, %v1284
      %1313 = vst.msk [vmem:[%s1211 + $0x88] sm:$0xff] %vm180, %v1285
      %1314 = vst.msk [vmem:[%s1211 + $0x90] sm:$0xff] %vm180, %v1286
      %1315 = vst.msk [vmem:[%s1211 + $0x98] sm:$0xff] %vm180, %v1287
      %1316 = vst.msk [vmem:[%s1211 + $0xa0] sm:$0xff] %vm180, %v1288
      %1317 = vst.msk [vmem:[%s1211 + $0xa8] sm:$0xff] %vm180, %v1289
      %1318 = vst.msk [vmem:[%s1211 + $0xb0] sm:$0xff] %vm180, %v1290
      %1319 = vst.msk [vmem:[%s1211 + $0xb8] sm:$0xff] %vm180, %v1291
      %1320 = vst.msk [vmem:[%s1211 + $0xc0] sm:$0xff] %vm180, %v1292
      %1321 = vst.msk [vmem:[%s1211 + $0xc8] sm:$0xff] %vm180, %v1293
      %1322 = vst.msk [vmem:[%s1211 + $0xd0] sm:$0xff] %vm180, %v1294
      %1323 = vst.msk [vmem:[%s1211 + $0xd8] sm:$0xff] %vm180, %v1295
      %v1324 = vld [vmem:[%s823] sm:$0xff]
      %v1325 = vld [vmem:[%s823 + $0x8] sm:$0xff]
      %v1326 = vld [vmem:[%s823 + $0x10] sm:$0xff]
      %v1327 = vld [vmem:[%s823 + $0x18] sm:$0xff]
      %v1328 = vld [vmem:[%s823 + $0x20] sm:$0xff]
      %v1329 = vld [vmem:[%s823 + $0x28] sm:$0xff]
      %v1330 = vld [vmem:[%s823 + $0x30] sm:$0xff]
      %v1331 = vld [vmem:[%s823 + $0x38] sm:$0xff]
      %v1332 = vld [vmem:[%s823 + $0x40] sm:$0xff]
      %v1333 = vld [vmem:[%s823 + $0x48] sm:$0xff]
      %v1334 = vld [vmem:[%s823 + $0x50] sm:$0xff]
      %v1335 = vld [vmem:[%s823 + $0x58] sm:$0xff]
      %v1336 = vld [vmem:[%s823 + $0x60] sm:$0xff]
      %v1337 = vld [vmem:[%s823 + $0x68] sm:$0xff]
      %v1338 = vld [vmem:[%s823 + $0x70] sm:$0xff]
      %v1339 = vld [vmem:[%s823 + $0x78] sm:$0xff]
      %v1340 = vld [vmem:[%s823 + $0x80] sm:$0xff]
      %v1341 = vld [vmem:[%s823 + $0x88] sm:$0xff]
      %v1342 = vld [vmem:[%s823 + $0x90] sm:$0xff]
      %v1343 = vld [vmem:[%s823 + $0x98] sm:$0xff]
      %v1344 = vld [vmem:[%s823 + $0xa0] sm:$0xff]
      %v1345 = vld [vmem:[%s823 + $0xa8] sm:$0xff]
      %v1346 = vld [vmem:[%s823 + $0xb0] sm:$0xff]
      %v1347 = vld [vmem:[%s823 + $0xb8] sm:$0xff]
      %v1348 = vld [vmem:[%s823 + $0xc0] sm:$0xff]
      %v1349 = vld [vmem:[%s823 + $0xc8] sm:$0xff]
      %v1350 = vld [vmem:[%s823 + $0xd0] sm:$0xff]
      %v1351 = vld [vmem:[%s823 + $0xd8] sm:$0xff]
      %v1352 = vld [vmem:[%s823 + $0xe0] sm:$0xff]
      %v1353 = vld [vmem:[%s823 + $0xe8] sm:$0xff]
      %v1354 = vld [vmem:[%s823 + $0xf0] sm:$0xff]
      %v1355 = vld [vmem:[%s823 + $0xf8] sm:$0xff]
      %1356 = vst.msk [vmem:[#allocation2] sm:$0xff] %vm180, %v1324
      %1357 = vst.msk [vmem:[#allocation2 + $0x8] sm:$0xff] %vm180, %v1325
      %1358 = vst.msk [vmem:[#allocation2 + $0x10] sm:$0xff] %vm180, %v1326
      %1359 = vst.msk [vmem:[#allocation2 + $0x18] sm:$0xff] %vm180, %v1327
      %1360 = vst.msk [vmem:[#allocation2 + $0x20] sm:$0xff] %vm180, %v1328
      %1361 = vst.msk [vmem:[#allocation2 + $0x28] sm:$0xff] %vm180, %v1329
      %1362 = vst.msk [vmem:[#allocation2 + $0x30] sm:$0xff] %vm180, %v1330
      %1363 = vst.msk [vmem:[#allocation2 + $0x38] sm:$0xff] %vm180, %v1331
      %1364 = vst.msk [vmem:[#allocation2 + $0x40] sm:$0xff] %vm180, %v1332
      %1365 = vst.msk [vmem:[#allocation2 + $0x48] sm:$0xff] %vm180, %v1333
      %1366 = vst.msk [vmem:[#allocation2 + $0x50] sm:$0xff] %vm180, %v1334
      %1367 = vst.msk [vmem:[#allocation2 + $0x58] sm:$0xff] %vm180, %v1335
      %1368 = vst.msk [vmem:[#allocation2 + $0x60] sm:$0xff] %vm180, %v1336
      %1369 = vst.msk [vmem:[#allocation2 + $0x68] sm:$0xff] %vm180, %v1337
      %1370 = vst.msk [vmem:[#allocation2 + $0x70] sm:$0xff] %vm180, %v1338
      %1371 = vst.msk [vmem:[#allocation2 + $0x78] sm:$0xff] %vm180, %v1339
      %1372 = vst.msk [vmem:[#allocation2 + $0x80] sm:$0xff] %vm180, %v1340
      %1373 = vst.msk [vmem:[#allocation2 + $0x88] sm:$0xff] %vm180, %v1341
      %1374 = vst.msk [vmem:[#allocation2 + $0x90] sm:$0xff] %vm180, %v1342
      %1375 = vst.msk [vmem:[#allocation2 + $0x98] sm:$0xff] %vm180, %v1343
      %1376 = vst.msk [vmem:[#allocation2 + $0xa0] sm:$0xff] %vm180, %v1344
      %1377 = vst.msk [vmem:[#allocation2 + $0xa8] sm:$0xff] %vm180, %v1345
      %1378 = vst.msk [vmem:[#allocation2 + $0xb0] sm:$0xff] %vm180, %v1346
      %1379 = vst.msk [vmem:[#allocation2 + $0xb8] sm:$0xff] %vm180, %v1347
      %1380 = vst.msk [vmem:[#allocation2 + $0xc0] sm:$0xff] %vm180, %v1348
      %1381 = vst.msk [vmem:[#allocation2 + $0xc8] sm:$0xff] %vm180, %v1349
      %1382 = vst.msk [vmem:[#allocation2 + $0xd0] sm:$0xff] %vm180, %v1350
      %1383 = vst.msk [vmem:[#allocation2 + $0xd8] sm:$0xff] %vm180, %v1351
      %1384 = vst.msk [vmem:[#allocation2 + $0xe0] sm:$0xff] %vm180, %v1352
      %1385 = vst.msk [vmem:[#allocation2 + $0xe8] sm:$0xff] %vm180, %v1353
      %1386 = vst.msk [vmem:[#allocation2 + $0xf0] sm:$0xff] %vm180, %v1354
      %1387 = vst.msk [vmem:[#allocation2 + $0xf8] sm:$0xff] %vm180, %v1355
      %v1388 = vld [vmem:[#allocation2] sm:$0xff]
      %v1389 = vld [vmem:[#allocation2 + $0x8] sm:$0x7f]
      %v1390 = vld [vmem:[#allocation2 + $0x10] sm:$0xff]
      %v1391 = vld [vmem:[#allocation2 + $0x18] sm:$0x7f]
      %v1392 = vld [vmem:[#allocation2 + $0x20] sm:$0xff]
      %v1393 = vld [vmem:[#allocation2 + $0x28] sm:$0x7f]
      %v1394 = vld [vmem:[#allocation2 + $0x30] sm:$0xff]
      %v1395 = vld [vmem:[#allocation2 + $0x38] sm:$0x7f]
      %v1396 = vld [vmem:[#allocation2 + $0x40] sm:$0xff]
      %v1397 = vld [vmem:[#allocation2 + $0x48] sm:$0x7f]
      %v1398 = vld [vmem:[#allocation2 + $0x50] sm:$0xff]
      %v1399 = vld [vmem:[#allocation2 + $0x58] sm:$0x7f]
      %v1400 = vld [vmem:[#allocation2 + $0x60] sm:$0xff]
      %v1401 = vld [vmem:[#allocation2 + $0x68] sm:$0x7f]
      %v1402 = vld [vmem:[#allocation2 + $0x70] sm:$0xff]
      %v1403 = vld [vmem:[#allocation2 + $0x78] sm:$0x7f]
      %v1404 = vld [vmem:[#allocation2 + $0x80] sm:$0xff]
      %v1405 = vld [vmem:[#allocation2 + $0x88] sm:$0x7f]
      %v1406 = vld [vmem:[#allocation2 + $0x90] sm:$0xff]
      %v1407 = vld [vmem:[#allocation2 + $0x98] sm:$0x7f]
      %v1408 = vld [vmem:[#allocation2 + $0xa0] sm:$0xff]
      %v1409 = vld [vmem:[#allocation2 + $0xa8] sm:$0x7f]
      %v1410 = vld [vmem:[#allocation2 + $0xb0] sm:$0xff]
      %v1411 = vld [vmem:[#allocation2 + $0xb8] sm:$0x7f]
      %v1412 = vld [vmem:[#allocation2 + $0xc0] sm:$0xff]
      %v1413 = vld [vmem:[#allocation2 + $0xc8] sm:$0x7f]
      %v1414 = vld [vmem:[#allocation2 + $0xd0] sm:$0xff]
      %v1415 = vld [vmem:[#allocation2 + $0xd8] sm:$0x7f]
      %v1416 = vld [vmem:[#allocation2 + $0xe0] sm:$0xff]
      %v1417 = vld [vmem:[#allocation2 + $0xe8] sm:$0x7f]
      %v1418 = vld [vmem:[#allocation2 + $0xf0] sm:$0xff]
      %v1419 = vld [vmem:[#allocation2 + $0xf8] sm:$0x7f]
      %v1420 = vld [vmem:[%s823 + $0x1] sm:$0xff]
      %v1421 = vld [vmem:[%s823 + $0x9] sm:$0x7f]
      %v1422 = vld [vmem:[%s823 + $0x11] sm:$0xff]
      %v1423 = vld [vmem:[%s823 + $0x19] sm:$0x7f]
      %v1424 = vld [vmem:[%s823 + $0x21] sm:$0xff]
      %v1425 = vld [vmem:[%s823 + $0x29] sm:$0x7f]
      %v1426 = vld [vmem:[%s823 + $0x31] sm:$0xff]
      %v1427 = vld [vmem:[%s823 + $0x39] sm:$0x7f]
      %v1428 = vld [vmem:[%s823 + $0x41] sm:$0xff]
      %v1429 = vld [vmem:[%s823 + $0x49] sm:$0x7f]
      %v1430 = vld [vmem:[%s823 + $0x51] sm:$0xff]
      %v1431 = vld [vmem:[%s823 + $0x59] sm:$0x7f]
      %v1432 = vld [vmem:[%s823 + $0x61] sm:$0xff]
      %v1433 = vld [vmem:[%s823 + $0x69] sm:$0x7f]
      %v1434 = vld [vmem:[%s823 + $0x71] sm:$0xff]
      %v1435 = vld [vmem:[%s823 + $0x79] sm:$0x7f]
      %v1436 = vld [vmem:[%s823 + $0x81] sm:$0xff]
      %v1437 = vld [vmem:[%s823 + $0x89] sm:$0x7f]
      %v1438 = vld [vmem:[%s823 + $0x91] sm:$0xff]
      %v1439 = vld [vmem:[%s823 + $0x99] sm:$0x7f]
      %v1440 = vld [vmem:[%s823 + $0xa1] sm:$0xff]
      %v1441 = vld [vmem:[%s823 + $0xa9] sm:$0x7f]
      %v1442 = vld [vmem:[%s823 + $0xb1] sm:$0xff]
      %v1443 = vld [vmem:[%s823 + $0xb9] sm:$0x7f]
      %v1444 = vld [vmem:[%s823 + $0xc1] sm:$0xff]
      %v1445 = vld [vmem:[%s823 + $0xc9] sm:$0x7f]
      %v1446 = vld [vmem:[%s823 + $0xd1] sm:$0xff]
      %v1447 = vld [vmem:[%s823 + $0xd9] sm:$0x7f]
      %v1448 = vld [vmem:[%s823 + $0xe1] sm:$0xff]
      %v1449 = vld [vmem:[%s823 + $0xe9] sm:$0x7f]
      %v1450 = vld [vmem:[%s823 + $0xf1] sm:$0xff]
      %v1451 = vld [vmem:[%s823 + $0xf9] sm:$0x7f]
      %v1452 = vmax.f32 %v1388, %v1420
      %v1453 = vmax.f32 %v1389, %v1421
      %v1454 = vmax.f32 %v1390, %v1422
      %v1455 = vmax.f32 %v1391, %v1423
      %v1456 = vmax.f32 %v1392, %v1424
      %v1457 = vmax.f32 %v1393, %v1425
      %v1458 = vmax.f32 %v1394, %v1426
      %v1459 = vmax.f32 %v1395, %v1427
      %v1460 = vmax.f32 %v1396, %v1428
      %v1461 = vmax.f32 %v1397, %v1429
      %v1462 = vmax.f32 %v1398, %v1430
      %v1463 = vmax.f32 %v1399, %v1431
      %v1464 = vmax.f32 %v1400, %v1432
      %v1465 = vmax.f32 %v1401, %v1433
      %v1466 = vmax.f32 %v1402, %v1434
      %v1467 = vmax.f32 %v1403, %v1435
      %v1468 = vmax.f32 %v1404, %v1436
      %v1469 = vmax.f32 %v1405, %v1437
      %v1470 = vmax.f32 %v1406, %v1438
      %v1471 = vmax.f32 %v1407, %v1439
      %v1472 = vmax.f32 %v1408, %v1440
      %v1473 = vmax.f32 %v1409, %v1441
      %v1474 = vmax.f32 %v1410, %v1442
      %v1475 = vmax.f32 %v1411, %v1443
      %v1476 = vmax.f32 %v1412, %v1444
      %v1477 = vmax.f32 %v1413, %v1445
      %v1478 = vmax.f32 %v1414, %v1446
      %v1479 = vmax.f32 %v1415, %v1447
      %v1480 = vmax.f32 %v1416, %v1448
      %v1481 = vmax.f32 %v1417, %v1449
      %v1482 = vmax.f32 %v1418, %v1450
      %v1483 = vmax.f32 %v1419, %v1451
      %1484 = vst.msk [vmem:[#allocation2] sm:$0xff] %vm180, %v1452
      %1485 = vst.msk [vmem:[#allocation2 + $0x8] sm:$0x7f] %vm374, %v1453
      %1486 = vst.msk [vmem:[#allocation2 + $0x10] sm:$0xff] %vm180, %v1454
      %1487 = vst.msk [vmem:[#allocation2 + $0x18] sm:$0x7f] %vm374, %v1455
      %1488 = vst.msk [vmem:[#allocation2 + $0x20] sm:$0xff] %vm180, %v1456
      %1489 = vst.msk [vmem:[#allocation2 + $0x28] sm:$0x7f] %vm374, %v1457
      %1490 = vst.msk [vmem:[#allocation2 + $0x30] sm:$0xff] %vm180, %v1458
      %1491 = vst.msk [vmem:[#allocation2 + $0x38] sm:$0x7f] %vm374, %v1459
      %1492 = vst.msk [vmem:[#allocation2 + $0x40] sm:$0xff] %vm180, %v1460
      %1493 = vst.msk [vmem:[#allocation2 + $0x48] sm:$0x7f] %vm374, %v1461
      %1494 = vst.msk [vmem:[#allocation2 + $0x50] sm:$0xff] %vm180, %v1462
      %1495 = vst.msk [vmem:[#allocation2 + $0x58] sm:$0x7f] %vm374, %v1463
      %1496 = vst.msk [vmem:[#allocation2 + $0x60] sm:$0xff] %vm180, %v1464
      %1497 = vst.msk [vmem:[#allocation2 + $0x68] sm:$0x7f] %vm374, %v1465
      %1498 = vst.msk [vmem:[#allocation2 + $0x70] sm:$0xff] %vm180, %v1466
      %1499 = vst.msk [vmem:[#allocation2 + $0x78] sm:$0x7f] %vm374, %v1467
      %1500 = vst.msk [vmem:[#allocation2 + $0x80] sm:$0xff] %vm180, %v1468
      %1501 = vst.msk [vmem:[#allocation2 + $0x88] sm:$0x7f] %vm374, %v1469
      %1502 = vst.msk [vmem:[#allocation2 + $0x90] sm:$0xff] %vm180, %v1470
      %1503 = vst.msk [vmem:[#allocation2 + $0x98] sm:$0x7f] %vm374, %v1471
      %1504 = vst.msk [vmem:[#allocation2 + $0xa0] sm:$0xff] %vm180, %v1472
      %1505 = vst.msk [vmem:[#allocation2 + $0xa8] sm:$0x7f] %vm374, %v1473
      %1506 = vst.msk [vmem:[#allocation2 + $0xb0] sm:$0xff] %vm180, %v1474
      %1507 = vst.msk [vmem:[#allocation2 + $0xb8] sm:$0x7f] %vm374, %v1475
      %1508 = vst.msk [vmem:[#allocation2 + $0xc0] sm:$0xff] %vm180, %v1476
      %1509 = vst.msk [vmem:[#allocation2 + $0xc8] sm:$0x7f] %vm374, %v1477
      %1510 = vst.msk [vmem:[#allocation2 + $0xd0] sm:$0xff] %vm180, %v1478
      %1511 = vst.msk [vmem:[#allocation2 + $0xd8] sm:$0x7f] %vm374, %v1479
      %1512 = vst.msk [vmem:[#allocation2 + $0xe0] sm:$0xff] %vm180, %v1480
      %1513 = vst.msk [vmem:[#allocation2 + $0xe8] sm:$0x7f] %vm374, %v1481
      %1514 = vst.msk [vmem:[#allocation2 + $0xf0] sm:$0xff] %vm180, %v1482
      %1515 = vst.msk [vmem:[#allocation2 + $0xf8] sm:$0x7f] %vm374, %v1483
      %v1516 = vld [vmem:[#allocation2 + $0x1] sm:$0xff]
      %v1517 = vld [vmem:[#allocation2 + $0x9] sm:$0x7f]
      %v1518 = vld [vmem:[#allocation2 + $0x11] sm:$0xff]
      %v1519 = vld [vmem:[#allocation2 + $0x19] sm:$0x7f]
      %v1520 = vld [vmem:[#allocation2 + $0x21] sm:$0xff]
      %v1521 = vld [vmem:[#allocation2 + $0x29] sm:$0x7f]
      %v1522 = vld [vmem:[#allocation2 + $0x31] sm:$0xff]
      %v1523 = vld [vmem:[#allocation2 + $0x39] sm:$0x7f]
      %v1524 = vld [vmem:[#allocation2 + $0x41] sm:$0xff]
      %v1525 = vld [vmem:[#allocation2 + $0x49] sm:$0x7f]
      %v1526 = vld [vmem:[#allocation2 + $0x51] sm:$0xff]
      %v1527 = vld [vmem:[#allocation2 + $0x59] sm:$0x7f]
      %v1528 = vld [vmem:[#allocation2 + $0x61] sm:$0xff]
      %v1529 = vld [vmem:[#allocation2 + $0x69] sm:$0x7f]
      %v1530 = vld [vmem:[#allocation2 + $0x71] sm:$0xff]
      %v1531 = vld [vmem:[#allocation2 + $0x79] sm:$0x7f]
      %v1532 = vld [vmem:[#allocation2 + $0x81] sm:$0xff]
      %v1533 = vld [vmem:[#allocation2 + $0x89] sm:$0x7f]
      %v1534 = vld [vmem:[#allocation2 + $0x91] sm:$0xff]
      %v1535 = vld [vmem:[#allocation2 + $0x99] sm:$0x7f]
      %v1536 = vld [vmem:[#allocation2 + $0xa1] sm:$0xff]
      %v1537 = vld [vmem:[#allocation2 + $0xa9] sm:$0x7f]
      %v1538 = vld [vmem:[#allocation2 + $0xb1] sm:$0xff]
      %v1539 = vld [vmem:[#allocation2 + $0xb9] sm:$0x7f]
      %v1540 = vld [vmem:[#allocation2 + $0xc1] sm:$0xff]
      %v1541 = vld [vmem:[#allocation2 + $0xc9] sm:$0x7f]
      %v1542 = vld [vmem:[#allocation2 + $0xd1] sm:$0xff]
      %v1543 = vld [vmem:[#allocation2 + $0xd9] sm:$0x7f]
      %v1544 = vld [vmem:[#allocation2 + $0xe1] sm:$0xff]
      %v1545 = vld [vmem:[#allocation2 + $0xe9] sm:$0x7f]
      %v1546 = vld [vmem:[#allocation2 + $0xf1] sm:$0xff]
      %v1547 = vld [vmem:[#allocation2 + $0xf9] sm:$0x7f]
      %v1548 = vld [vmem:[%s823] sm:$0xff]
      %v1549 = vld [vmem:[%s823 + $0x8] sm:$0x7f]
      %v1550 = vld [vmem:[%s823 + $0x10] sm:$0xff]
      %v1551 = vld [vmem:[%s823 + $0x18] sm:$0x7f]
      %v1552 = vld [vmem:[%s823 + $0x20] sm:$0xff]
      %v1553 = vld [vmem:[%s823 + $0x28] sm:$0x7f]
      %v1554 = vld [vmem:[%s823 + $0x30] sm:$0xff]
      %v1555 = vld [vmem:[%s823 + $0x38] sm:$0x7f]
      %v1556 = vld [vmem:[%s823 + $0x40] sm:$0xff]
      %v1557 = vld [vmem:[%s823 + $0x48] sm:$0x7f]
      %v1558 = vld [vmem:[%s823 + $0x50] sm:$0xff]
      %v1559 = vld [vmem:[%s823 + $0x58] sm:$0x7f]
      %v1560 = vld [vmem:[%s823 + $0x60] sm:$0xff]
      %v1561 = vld [vmem:[%s823 + $0x68] sm:$0x7f]
      %v1562 = vld [vmem:[%s823 + $0x70] sm:$0xff]
      %v1563 = vld [vmem:[%s823 + $0x78] sm:$0x7f]
      %v1564 = vld [vmem:[%s823 + $0x80] sm:$0xff]
      %v1565 = vld [vmem:[%s823 + $0x88] sm:$0x7f]
      %v1566 = vld [vmem:[%s823 + $0x90] sm:$0xff]
      %v1567 = vld [vmem:[%s823 + $0x98] sm:$0x7f]
      %v1568 = vld [vmem:[%s823 + $0xa0] sm:$0xff]
      %v1569 = vld [vmem:[%s823 + $0xa8] sm:$0x7f]
      %v1570 = vld [vmem:[%s823 + $0xb0] sm:$0xff]
      %v1571 = vld [vmem:[%s823 + $0xb8] sm:$0x7f]
      %v1572 = vld [vmem:[%s823 + $0xc0] sm:$0xff]
      %v1573 = vld [vmem:[%s823 + $0xc8] sm:$0x7f]
      %v1574 = vld [vmem:[%s823 + $0xd0] sm:$0xff]
      %v1575 = vld [vmem:[%s823 + $0xd8] sm:$0x7f]
      %v1576 = vld [vmem:[%s823 + $0xe0] sm:$0xff]
      %v1577 = vld [vmem:[%s823 + $0xe8] sm:$0x7f]
      %v1578 = vld [vmem:[%s823 + $0xf0] sm:$0xff]
      %v1579 = vld [vmem:[%s823 + $0xf8] sm:$0x7f]
      %v1580 = vmax.f32 %v1516, %v1548
      %v1581 = vmax.f32 %v1517, %v1549
      %v1582 = vmax.f32 %v1518, %v1550
      %v1583 = vmax.f32 %v1519, %v1551
      %v1584 = vmax.f32 %v1520, %v1552
      %v1585 = vmax.f32 %v1521, %v1553
      %v1586 = vmax.f32 %v1522, %v1554
      %v1587 = vmax.f32 %v1523, %v1555
      %v1588 = vmax.f32 %v1524, %v1556
      %v1589 = vmax.f32 %v1525, %v1557
      %v1590 = vmax.f32 %v1526, %v1558
      %v1591 = vmax.f32 %v1527, %v1559
      %v1592 = vmax.f32 %v1528, %v1560
      %v1593 = vmax.f32 %v1529, %v1561
      %v1594 = vmax.f32 %v1530, %v1562
      %v1595 = vmax.f32 %v1531, %v1563
      %v1596 = vmax.f32 %v1532, %v1564
      %v1597 = vmax.f32 %v1533, %v1565
      %v1598 = vmax.f32 %v1534, %v1566
      %v1599 = vmax.f32 %v1535, %v1567
      %v1600 = vmax.f32 %v1536, %v1568
      %v1601 = vmax.f32 %v1537, %v1569
      %v1602 = vmax.f32 %v1538, %v1570
      %v1603 = vmax.f32 %v1539, %v1571
      %v1604 = vmax.f32 %v1540, %v1572
      %v1605 = vmax.f32 %v1541, %v1573
      %v1606 = vmax.f32 %v1542, %v1574
      %v1607 = vmax.f32 %v1543, %v1575
      %v1608 = vmax.f32 %v1544, %v1576
      %v1609 = vmax.f32 %v1545, %v1577
      %v1610 = vmax.f32 %v1546, %v1578
      %v1611 = vmax.f32 %v1547, %v1579
      %1612 = vst.msk [vmem:[#allocation2 + $0x1] sm:$0xff] %vm180, %v1580
      %1613 = vst.msk [vmem:[#allocation2 + $0x9] sm:$0x7f] %vm374, %v1581
      %1614 = vst.msk [vmem:[#allocation2 + $0x11] sm:$0xff] %vm180, %v1582
      %1615 = vst.msk [vmem:[#allocation2 + $0x19] sm:$0x7f] %vm374, %v1583
      %1616 = vst.msk [vmem:[#allocation2 + $0x21] sm:$0xff] %vm180, %v1584
      %1617 = vst.msk [vmem:[#allocation2 + $0x29] sm:$0x7f] %vm374, %v1585
      %1618 = vst.msk [vmem:[#allocation2 + $0x31] sm:$0xff] %vm180, %v1586
      %1619 = vst.msk [vmem:[#allocation2 + $0x39] sm:$0x7f] %vm374, %v1587
      %1620 = vst.msk [vmem:[#allocation2 + $0x41] sm:$0xff] %vm180, %v1588
      %1621 = vst.msk [vmem:[#allocation2 + $0x49] sm:$0x7f] %vm374, %v1589
      %1622 = vst.msk [vmem:[#allocation2 + $0x51] sm:$0xff] %vm180, %v1590
      %1623 = vst.msk [vmem:[#allocation2 + $0x59] sm:$0x7f] %vm374, %v1591
      %1624 = vst.msk [vmem:[#allocation2 + $0x61] sm:$0xff] %vm180, %v1592
      %1625 = vst.msk [vmem:[#allocation2 + $0x69] sm:$0x7f] %vm374, %v1593
      %1626 = vst.msk [vmem:[#allocation2 + $0x71] sm:$0xff] %vm180, %v1594
      %1627 = vst.msk [vmem:[#allocation2 + $0x79] sm:$0x7f] %vm374, %v1595
      %1628 = vst.msk [vmem:[#allocation2 + $0x81] sm:$0xff] %vm180, %v1596
      %1629 = vst.msk [vmem:[#allocation2 + $0x89] sm:$0x7f] %vm374, %v1597
      %1630 = vst.msk [vmem:[#allocation2 + $0x91] sm:$0xff] %vm180, %v1598
      %1631 = vst.msk [vmem:[#allocation2 + $0x99] sm:$0x7f] %vm374, %v1599
      %1632 = vst.msk [vmem:[#allocation2 + $0xa1] sm:$0xff] %vm180, %v1600
      %1633 = vst.msk [vmem:[#allocation2 + $0xa9] sm:$0x7f] %vm374, %v1601
      %1634 = vst.msk [vmem:[#allocation2 + $0xb1] sm:$0xff] %vm180, %v1602
      %1635 = vst.msk [vmem:[#allocation2 + $0xb9] sm:$0x7f] %vm374, %v1603
      %1636 = vst.msk [vmem:[#allocation2 + $0xc1] sm:$0xff] %vm180, %v1604
      %1637 = vst.msk [vmem:[#allocation2 + $0xc9] sm:$0x7f] %vm374, %v1605
      %1638 = vst.msk [vmem:[#allocation2 + $0xd1] sm:$0xff] %vm180, %v1606
      %1639 = vst.msk [vmem:[#allocation2 + $0xd9] sm:$0x7f] %vm374, %v1607
      %1640 = vst.msk [vmem:[#allocation2 + $0xe1] sm:$0xff] %vm180, %v1608
      %1641 = vst.msk [vmem:[#allocation2 + $0xe9] sm:$0x7f] %vm374, %v1609
      %1642 = vst.msk [vmem:[#allocation2 + $0xf1] sm:$0xff] %vm180, %v1610
      %1643 = vst.msk [vmem:[#allocation2 + $0xf9] sm:$0x7f] %vm374, %v1611
      %v1644 = vld [vmem:[#allocation2] sm:$0xff]
      %v1645 = vld [vmem:[#allocation2 + $0x8] sm:$0x3f]
      %v1646 = vld [vmem:[#allocation2 + $0x10] sm:$0xff]
      %v1647 = vld [vmem:[#allocation2 + $0x18] sm:$0x3f]
      %v1648 = vld [vmem:[#allocation2 + $0x20] sm:$0xff]
      %v1649 = vld [vmem:[#allocation2 + $0x28] sm:$0x3f]
      %v1650 = vld [vmem:[#allocation2 + $0x30] sm:$0xff]
      %v1651 = vld [vmem:[#allocation2 + $0x38] sm:$0x3f]
      %v1652 = vld [vmem:[#allocation2 + $0x40] sm:$0xff]
      %v1653 = vld [vmem:[#allocation2 + $0x48] sm:$0x3f]
      %v1654 = vld [vmem:[#allocation2 + $0x50] sm:$0xff]
      %v1655 = vld [vmem:[#allocation2 + $0x58] sm:$0x3f]
      %v1656 = vld [vmem:[#allocation2 + $0x60] sm:$0xff]
      %v1657 = vld [vmem:[#allocation2 + $0x68] sm:$0x3f]
      %v1658 = vld [vmem:[#allocation2 + $0x70] sm:$0xff]
      %v1659 = vld [vmem:[#allocation2 + $0x78] sm:$0x3f]
      %v1660 = vld [vmem:[#allocation2 + $0x80] sm:$0xff]
      %v1661 = vld [vmem:[#allocation2 + $0x88] sm:$0x3f]
      %v1662 = vld [vmem:[#allocation2 + $0x90] sm:$0xff]
      %v1663 = vld [vmem:[#allocation2 + $0x98] sm:$0x3f]
      %v1664 = vld [vmem:[#allocation2 + $0xa0] sm:$0xff]
      %v1665 = vld [vmem:[#allocation2 + $0xa8] sm:$0x3f]
      %v1666 = vld [vmem:[#allocation2 + $0xb0] sm:$0xff]
      %v1667 = vld [vmem:[#allocation2 + $0xb8] sm:$0x3f]
      %v1668 = vld [vmem:[#allocation2 + $0xc0] sm:$0xff]
      %v1669 = vld [vmem:[#allocation2 + $0xc8] sm:$0x3f]
      %v1670 = vld [vmem:[#allocation2 + $0xd0] sm:$0xff]
      %v1671 = vld [vmem:[#allocation2 + $0xd8] sm:$0x3f]
      %v1672 = vld [vmem:[#allocation2 + $0xe0] sm:$0xff]
      %v1673 = vld [vmem:[#allocation2 + $0xe8] sm:$0x3f]
      %v1674 = vld [vmem:[#allocation2 + $0xf0] sm:$0xff]
      %v1675 = vld [vmem:[#allocation2 + $0xf8] sm:$0x3f]
      %v1676 = vld [vmem:[%s823 + $0x2] sm:$0xff]
      %v1677 = vld [vmem:[%s823 + $0xa] sm:$0x3f]
      %v1678 = vld [vmem:[%s823 + $0x12] sm:$0xff]
      %v1679 = vld [vmem:[%s823 + $0x1a] sm:$0x3f]
      %v1680 = vld [vmem:[%s823 + $0x22] sm:$0xff]
      %v1681 = vld [vmem:[%s823 + $0x2a] sm:$0x3f]
      %v1682 = vld [vmem:[%s823 + $0x32] sm:$0xff]
      %v1683 = vld [vmem:[%s823 + $0x3a] sm:$0x3f]
      %v1684 = vld [vmem:[%s823 + $0x42] sm:$0xff]
      %v1685 = vld [vmem:[%s823 + $0x4a] sm:$0x3f]
      %v1686 = vld [vmem:[%s823 + $0x52] sm:$0xff]
      %v1687 = vld [vmem:[%s823 + $0x5a] sm:$0x3f]
      %v1688 = vld [vmem:[%s823 + $0x62] sm:$0xff]
      %v1689 = vld [vmem:[%s823 + $0x6a] sm:$0x3f]
      %v1690 = vld [vmem:[%s823 + $0x72] sm:$0xff]
      %v1691 = vld [vmem:[%s823 + $0x7a] sm:$0x3f]
      %v1692 = vld [vmem:[%s823 + $0x82] sm:$0xff]
      %v1693 = vld [vmem:[%s823 + $0x8a] sm:$0x3f]
      %v1694 = vld [vmem:[%s823 + $0x92] sm:$0xff]
      %v1695 = vld [vmem:[%s823 + $0x9a] sm:$0x3f]
      %v1696 = vld [vmem:[%s823 + $0xa2] sm:$0xff]
      %v1697 = vld [vmem:[%s823 + $0xaa] sm:$0x3f]
      %v1698 = vld [vmem:[%s823 + $0xb2] sm:$0xff]
      %v1699 = vld [vmem:[%s823 + $0xba] sm:$0x3f]
      %v1700 = vld [vmem:[%s823 + $0xc2] sm:$0xff]
      %v1701 = vld [vmem:[%s823 + $0xca] sm:$0x3f]
      %v1702 = vld [vmem:[%s823 + $0xd2] sm:$0xff]
      %v1703 = vld [vmem:[%s823 + $0xda] sm:$0x3f]
      %v1704 = vld [vmem:[%s823 + $0xe2] sm:$0xff]
      %v1705 = vld [vmem:[%s823 + $0xea] sm:$0x3f]
      %v1706 = vld [vmem:[%s823 + $0xf2] sm:$0xff]
      %v1707 = vld [vmem:[%s823 + $0xfa] sm:$0x3f]
      %v1708 = vmax.f32 %v1644, %v1676
      %v1709 = vmax.f32 %v1645, %v1677
      %v1710 = vmax.f32 %v1646, %v1678
      %v1711 = vmax.f32 %v1647, %v1679
      %v1712 = vmax.f32 %v1648, %v1680
      %v1713 = vmax.f32 %v1649, %v1681
      %v1714 = vmax.f32 %v1650, %v1682
      %v1715 = vmax.f32 %v1651, %v1683
      %v1716 = vmax.f32 %v1652, %v1684
      %v1717 = vmax.f32 %v1653, %v1685
      %v1718 = vmax.f32 %v1654, %v1686
      %v1719 = vmax.f32 %v1655, %v1687
      %v1720 = vmax.f32 %v1656, %v1688
      %v1721 = vmax.f32 %v1657, %v1689
      %v1722 = vmax.f32 %v1658, %v1690
      %v1723 = vmax.f32 %v1659, %v1691
      %v1724 = vmax.f32 %v1660, %v1692
      %v1725 = vmax.f32 %v1661, %v1693
      %v1726 = vmax.f32 %v1662, %v1694
      %v1727 = vmax.f32 %v1663, %v1695
      %v1728 = vmax.f32 %v1664, %v1696
      %v1729 = vmax.f32 %v1665, %v1697
      %v1730 = vmax.f32 %v1666, %v1698
      %v1731 = vmax.f32 %v1667, %v1699
      %v1732 = vmax.f32 %v1668, %v1700
      %v1733 = vmax.f32 %v1669, %v1701
      %v1734 = vmax.f32 %v1670, %v1702
      %v1735 = vmax.f32 %v1671, %v1703
      %v1736 = vmax.f32 %v1672, %v1704
      %v1737 = vmax.f32 %v1673, %v1705
      %v1738 = vmax.f32 %v1674, %v1706
      %v1739 = vmax.f32 %v1675, %v1707
      %1740 = vst.msk [vmem:[#allocation2] sm:$0xff] %vm180, %v1708
      %1741 = vst.msk [vmem:[#allocation2 + $0x8] sm:$0x3f] %vm631, %v1709
      %1742 = vst.msk [vmem:[#allocation2 + $0x10] sm:$0xff] %vm180, %v1710
      %1743 = vst.msk [vmem:[#allocation2 + $0x18] sm:$0x3f] %vm631, %v1711
      %1744 = vst.msk [vmem:[#allocation2 + $0x20] sm:$0xff] %vm180, %v1712
      %1745 = vst.msk [vmem:[#allocation2 + $0x28] sm:$0x3f] %vm631, %v1713
      %1746 = vst.msk [vmem:[#allocation2 + $0x30] sm:$0xff] %vm180, %v1714
      %1747 = vst.msk [vmem:[#allocation2 + $0x38] sm:$0x3f] %vm631, %v1715
      %1748 = vst.msk [vmem:[#allocation2 + $0x40] sm:$0xff] %vm180, %v1716
      %1749 = vst.msk [vmem:[#allocation2 + $0x48] sm:$0x3f] %vm631, %v1717
      %1750 = vst.msk [vmem:[#allocation2 + $0x50] sm:$0xff] %vm180, %v1718
      %1751 = vst.msk [vmem:[#allocation2 + $0x58] sm:$0x3f] %vm631, %v1719
      %1752 = vst.msk [vmem:[#allocation2 + $0x60] sm:$0xff] %vm180, %v1720
      %1753 = vst.msk [vmem:[#allocation2 + $0x68] sm:$0x3f] %vm631, %v1721
      %1754 = vst.msk [vmem:[#allocation2 + $0x70] sm:$0xff] %vm180, %v1722
      %1755 = vst.msk [vmem:[#allocation2 + $0x78] sm:$0x3f] %vm631, %v1723
      %1756 = vst.msk [vmem:[#allocation2 + $0x80] sm:$0xff] %vm180, %v1724
      %1757 = vst.msk [vmem:[#allocation2 + $0x88] sm:$0x3f] %vm631, %v1725
      %1758 = vst.msk [vmem:[#allocation2 + $0x90] sm:$0xff] %vm180, %v1726
      %1759 = vst.msk [vmem:[#allocation2 + $0x98] sm:$0x3f] %vm631, %v1727
      %1760 = vst.msk [vmem:[#allocation2 + $0xa0] sm:$0xff] %vm180, %v1728
      %1761 = vst.msk [vmem:[#allocation2 + $0xa8] sm:$0x3f] %vm631, %v1729
      %1762 = vst.msk [vmem:[#allocation2 + $0xb0] sm:$0xff] %vm180, %v1730
      %1763 = vst.msk [vmem:[#allocation2 + $0xb8] sm:$0x3f] %vm631, %v1731
      %1764 = vst.msk [vmem:[#allocation2 + $0xc0] sm:$0xff] %vm180, %v1732
      %1765 = vst.msk [vmem:[#allocation2 + $0xc8] sm:$0x3f] %vm631, %v1733
      %1766 = vst.msk [vmem:[#allocation2 + $0xd0] sm:$0xff] %vm180, %v1734
      %1767 = vst.msk [vmem:[#allocation2 + $0xd8] sm:$0x3f] %vm631, %v1735
      %1768 = vst.msk [vmem:[#allocation2 + $0xe0] sm:$0xff] %vm180, %v1736
      %1769 = vst.msk [vmem:[#allocation2 + $0xe8] sm:$0x3f] %vm631, %v1737
      %1770 = vst.msk [vmem:[#allocation2 + $0xf0] sm:$0xff] %vm180, %v1738
      %1771 = vst.msk [vmem:[#allocation2 + $0xf8] sm:$0x3f] %vm631, %v1739
      %v1772 = vld [vmem:[#allocation2 + $0x2] sm:$0xff]
      %v1773 = vld [vmem:[#allocation2 + $0xa] sm:$0x3f]
      %v1774 = vld [vmem:[#allocation2 + $0x12] sm:$0xff]
      %v1775 = vld [vmem:[#allocation2 + $0x1a] sm:$0x3f]
      %v1776 = vld [vmem:[#allocation2 + $0x22] sm:$0xff]
      %v1777 = vld [vmem:[#allocation2 + $0x2a] sm:$0x3f]
      %v1778 = vld [vmem:[#allocation2 + $0x32] sm:$0xff]
      %v1779 = vld [vmem:[#allocation2 + $0x3a] sm:$0x3f]
      %v1780 = vld [vmem:[#allocation2 + $0x42] sm:$0xff]
      %v1781 = vld [vmem:[#allocation2 + $0x4a] sm:$0x3f]
      %v1782 = vld [vmem:[#allocation2 + $0x52] sm:$0xff]
      %v1783 = vld [vmem:[#allocation2 + $0x5a] sm:$0x3f]
      %v1784 = vld [vmem:[#allocation2 + $0x62] sm:$0xff]
      %v1785 = vld [vmem:[#allocation2 + $0x6a] sm:$0x3f]
      %v1786 = vld [vmem:[#allocation2 + $0x72] sm:$0xff]
      %v1787 = vld [vmem:[#allocation2 + $0x7a] sm:$0x3f]
      %v1788 = vld [vmem:[#allocation2 + $0x82] sm:$0xff]
      %v1789 = vld [vmem:[#allocation2 + $0x8a] sm:$0x3f]
      %v1790 = vld [vmem:[#allocation2 + $0x92] sm:$0xff]
      %v1791 = vld [vmem:[#allocation2 + $0x9a] sm:$0x3f]
      %v1792 = vld [vmem:[#allocation2 + $0xa2] sm:$0xff]
      %v1793 = vld [vmem:[#allocation2 + $0xaa] sm:$0x3f]
      %v1794 = vld [vmem:[#allocation2 + $0xb2] sm:$0xff]
      %v1795 = vld [vmem:[#allocation2 + $0xba] sm:$0x3f]
      %v1796 = vld [vmem:[#allocation2 + $0xc2] sm:$0xff]
      %v1797 = vld [vmem:[#allocation2 + $0xca] sm:$0x3f]
      %v1798 = vld [vmem:[#allocation2 + $0xd2] sm:$0xff]
      %v1799 = vld [vmem:[#allocation2 + $0xda] sm:$0x3f]
      %v1800 = vld [vmem:[#allocation2 + $0xe2] sm:$0xff]
      %v1801 = vld [vmem:[#allocation2 + $0xea] sm:$0x3f]
      %v1802 = vld [vmem:[#allocation2 + $0xf2] sm:$0xff]
      %v1803 = vld [vmem:[#allocation2 + $0xfa] sm:$0x3f]
      %v1804 = vld [vmem:[%s823] sm:$0xff]
      %v1805 = vld [vmem:[%s823 + $0x8] sm:$0x3f]
      %v1806 = vld [vmem:[%s823 + $0x10] sm:$0xff]
      %v1807 = vld [vmem:[%s823 + $0x18] sm:$0x3f]
      %v1808 = vld [vmem:[%s823 + $0x20] sm:$0xff]
      %v1809 = vld [vmem:[%s823 + $0x28] sm:$0x3f]
      %v1810 = vld [vmem:[%s823 + $0x30] sm:$0xff]
      %v1811 = vld [vmem:[%s823 + $0x38] sm:$0x3f]
      %v1812 = vld [vmem:[%s823 + $0x40] sm:$0xff]
      %v1813 = vld [vmem:[%s823 + $0x48] sm:$0x3f]
      %v1814 = vld [vmem:[%s823 + $0x50] sm:$0xff]
      %v1815 = vld [vmem:[%s823 + $0x58] sm:$0x3f]
      %v1816 = vld [vmem:[%s823 + $0x60] sm:$0xff]
      %v1817 = vld [vmem:[%s823 + $0x68] sm:$0x3f]
      %v1818 = vld [vmem:[%s823 + $0x70] sm:$0xff]
      %v1819 = vld [vmem:[%s823 + $0x78] sm:$0x3f]
      %v1820 = vld [vmem:[%s823 + $0x80] sm:$0xff]
      %v1821 = vld [vmem:[%s823 + $0x88] sm:$0x3f]
      %v1822 = vld [vmem:[%s823 + $0x90] sm:$0xff]
      %v1823 = vld [vmem:[%s823 + $0x98] sm:$0x3f]
      %v1824 = vld [vmem:[%s823 + $0xa0] sm:$0xff]
      %v1825 = vld [vmem:[%s823 + $0xa8] sm:$0x3f]
      %v1826 = vld [vmem:[%s823 + $0xb0] sm:$0xff]
      %v1827 = vld [vmem:[%s823 + $0xb8] sm:$0x3f]
      %v1828 = vld [vmem:[%s823 + $0xc0] sm:$0xff]
      %v1829 = vld [vmem:[%s823 + $0xc8] sm:$0x3f]
      %v1830 = vld [vmem:[%s823 + $0xd0] sm:$0xff]
      %v1831 = vld [vmem:[%s823 + $0xd8] sm:$0x3f]
      %v1832 = vld [vmem:[%s823 + $0xe0] sm:$0xff]
      %v1833 = vld [vmem:[%s823 + $0xe8] sm:$0x3f]
      %v1834 = vld [vmem:[%s823 + $0xf0] sm:$0xff]
      %v1835 = vld [vmem:[%s823 + $0xf8] sm:$0x3f]
      %v1836 = vmax.f32 %v1772, %v1804
      %v1837 = vmax.f32 %v1773, %v1805
      %v1838 = vmax.f32 %v1774, %v1806
      %v1839 = vmax.f32 %v1775, %v1807
      %v1840 = vmax.f32 %v1776, %v1808
      %v1841 = vmax.f32 %v1777, %v1809
      %v1842 = vmax.f32 %v1778, %v1810
      %v1843 = vmax.f32 %v1779, %v1811
      %v1844 = vmax.f32 %v1780, %v1812
      %v1845 = vmax.f32 %v1781, %v1813
      %v1846 = vmax.f32 %v1782, %v1814
      %v1847 = vmax.f32 %v1783, %v1815
      %v1848 = vmax.f32 %v1784, %v1816
      %v1849 = vmax.f32 %v1785, %v1817
      %v1850 = vmax.f32 %v1786, %v1818
      %v1851 = vmax.f32 %v1787, %v1819
      %v1852 = vmax.f32 %v1788, %v1820
      %v1853 = vmax.f32 %v1789, %v1821
      %v1854 = vmax.f32 %v1790, %v1822
      %v1855 = vmax.f32 %v1791, %v1823
      %v1856 = vmax.f32 %v1792, %v1824
      %v1857 = vmax.f32 %v1793, %v1825
      %v1858 = vmax.f32 %v1794, %v1826
      %v1859 = vmax.f32 %v1795, %v1827
      %v1860 = vmax.f32 %v1796, %v1828
      %v1861 = vmax.f32 %v1797, %v1829
      %v1862 = vmax.f32 %v1798, %v1830
      %v1863 = vmax.f32 %v1799, %v1831
      %v1864 = vmax.f32 %v1800, %v1832
      %v1865 = vmax.f32 %v1801, %v1833
      %v1866 = vmax.f32 %v1802, %v1834
      %v1867 = vmax.f32 %v1803, %v1835
      %1868 = vst.msk [vmem:[#allocation2 + $0x2] sm:$0xff] %vm180, %v1836
      %1869 = vst.msk [vmem:[#allocation2 + $0xa] sm:$0x3f] %vm631, %v1837
      %1870 = vst.msk [vmem:[#allocation2 + $0x12] sm:$0xff] %vm180, %v1838
      %1871 = vst.msk [vmem:[#allocation2 + $0x1a] sm:$0x3f] %vm631, %v1839
      %1872 = vst.msk [vmem:[#allocation2 + $0x22] sm:$0xff] %vm180, %v1840
      %1873 = vst.msk [vmem:[#allocation2 + $0x2a] sm:$0x3f] %vm631, %v1841
      %1874 = vst.msk [vmem:[#allocation2 + $0x32] sm:$0xff] %vm180, %v1842
      %1875 = vst.msk [vmem:[#allocation2 + $0x3a] sm:$0x3f] %vm631, %v1843
      %1876 = vst.msk [vmem:[#allocation2 + $0x42] sm:$0xff] %vm180, %v1844
      %1877 = vst.msk [vmem:[#allocation2 + $0x4a] sm:$0x3f] %vm631, %v1845
      %1878 = vst.msk [vmem:[#allocation2 + $0x52] sm:$0xff] %vm180, %v1846
      %1879 = vst.msk [vmem:[#allocation2 + $0x5a] sm:$0x3f] %vm631, %v1847
      %1880 = vst.msk [vmem:[#allocation2 + $0x62] sm:$0xff] %vm180, %v1848
      %1881 = vst.msk [vmem:[#allocation2 + $0x6a] sm:$0x3f] %vm631, %v1849
      %1882 = vst.msk [vmem:[#allocation2 + $0x72] sm:$0xff] %vm180, %v1850
      %1883 = vst.msk [vmem:[#allocation2 + $0x7a] sm:$0x3f] %vm631, %v1851
      %1884 = vst.msk [vmem:[#allocation2 + $0x82] sm:$0xff] %vm180, %v1852
      %1885 = vst.msk [vmem:[#allocation2 + $0x8a] sm:$0x3f] %vm631, %v1853
      %1886 = vst.msk [vmem:[#allocation2 + $0x92] sm:$0xff] %vm180, %v1854
      %1887 = vst.msk [vmem:[#allocation2 + $0x9a] sm:$0x3f] %vm631, %v1855
      %1888 = vst.msk [vmem:[#allocation2 + $0xa2] sm:$0xff] %vm180, %v1856
      %1889 = vst.msk [vmem:[#allocation2 + $0xaa] sm:$0x3f] %vm631, %v1857
      %1890 = vst.msk [vmem:[#allocation2 + $0xb2] sm:$0xff] %vm180, %v1858
      %1891 = vst.msk [vmem:[#allocation2 + $0xba] sm:$0x3f] %vm631, %v1859
      %1892 = vst.msk [vmem:[#allocation2 + $0xc2] sm:$0xff] %vm180, %v1860
      %1893 = vst.msk [vmem:[#allocation2 + $0xca] sm:$0x3f] %vm631, %v1861
      %1894 = vst.msk [vmem:[#allocation2 + $0xd2] sm:$0xff] %vm180, %v1862
      %1895 = vst.msk [vmem:[#allocation2 + $0xda] sm:$0x3f] %vm631, %v1863
      %1896 = vst.msk [vmem:[#allocation2 + $0xe2] sm:$0xff] %vm180, %v1864
      %1897 = vst.msk [vmem:[#allocation2 + $0xea] sm:$0x3f] %vm631, %v1865
      %1898 = vst.msk [vmem:[#allocation2 + $0xf2] sm:$0xff] %vm180, %v1866
      %1899 = vst.msk [vmem:[#allocation2 + $0xfa] sm:$0x3f] %vm631, %v1867
      %v1900 = vld [vmem:[#allocation2] sm:$0xff]
      %v1901 = vld [vmem:[#allocation2 + $0x8] sm:$0xff]
      %v1902 = vld [vmem:[#allocation2 + $0x10] sm:$0xff]
      %v1903 = vld [vmem:[#allocation2 + $0x18] sm:$0xff]
      %v1904 = vld [vmem:[#allocation2 + $0x20] sm:$0xff]
      %v1905 = vld [vmem:[#allocation2 + $0x28] sm:$0xff]
      %v1906 = vld [vmem:[#allocation2 + $0x30] sm:$0xff]
      %v1907 = vld [vmem:[#allocation2 + $0x38] sm:$0xff]
      %v1908 = vld [vmem:[#allocation2 + $0x40] sm:$0xff]
      %v1909 = vld [vmem:[#allocation2 + $0x48] sm:$0xff]
      %v1910 = vld [vmem:[#allocation2 + $0x50] sm:$0xff]
      %v1911 = vld [vmem:[#allocation2 + $0x58] sm:$0xff]
      %v1912 = vld [vmem:[#allocation2 + $0x60] sm:$0xff]
      %v1913 = vld [vmem:[#allocation2 + $0x68] sm:$0xff]
      %v1914 = vld [vmem:[#allocation2 + $0x70] sm:$0xff]
      %v1915 = vld [vmem:[#allocation2 + $0x78] sm:$0xff]
      %v1916 = vld [vmem:[#allocation2 + $0x80] sm:$0xff]
      %v1917 = vld [vmem:[#allocation2 + $0x88] sm:$0xff]
      %v1918 = vld [vmem:[#allocation2 + $0x90] sm:$0xff]
      %v1919 = vld [vmem:[#allocation2 + $0x98] sm:$0xff]
      %v1920 = vld [vmem:[#allocation2 + $0xa0] sm:$0xff]
      %v1921 = vld [vmem:[#allocation2 + $0xa8] sm:$0xff]
      %v1922 = vld [vmem:[#allocation2 + $0xb0] sm:$0xff]
      %v1923 = vld [vmem:[#allocation2 + $0xb8] sm:$0xff]
      %v1924 = vld [vmem:[#allocation2 + $0xc0] sm:$0xff]
      %v1925 = vld [vmem:[#allocation2 + $0xc8] sm:$0xff]
      %v1926 = vld [vmem:[#allocation2 + $0xd0] sm:$0xff]
      %v1927 = vld [vmem:[#allocation2 + $0xd8] sm:$0xff]
      %v1928 = vld [vmem:[#allocation2 + $0xe0] sm:$0xff]
      %v1929 = vld [vmem:[#allocation2 + $0xe8] sm:$0xff]
      %v1930 = vld [vmem:[#allocation2 + $0xf0] sm:$0xff]
      %v1931 = vld [vmem:[#allocation2 + $0xf8] sm:$0xff]
      %s1932 = scalar_lea.vmem %s147, 512
      %1933 = vst.msk [vmem:[%s1932] sm:$0xff] %vm180, %v1900
      %1934 = vst.msk [vmem:[%s1932 + $0x8] sm:$0xff] %vm180, %v1901
      %1935 = vst.msk [vmem:[%s1932 + $0x10] sm:$0xff] %vm180, %v1902
      %1936 = vst.msk [vmem:[%s1932 + $0x18] sm:$0xff] %vm180, %v1903
      %1937 = vst.msk [vmem:[%s1932 + $0x20] sm:$0xff] %vm180, %v1904
      %1938 = vst.msk [vmem:[%s1932 + $0x28] sm:$0xff] %vm180, %v1905
      %1939 = vst.msk [vmem:[%s1932 + $0x30] sm:$0xff] %vm180, %v1906
      %1940 = vst.msk [vmem:[%s1932 + $0x38] sm:$0xff] %vm180, %v1907
      %1941 = vst.msk [vmem:[%s1932 + $0x40] sm:$0xff] %vm180, %v1908
      %1942 = vst.msk [vmem:[%s1932 + $0x48] sm:$0xff] %vm180, %v1909
      %1943 = vst.msk [vmem:[%s1932 + $0x50] sm:$0xff] %vm180, %v1910
      %1944 = vst.msk [vmem:[%s1932 + $0x58] sm:$0xff] %vm180, %v1911
      %1945 = vst.msk [vmem:[%s1932 + $0x60] sm:$0xff] %vm180, %v1912
      %1946 = vst.msk [vmem:[%s1932 + $0x68] sm:$0xff] %vm180, %v1913
      %1947 = vst.msk [vmem:[%s1932 + $0x70] sm:$0xff] %vm180, %v1914
      %1948 = vst.msk [vmem:[%s1932 + $0x78] sm:$0xff] %vm180, %v1915
      %1949 = vst.msk [vmem:[%s1932 + $0x80] sm:$0xff] %vm180, %v1916
      %1950 = vst.msk [vmem:[%s1932 + $0x88] sm:$0xff] %vm180, %v1917
      %1951 = vst.msk [vmem:[%s1932 + $0x90] sm:$0xff] %vm180, %v1918
      %1952 = vst.msk [vmem:[%s1932 + $0x98] sm:$0xff] %vm180, %v1919
      %1953 = vst.msk [vmem:[%s1932 + $0xa0] sm:$0xff] %vm180, %v1920
      %1954 = vst.msk [vmem:[%s1932 + $0xa8] sm:$0xff] %vm180, %v1921
      %1955 = vst.msk [vmem:[%s1932 + $0xb0] sm:$0xff] %vm180, %v1922
      %1956 = vst.msk [vmem:[%s1932 + $0xb8] sm:$0xff] %vm180, %v1923
      %1957 = vst.msk [vmem:[%s1932 + $0xc0] sm:$0xff] %vm180, %v1924
      %1958 = vst.msk [vmem:[%s1932 + $0xc8] sm:$0xff] %vm180, %v1925
      %1959 = vst.msk [vmem:[%s1932 + $0xd0] sm:$0xff] %vm180, %v1926
      %1960 = vst.msk [vmem:[%s1932 + $0xd8] sm:$0xff] %vm180, %v1927
      %1961 = vst.msk [vmem:[%s1932 + $0xe0] sm:$0xff] %vm180, %v1928
      %1962 = vst.msk [vmem:[%s1932 + $0xe8] sm:$0xff] %vm180, %v1929
      %1963 = vst.msk [vmem:[%s1932 + $0xf0] sm:$0xff] %vm180, %v1930
      %1964 = vst.msk [vmem:[%s1932 + $0xf8] sm:$0xff] %vm180, %v1931
      %v1965 = vld [vmem:[%s1932] sm:$0xff]
      %v1966 = vld [vmem:[%s1932 + $0x8] sm:$0xff]
      %v1967 = vld [vmem:[%s1932 + $0x10] sm:$0xff]
      %v1968 = vld [vmem:[%s1932 + $0x18] sm:$0xff]
      %v1969 = vld [vmem:[%s1932 + $0x20] sm:$0xff]
      %v1970 = vld [vmem:[%s1932 + $0x28] sm:$0xff]
      %v1971 = vld [vmem:[%s1932 + $0x30] sm:$0xff]
      %v1972 = vld [vmem:[%s1932 + $0x38] sm:$0xff]
      %v1973 = vld [vmem:[%s1932 + $0x40] sm:$0xff]
      %v1974 = vld [vmem:[%s1932 + $0x48] sm:$0xff]
      %v1975 = vld [vmem:[%s1932 + $0x50] sm:$0xff]
      %v1976 = vld [vmem:[%s1932 + $0x58] sm:$0xff]
      %v1977 = vld [vmem:[%s1932 + $0x60] sm:$0xff]
      %v1978 = vld [vmem:[%s1932 + $0x68] sm:$0xff]
      %v1979 = vld [vmem:[%s1932 + $0x70] sm:$0xff]
      %v1980 = vld [vmem:[%s1932 + $0x78] sm:$0xff]
      %v1981 = vld [vmem:[%s1932 + $0x80] sm:$0xff]
      %v1982 = vld [vmem:[%s1932 + $0x88] sm:$0xff]
      %v1983 = vld [vmem:[%s1932 + $0x90] sm:$0xff]
      %v1984 = vld [vmem:[%s1932 + $0x98] sm:$0xff]
      %v1985 = vld [vmem:[%s1932 + $0xa0] sm:$0xff]
      %v1986 = vld [vmem:[%s1932 + $0xa8] sm:$0xff]
      %v1987 = vld [vmem:[%s1932 + $0xb0] sm:$0xff]
      %v1988 = vld [vmem:[%s1932 + $0xb8] sm:$0xff]
      %v1989 = vld [vmem:[%s1932 + $0xc0] sm:$0xff]
      %v1990 = vld [vmem:[%s1932 + $0xc8] sm:$0xff]
      %v1991 = vld [vmem:[%s1932 + $0xd0] sm:$0xff]
      %v1992 = vld [vmem:[%s1932 + $0xd8] sm:$0xff]
      %v1993 = vld [vmem:[%s1932 + $0xe0] sm:$0xff]
      %v1994 = vld [vmem:[%s1932 + $0xe8] sm:$0xff]
      %v1995 = vld [vmem:[%s886] sm:$0xff]
      %v1996 = vld [vmem:[%s886 + $0x8] sm:$0xff]
      %v1997 = vld [vmem:[%s886 + $0x10] sm:$0xff]
      %v1998 = vld [vmem:[%s886 + $0x18] sm:$0xff]
      %v1999 = vld [vmem:[%s886 + $0x20] sm:$0xff]
      %v2000 = vld [vmem:[%s886 + $0x28] sm:$0xff]
      %v2001 = vld [vmem:[%s886 + $0x30] sm:$0xff]
      %v2002 = vld [vmem:[%s886 + $0x38] sm:$0xff]
      %v2003 = vld [vmem:[%s886 + $0x40] sm:$0xff]
      %v2004 = vld [vmem:[%s886 + $0x48] sm:$0xff]
      %v2005 = vld [vmem:[%s886 + $0x50] sm:$0xff]
      %v2006 = vld [vmem:[%s886 + $0x58] sm:$0xff]
      %v2007 = vld [vmem:[%s886 + $0x60] sm:$0xff]
      %v2008 = vld [vmem:[%s886 + $0x68] sm:$0xff]
      %v2009 = vld [vmem:[%s886 + $0x70] sm:$0xff]
      %v2010 = vld [vmem:[%s886 + $0x78] sm:$0xff]
      %v2011 = vld [vmem:[%s886 + $0x80] sm:$0xff]
      %v2012 = vld [vmem:[%s886 + $0x88] sm:$0xff]
      %v2013 = vld [vmem:[%s886 + $0x90] sm:$0xff]
      %v2014 = vld [vmem:[%s886 + $0x98] sm:$0xff]
      %v2015 = vld [vmem:[%s886 + $0xa0] sm:$0xff]
      %v2016 = vld [vmem:[%s886 + $0xa8] sm:$0xff]
      %v2017 = vld [vmem:[%s886 + $0xb0] sm:$0xff]
      %v2018 = vld [vmem:[%s886 + $0xb8] sm:$0xff]
      %v2019 = vld [vmem:[%s886 + $0xc0] sm:$0xff]
      %v2020 = vld [vmem:[%s886 + $0xc8] sm:$0xff]
      %v2021 = vld [vmem:[%s886 + $0xd0] sm:$0xff]
      %v2022 = vld [vmem:[%s886 + $0xd8] sm:$0xff]
      %v2023 = vld [vmem:[%s886 + $0xe0] sm:$0xff]
      %v2024 = vld [vmem:[%s886 + $0xe8] sm:$0xff]
      %v2025 = vmax.f32 %v1965, %v1995
      %v2026 = vmax.f32 %v1966, %v1996
      %v2027 = vmax.f32 %v1967, %v1997
      %v2028 = vmax.f32 %v1968, %v1998
      %v2029 = vmax.f32 %v1969, %v1999
      %v2030 = vmax.f32 %v1970, %v2000
      %v2031 = vmax.f32 %v1971, %v2001
      %v2032 = vmax.f32 %v1972, %v2002
      %v2033 = vmax.f32 %v1973, %v2003
      %v2034 = vmax.f32 %v1974, %v2004
      %v2035 = vmax.f32 %v1975, %v2005
      %v2036 = vmax.f32 %v1976, %v2006
      %v2037 = vmax.f32 %v1977, %v2007
      %v2038 = vmax.f32 %v1978, %v2008
      %v2039 = vmax.f32 %v1979, %v2009
      %v2040 = vmax.f32 %v1980, %v2010
      %v2041 = vmax.f32 %v1981, %v2011
      %v2042 = vmax.f32 %v1982, %v2012
      %v2043 = vmax.f32 %v1983, %v2013
      %v2044 = vmax.f32 %v1984, %v2014
      %v2045 = vmax.f32 %v1985, %v2015
      %v2046 = vmax.f32 %v1986, %v2016
      %v2047 = vmax.f32 %v1987, %v2017
      %v2048 = vmax.f32 %v1988, %v2018
      %v2049 = vmax.f32 %v1989, %v2019
      %v2050 = vmax.f32 %v1990, %v2020
      %v2051 = vmax.f32 %v1991, %v2021
      %v2052 = vmax.f32 %v1992, %v2022
      %v2053 = vmax.f32 %v1993, %v2023
      %v2054 = vmax.f32 %v1994, %v2024
      %2055 = vst.msk [vmem:[%s1932] sm:$0xff] %vm180, %v2025
      %2056 = vst.msk [vmem:[%s1932 + $0x8] sm:$0xff] %vm180, %v2026
      %2057 = vst.msk [vmem:[%s1932 + $0x10] sm:$0xff] %vm180, %v2027
      %2058 = vst.msk [vmem:[%s1932 + $0x18] sm:$0xff] %vm180, %v2028
      %2059 = vst.msk [vmem:[%s1932 + $0x20] sm:$0xff] %vm180, %v2029
      %2060 = vst.msk [vmem:[%s1932 + $0x28] sm:$0xff] %vm180, %v2030
      %2061 = vst.msk [vmem:[%s1932 + $0x30] sm:$0xff] %vm180, %v2031
      %2062 = vst.msk [vmem:[%s1932 + $0x38] sm:$0xff] %vm180, %v2032
      %2063 = vst.msk [vmem:[%s1932 + $0x40] sm:$0xff] %vm180, %v2033
      %2064 = vst.msk [vmem:[%s1932 + $0x48] sm:$0xff] %vm180, %v2034
      %2065 = vst.msk [vmem:[%s1932 + $0x50] sm:$0xff] %vm180, %v2035
      %2066 = vst.msk [vmem:[%s1932 + $0x58] sm:$0xff] %vm180, %v2036
      %2067 = vst.msk [vmem:[%s1932 + $0x60] sm:$0xff] %vm180, %v2037
      %2068 = vst.msk [vmem:[%s1932 + $0x68] sm:$0xff] %vm180, %v2038
      %2069 = vst.msk [vmem:[%s1932 + $0x70] sm:$0xff] %vm180, %v2039
      %2070 = vst.msk [vmem:[%s1932 + $0x78] sm:$0xff] %vm180, %v2040
      %2071 = vst.msk [vmem:[%s1932 + $0x80] sm:$0xff] %vm180, %v2041
      %2072 = vst.msk [vmem:[%s1932 + $0x88] sm:$0xff] %vm180, %v2042
      %2073 = vst.msk [vmem:[%s1932 + $0x90] sm:$0xff] %vm180, %v2043
      %2074 = vst.msk [vmem:[%s1932 + $0x98] sm:$0xff] %vm180, %v2044
      %2075 = vst.msk [vmem:[%s1932 + $0xa0] sm:$0xff] %vm180, %v2045
      %2076 = vst.msk [vmem:[%s1932 + $0xa8] sm:$0xff] %vm180, %v2046
      %2077 = vst.msk [vmem:[%s1932 + $0xb0] sm:$0xff] %vm180, %v2047
      %2078 = vst.msk [vmem:[%s1932 + $0xb8] sm:$0xff] %vm180, %v2048
      %2079 = vst.msk [vmem:[%s1932 + $0xc0] sm:$0xff] %vm180, %v2049
      %2080 = vst.msk [vmem:[%s1932 + $0xc8] sm:$0xff] %vm180, %v2050
      %2081 = vst.msk [vmem:[%s1932 + $0xd0] sm:$0xff] %vm180, %v2051
      %2082 = vst.msk [vmem:[%s1932 + $0xd8] sm:$0xff] %vm180, %v2052
      %2083 = vst.msk [vmem:[%s1932 + $0xe0] sm:$0xff] %vm180, %v2053
      %2084 = vst.msk [vmem:[%s1932 + $0xe8] sm:$0xff] %vm180, %v2054
      %s2085 = scalar_lea.vmem %s147, 528
      %v2086 = vld [vmem:[%s2085] sm:$0xff]
      %v2087 = vld [vmem:[%s2085 + $0x8] sm:$0xff]
      %v2088 = vld [vmem:[%s2085 + $0x10] sm:$0xff]
      %v2089 = vld [vmem:[%s2085 + $0x18] sm:$0xff]
      %v2090 = vld [vmem:[%s2085 + $0x20] sm:$0xff]
      %v2091 = vld [vmem:[%s2085 + $0x28] sm:$0xff]
      %v2092 = vld [vmem:[%s2085 + $0x30] sm:$0xff]
      %v2093 = vld [vmem:[%s2085 + $0x38] sm:$0xff]
      %v2094 = vld [vmem:[%s2085 + $0x40] sm:$0xff]
      %v2095 = vld [vmem:[%s2085 + $0x48] sm:$0xff]
      %v2096 = vld [vmem:[%s2085 + $0x50] sm:$0xff]
      %v2097 = vld [vmem:[%s2085 + $0x58] sm:$0xff]
      %v2098 = vld [vmem:[%s2085 + $0x60] sm:$0xff]
      %v2099 = vld [vmem:[%s2085 + $0x68] sm:$0xff]
      %v2100 = vld [vmem:[%s2085 + $0x70] sm:$0xff]
      %v2101 = vld [vmem:[%s2085 + $0x78] sm:$0xff]
      %v2102 = vld [vmem:[%s2085 + $0x80] sm:$0xff]
      %v2103 = vld [vmem:[%s2085 + $0x88] sm:$0xff]
      %v2104 = vld [vmem:[%s2085 + $0x90] sm:$0xff]
      %v2105 = vld [vmem:[%s2085 + $0x98] sm:$0xff]
      %v2106 = vld [vmem:[%s2085 + $0xa0] sm:$0xff]
      %v2107 = vld [vmem:[%s2085 + $0xa8] sm:$0xff]
      %v2108 = vld [vmem:[%s2085 + $0xb0] sm:$0xff]
      %v2109 = vld [vmem:[%s2085 + $0xb8] sm:$0xff]
      %v2110 = vld [vmem:[%s2085 + $0xc0] sm:$0xff]
      %v2111 = vld [vmem:[%s2085 + $0xc8] sm:$0xff]
      %v2112 = vld [vmem:[%s2085 + $0xd0] sm:$0xff]
      %v2113 = vld [vmem:[%s2085 + $0xd8] sm:$0xff]
      %v2114 = vld [vmem:[%s2085 + $0xe0] sm:$0xff]
      %v2115 = vld [vmem:[%s2085 + $0xe8] sm:$0xff]
      %v2116 = vld [vmem:[#allocation2] sm:$0xff]
      %v2117 = vld [vmem:[#allocation2 + $0x8] sm:$0xff]
      %v2118 = vld [vmem:[#allocation2 + $0x10] sm:$0xff]
      %v2119 = vld [vmem:[#allocation2 + $0x18] sm:$0xff]
      %v2120 = vld [vmem:[#allocation2 + $0x20] sm:$0xff]
      %v2121 = vld [vmem:[#allocation2 + $0x28] sm:$0xff]
      %v2122 = vld [vmem:[#allocation2 + $0x30] sm:$0xff]
      %v2123 = vld [vmem:[#allocation2 + $0x38] sm:$0xff]
      %v2124 = vld [vmem:[#allocation2 + $0x40] sm:$0xff]
      %v2125 = vld [vmem:[#allocation2 + $0x48] sm:$0xff]
      %v2126 = vld [vmem:[#allocation2 + $0x50] sm:$0xff]
      %v2127 = vld [vmem:[#allocation2 + $0x58] sm:$0xff]
      %v2128 = vld [vmem:[#allocation2 + $0x60] sm:$0xff]
      %v2129 = vld [vmem:[#allocation2 + $0x68] sm:$0xff]
      %v2130 = vld [vmem:[#allocation2 + $0x70] sm:$0xff]
      %v2131 = vld [vmem:[#allocation2 + $0x78] sm:$0xff]
      %v2132 = vld [vmem:[#allocation2 + $0x80] sm:$0xff]
      %v2133 = vld [vmem:[#allocation2 + $0x88] sm:$0xff]
      %v2134 = vld [vmem:[#allocation2 + $0x90] sm:$0xff]
      %v2135 = vld [vmem:[#allocation2 + $0x98] sm:$0xff]
      %v2136 = vld [vmem:[#allocation2 + $0xa0] sm:$0xff]
      %v2137 = vld [vmem:[#allocation2 + $0xa8] sm:$0xff]
      %v2138 = vld [vmem:[#allocation2 + $0xb0] sm:$0xff]
      %v2139 = vld [vmem:[#allocation2 + $0xb8] sm:$0xff]
      %v2140 = vld [vmem:[#allocation2 + $0xc0] sm:$0xff]
      %v2141 = vld [vmem:[#allocation2 + $0xc8] sm:$0xff]
      %v2142 = vld [vmem:[#allocation2 + $0xd0] sm:$0xff]
      %v2143 = vld [vmem:[#allocation2 + $0xd8] sm:$0xff]
      %v2144 = vld [vmem:[#allocation2 + $0xe0] sm:$0xff]
      %v2145 = vld [vmem:[#allocation2 + $0xe8] sm:$0xff]
      %v2146 = vmax.f32 %v2086, %v2116
      %v2147 = vmax.f32 %v2087, %v2117
      %v2148 = vmax.f32 %v2088, %v2118
      %v2149 = vmax.f32 %v2089, %v2119
      %v2150 = vmax.f32 %v2090, %v2120
      %v2151 = vmax.f32 %v2091, %v2121
      %v2152 = vmax.f32 %v2092, %v2122
      %v2153 = vmax.f32 %v2093, %v2123
      %v2154 = vmax.f32 %v2094, %v2124
      %v2155 = vmax.f32 %v2095, %v2125
      %v2156 = vmax.f32 %v2096, %v2126
      %v2157 = vmax.f32 %v2097, %v2127
      %v2158 = vmax.f32 %v2098, %v2128
      %v2159 = vmax.f32 %v2099, %v2129
      %v2160 = vmax.f32 %v2100, %v2130
      %v2161 = vmax.f32 %v2101, %v2131
      %v2162 = vmax.f32 %v2102, %v2132
      %v2163 = vmax.f32 %v2103, %v2133
      %v2164 = vmax.f32 %v2104, %v2134
      %v2165 = vmax.f32 %v2105, %v2135
      %v2166 = vmax.f32 %v2106, %v2136
      %v2167 = vmax.f32 %v2107, %v2137
      %v2168 = vmax.f32 %v2108, %v2138
      %v2169 = vmax.f32 %v2109, %v2139
      %v2170 = vmax.f32 %v2110, %v2140
      %v2171 = vmax.f32 %v2111, %v2141
      %v2172 = vmax.f32 %v2112, %v2142
      %v2173 = vmax.f32 %v2113, %v2143
      %v2174 = vmax.f32 %v2114, %v2144
      %v2175 = vmax.f32 %v2115, %v2145
      %2176 = vst.msk [vmem:[%s2085] sm:$0xff] %vm180, %v2146
      %2177 = vst.msk [vmem:[%s2085 + $0x8] sm:$0xff] %vm180, %v2147
      %2178 = vst.msk [vmem:[%s2085 + $0x10] sm:$0xff] %vm180, %v2148
      %2179 = vst.msk [vmem:[%s2085 + $0x18] sm:$0xff] %vm180, %v2149
      %2180 = vst.msk [vmem:[%s2085 + $0x20] sm:$0xff] %vm180, %v2150
      %2181 = vst.msk [vmem:[%s2085 + $0x28] sm:$0xff] %vm180, %v2151
      %2182 = vst.msk [vmem:[%s2085 + $0x30] sm:$0xff] %vm180, %v2152
      %2183 = vst.msk [vmem:[%s2085 + $0x38] sm:$0xff] %vm180, %v2153
      %2184 = vst.msk [vmem:[%s2085 + $0x40] sm:$0xff] %vm180, %v2154
      %2185 = vst.msk [vmem:[%s2085 + $0x48] sm:$0xff] %vm180, %v2155
      %2186 = vst.msk [vmem:[%s2085 + $0x50] sm:$0xff] %vm180, %v2156
      %2187 = vst.msk [vmem:[%s2085 + $0x58] sm:$0xff] %vm180, %v2157
      %2188 = vst.msk [vmem:[%s2085 + $0x60] sm:$0xff] %vm180, %v2158
      %2189 = vst.msk [vmem:[%s2085 + $0x68] sm:$0xff] %vm180, %v2159
      %2190 = vst.msk [vmem:[%s2085 + $0x70] sm:$0xff] %vm180, %v2160
      %2191 = vst.msk [vmem:[%s2085 + $0x78] sm:$0xff] %vm180, %v2161
      %2192 = vst.msk [vmem:[%s2085 + $0x80] sm:$0xff] %vm180, %v2162
      %2193 = vst.msk [vmem:[%s2085 + $0x88] sm:$0xff] %vm180, %v2163
      %2194 = vst.msk [vmem:[%s2085 + $0x90] sm:$0xff] %vm180, %v2164
      %2195 = vst.msk [vmem:[%s2085 + $0x98] sm:$0xff] %vm180, %v2165
      %2196 = vst.msk [vmem:[%s2085 + $0xa0] sm:$0xff] %vm180, %v2166
      %2197 = vst.msk [vmem:[%s2085 + $0xa8] sm:$0xff] %vm180, %v2167
      %2198 = vst.msk [vmem:[%s2085 + $0xb0] sm:$0xff] %vm180, %v2168
      %2199 = vst.msk [vmem:[%s2085 + $0xb8] sm:$0xff] %vm180, %v2169
      %2200 = vst.msk [vmem:[%s2085 + $0xc0] sm:$0xff] %vm180, %v2170
      %2201 = vst.msk [vmem:[%s2085 + $0xc8] sm:$0xff] %vm180, %v2171
      %2202 = vst.msk [vmem:[%s2085 + $0xd0] sm:$0xff] %vm180, %v2172
      %2203 = vst.msk [vmem:[%s2085 + $0xd8] sm:$0xff] %vm180, %v2173
      %2204 = vst.msk [vmem:[%s2085 + $0xe0] sm:$0xff] %vm180, %v2174
      %2205 = vst.msk [vmem:[%s2085 + $0xe8] sm:$0xff] %vm180, %v2175
      %v2206 = vld [vmem:[%s1932] sm:$0xff]
      %v2207 = vld [vmem:[%s1932 + $0x8] sm:$0xff]
      %v2208 = vld [vmem:[%s1932 + $0x10] sm:$0xff]
      %v2209 = vld [vmem:[%s1932 + $0x18] sm:$0xff]
      %v2210 = vld [vmem:[%s1932 + $0x20] sm:$0xff]
      %v2211 = vld [vmem:[%s1932 + $0x28] sm:$0xff]
      %v2212 = vld [vmem:[%s1932 + $0x30] sm:$0xff]
      %v2213 = vld [vmem:[%s1932 + $0x38] sm:$0xff]
      %v2214 = vld [vmem:[%s1932 + $0x40] sm:$0xff]
      %v2215 = vld [vmem:[%s1932 + $0x48] sm:$0xff]
      %v2216 = vld [vmem:[%s1932 + $0x50] sm:$0xff]
      %v2217 = vld [vmem:[%s1932 + $0x58] sm:$0xff]
      %v2218 = vld [vmem:[%s1932 + $0x60] sm:$0xff]
      %v2219 = vld [vmem:[%s1932 + $0x68] sm:$0xff]
      %v2220 = vld [vmem:[%s1932 + $0x70] sm:$0xff]
      %v2221 = vld [vmem:[%s1932 + $0x78] sm:$0xff]
      %v2222 = vld [vmem:[%s1932 + $0x80] sm:$0xff]
      %v2223 = vld [vmem:[%s1932 + $0x88] sm:$0xff]
      %v2224 = vld [vmem:[%s1932 + $0x90] sm:$0xff]
      %v2225 = vld [vmem:[%s1932 + $0x98] sm:$0xff]
      %v2226 = vld [vmem:[%s1932 + $0xa0] sm:$0xff]
      %v2227 = vld [vmem:[%s1932 + $0xa8] sm:$0xff]
      %v2228 = vld [vmem:[%s1932 + $0xb0] sm:$0xff]
      %v2229 = vld [vmem:[%s1932 + $0xb8] sm:$0xff]
      %v2230 = vld [vmem:[%s1932 + $0xc0] sm:$0xff]
      %v2231 = vld [vmem:[%s1932 + $0xc8] sm:$0xff]
      %v2232 = vld [vmem:[%s1932 + $0xd0] sm:$0xff]
      %v2233 = vld [vmem:[%s1932 + $0xd8] sm:$0xff]
      %v2234 = vld [vmem:[%s1126] sm:$0xff]
      %v2235 = vld [vmem:[%s1126 + $0x8] sm:$0xff]
      %v2236 = vld [vmem:[%s1126 + $0x10] sm:$0xff]
      %v2237 = vld [vmem:[%s1126 + $0x18] sm:$0xff]
      %v2238 = vld [vmem:[%s1126 + $0x20] sm:$0xff]
      %v2239 = vld [vmem:[%s1126 + $0x28] sm:$0xff]
      %v2240 = vld [vmem:[%s1126 + $0x30] sm:$0xff]
      %v2241 = vld [vmem:[%s1126 + $0x38] sm:$0xff]
      %v2242 = vld [vmem:[%s1126 + $0x40] sm:$0xff]
      %v2243 = vld [vmem:[%s1126 + $0x48] sm:$0xff]
      %v2244 = vld [vmem:[%s1126 + $0x50] sm:$0xff]
      %v2245 = vld [vmem:[%s1126 + $0x58] sm:$0xff]
      %v2246 = vld [vmem:[%s1126 + $0x60] sm:$0xff]
      %v2247 = vld [vmem:[%s1126 + $0x68] sm:$0xff]
      %v2248 = vld [vmem:[%s1126 + $0x70] sm:$0xff]
      %v2249 = vld [vmem:[%s1126 + $0x78] sm:$0xff]
      %v2250 = vld [vmem:[%s1126 + $0x80] sm:$0xff]
      %v2251 = vld [vmem:[%s1126 + $0x88] sm:$0xff]
      %v2252 = vld [vmem:[%s1126 + $0x90] sm:$0xff]
      %v2253 = vld [vmem:[%s1126 + $0x98] sm:$0xff]
      %v2254 = vld [vmem:[%s1126 + $0xa0] sm:$0xff]
      %v2255 = vld [vmem:[%s1126 + $0xa8] sm:$0xff]
      %v2256 = vld [vmem:[%s1126 + $0xb0] sm:$0xff]
      %v2257 = vld [vmem:[%s1126 + $0xb8] sm:$0xff]
      %v2258 = vld [vmem:[%s1126 + $0xc0] sm:$0xff]
      %v2259 = vld [vmem:[%s1126 + $0xc8] sm:$0xff]
      %v2260 = vld [vmem:[%s1126 + $0xd0] sm:$0xff]
      %v2261 = vld [vmem:[%s1126 + $0xd8] sm:$0xff]
      %v2262 = vmax.f32 %v2206, %v2234
      %v2263 = vmax.f32 %v2207, %v2235
      %v2264 = vmax.f32 %v2208, %v2236
      %v2265 = vmax.f32 %v2209, %v2237
      %v2266 = vmax.f32 %v2210, %v2238
      %v2267 = vmax.f32 %v2211, %v2239
      %v2268 = vmax.f32 %v2212, %v2240
      %v2269 = vmax.f32 %v2213, %v2241
      %v2270 = vmax.f32 %v2214, %v2242
      %v2271 = vmax.f32 %v2215, %v2243
      %v2272 = vmax.f32 %v2216, %v2244
      %v2273 = vmax.f32 %v2217, %v2245
      %v2274 = vmax.f32 %v2218, %v2246
      %v2275 = vmax.f32 %v2219, %v2247
      %v2276 = vmax.f32 %v2220, %v2248
      %v2277 = vmax.f32 %v2221, %v2249
      %v2278 = vmax.f32 %v2222, %v2250
      %v2279 = vmax.f32 %v2223, %v2251
      %v2280 = vmax.f32 %v2224, %v2252
      %v2281 = vmax.f32 %v2225, %v2253
      %v2282 = vmax.f32 %v2226, %v2254
      %v2283 = vmax.f32 %v2227, %v2255
      %v2284 = vmax.f32 %v2228, %v2256
      %v2285 = vmax.f32 %v2229, %v2257
      %v2286 = vmax.f32 %v2230, %v2258
      %v2287 = vmax.f32 %v2231, %v2259
      %v2288 = vmax.f32 %v2232, %v2260
      %v2289 = vmax.f32 %v2233, %v2261
      %2290 = vst.msk [vmem:[%s1932] sm:$0xff] %vm180, %v2262
      %2291 = vst.msk [vmem:[%s1932 + $0x8] sm:$0xff] %vm180, %v2263
      %2292 = vst.msk [vmem:[%s1932 + $0x10] sm:$0xff] %vm180, %v2264
      %2293 = vst.msk [vmem:[%s1932 + $0x18] sm:$0xff] %vm180, %v2265
      %2294 = vst.msk [vmem:[%s1932 + $0x20] sm:$0xff] %vm180, %v2266
      %2295 = vst.msk [vmem:[%s1932 + $0x28] sm:$0xff] %vm180, %v2267
      %2296 = vst.msk [vmem:[%s1932 + $0x30] sm:$0xff] %vm180, %v2268
      %2297 = vst.msk [vmem:[%s1932 + $0x38] sm:$0xff] %vm180, %v2269
      %2298 = vst.msk [vmem:[%s1932 + $0x40] sm:$0xff] %vm180, %v2270
      %2299 = vst.msk [vmem:[%s1932 + $0x48] sm:$0xff] %vm180, %v2271
      %2300 = vst.msk [vmem:[%s1932 + $0x50] sm:$0xff] %vm180, %v2272
      %2301 = vst.msk [vmem:[%s1932 + $0x58] sm:$0xff] %vm180, %v2273
      %2302 = vst.msk [vmem:[%s1932 + $0x60] sm:$0xff] %vm180, %v2274
      %2303 = vst.msk [vmem:[%s1932 + $0x68] sm:$0xff] %vm180, %v2275
      %2304 = vst.msk [vmem:[%s1932 + $0x70] sm:$0xff] %vm180, %v2276
      %2305 = vst.msk [vmem:[%s1932 + $0x78] sm:$0xff] %vm180, %v2277
      %2306 = vst.msk [vmem:[%s1932 + $0x80] sm:$0xff] %vm180, %v2278
      %2307 = vst.msk [vmem:[%s1932 + $0x88] sm:$0xff] %vm180, %v2279
      %2308 = vst.msk [vmem:[%s1932 + $0x90] sm:$0xff] %vm180, %v2280
      %2309 = vst.msk [vmem:[%s1932 + $0x98] sm:$0xff] %vm180, %v2281
      %2310 = vst.msk [vmem:[%s1932 + $0xa0] sm:$0xff] %vm180, %v2282
      %2311 = vst.msk [vmem:[%s1932 + $0xa8] sm:$0xff] %vm180, %v2283
      %2312 = vst.msk [vmem:[%s1932 + $0xb0] sm:$0xff] %vm180, %v2284
      %2313 = vst.msk [vmem:[%s1932 + $0xb8] sm:$0xff] %vm180, %v2285
      %2314 = vst.msk [vmem:[%s1932 + $0xc0] sm:$0xff] %vm180, %v2286
      %2315 = vst.msk [vmem:[%s1932 + $0xc8] sm:$0xff] %vm180, %v2287
      %2316 = vst.msk [vmem:[%s1932 + $0xd0] sm:$0xff] %vm180, %v2288
      %2317 = vst.msk [vmem:[%s1932 + $0xd8] sm:$0xff] %vm180, %v2289
      %s2318 = scalar_lea.vmem %s147, 544
      %v2319 = vld [vmem:[%s2318] sm:$0xff]
      %v2320 = vld [vmem:[%s2318 + $0x8] sm:$0xff]
      %v2321 = vld [vmem:[%s2318 + $0x10] sm:$0xff]
      %v2322 = vld [vmem:[%s2318 + $0x18] sm:$0xff]
      %v2323 = vld [vmem:[%s2318 + $0x20] sm:$0xff]
      %v2324 = vld [vmem:[%s2318 + $0x28] sm:$0xff]
      %v2325 = vld [vmem:[%s2318 + $0x30] sm:$0xff]
      %v2326 = vld [vmem:[%s2318 + $0x38] sm:$0xff]
      %v2327 = vld [vmem:[%s2318 + $0x40] sm:$0xff]
      %v2328 = vld [vmem:[%s2318 + $0x48] sm:$0xff]
      %v2329 = vld [vmem:[%s2318 + $0x50] sm:$0xff]
      %v2330 = vld [vmem:[%s2318 + $0x58] sm:$0xff]
      %v2331 = vld [vmem:[%s2318 + $0x60] sm:$0xff]
      %v2332 = vld [vmem:[%s2318 + $0x68] sm:$0xff]
      %v2333 = vld [vmem:[%s2318 + $0x70] sm:$0xff]
      %v2334 = vld [vmem:[%s2318 + $0x78] sm:$0xff]
      %v2335 = vld [vmem:[%s2318 + $0x80] sm:$0xff]
      %v2336 = vld [vmem:[%s2318 + $0x88] sm:$0xff]
      %v2337 = vld [vmem:[%s2318 + $0x90] sm:$0xff]
      %v2338 = vld [vmem:[%s2318 + $0x98] sm:$0xff]
      %v2339 = vld [vmem:[%s2318 + $0xa0] sm:$0xff]
      %v2340 = vld [vmem:[%s2318 + $0xa8] sm:$0xff]
      %v2341 = vld [vmem:[%s2318 + $0xb0] sm:$0xff]
      %v2342 = vld [vmem:[%s2318 + $0xb8] sm:$0xff]
      %v2343 = vld [vmem:[%s2318 + $0xc0] sm:$0xff]
      %v2344 = vld [vmem:[%s2318 + $0xc8] sm:$0xff]
      %v2345 = vld [vmem:[%s2318 + $0xd0] sm:$0xff]
      %v2346 = vld [vmem:[%s2318 + $0xd8] sm:$0xff]
      %v2347 = vld [vmem:[#allocation2] sm:$0xff]
      %v2348 = vld [vmem:[#allocation2 + $0x8] sm:$0xff]
      %v2349 = vld [vmem:[#allocation2 + $0x10] sm:$0xff]
      %v2350 = vld [vmem:[#allocation2 + $0x18] sm:$0xff]
      %v2351 = vld [vmem:[#allocation2 + $0x20] sm:$0xff]
      %v2352 = vld [vmem:[#allocation2 + $0x28] sm:$0xff]
      %v2353 = vld [vmem:[#allocation2 + $0x30] sm:$0xff]
      %v2354 = vld [vmem:[#allocation2 + $0x38] sm:$0xff]
      %v2355 = vld [vmem:[#allocation2 + $0x40] sm:$0xff]
      %v2356 = vld [vmem:[#allocation2 + $0x48] sm:$0xff]
      %v2357 = vld [vmem:[#allocation2 + $0x50] sm:$0xff]
      %v2358 = vld [vmem:[#allocation2 + $0x58] sm:$0xff]
      %v2359 = vld [vmem:[#allocation2 + $0x60] sm:$0xff]
      %v2360 = vld [vmem:[#allocation2 + $0x68] sm:$0xff]
      %v2361 = vld [vmem:[#allocation2 + $0x70] sm:$0xff]
      %v2362 = vld [vmem:[#allocation2 + $0x78] sm:$0xff]
      %v2363 = vld [vmem:[#allocation2 + $0x80] sm:$0xff]
      %v2364 = vld [vmem:[#allocation2 + $0x88] sm:$0xff]
      %v2365 = vld [vmem:[#allocation2 + $0x90] sm:$0xff]
      %v2366 = vld [vmem:[#allocation2 + $0x98] sm:$0xff]
      %v2367 = vld [vmem:[#allocation2 + $0xa0] sm:$0xff]
      %v2368 = vld [vmem:[#allocation2 + $0xa8] sm:$0xff]
      %v2369 = vld [vmem:[#allocation2 + $0xb0] sm:$0xff]
      %v2370 = vld [vmem:[#allocation2 + $0xb8] sm:$0xff]
      %v2371 = vld [vmem:[#allocation2 + $0xc0] sm:$0xff]
      %v2372 = vld [vmem:[#allocation2 + $0xc8] sm:$0xff]
      %v2373 = vld [vmem:[#allocation2 + $0xd0] sm:$0xff]
      %v2374 = vld [vmem:[#allocation2 + $0xd8] sm:$0xff]
      %v2375 = vmax.f32 %v2319, %v2347
      %v2376 = vmax.f32 %v2320, %v2348
      %v2377 = vmax.f32 %v2321, %v2349
      %v2378 = vmax.f32 %v2322, %v2350
      %v2379 = vmax.f32 %v2323, %v2351
      %v2380 = vmax.f32 %v2324, %v2352
      %v2381 = vmax.f32 %v2325, %v2353
      %v2382 = vmax.f32 %v2326, %v2354
      %v2383 = vmax.f32 %v2327, %v2355
      %v2384 = vmax.f32 %v2328, %v2356
      %v2385 = vmax.f32 %v2329, %v2357
      %v2386 = vmax.f32 %v2330, %v2358
      %v2387 = vmax.f32 %v2331, %v2359
      %v2388 = vmax.f32 %v2332, %v2360
      %v2389 = vmax.f32 %v2333, %v2361
      %v2390 = vmax.f32 %v2334, %v2362
      %v2391 = vmax.f32 %v2335, %v2363
      %v2392 = vmax.f32 %v2336, %v2364
      %v2393 = vmax.f32 %v2337, %v2365
      %v2394 = vmax.f32 %v2338, %v2366
      %v2395 = vmax.f32 %v2339, %v2367
      %v2396 = vmax.f32 %v2340, %v2368
      %v2397 = vmax.f32 %v2341, %v2369
      %v2398 = vmax.f32 %v2342, %v2370
      %v2399 = vmax.f32 %v2343, %v2371
      %v2400 = vmax.f32 %v2344, %v2372
      %v2401 = vmax.f32 %v2345, %v2373
      %v2402 = vmax.f32 %v2346, %v2374
      %2403 = vst.msk [vmem:[%s2318] sm:$0xff] %vm180, %v2375
      %2404 = vst.msk [vmem:[%s2318 + $0x8] sm:$0xff] %vm180, %v2376
      %2405 = vst.msk [vmem:[%s2318 + $0x10] sm:$0xff] %vm180, %v2377
      %2406 = vst.msk [vmem:[%s2318 + $0x18] sm:$0xff] %vm180, %v2378
      %2407 = vst.msk [vmem:[%s2318 + $0x20] sm:$0xff] %vm180, %v2379
      %2408 = vst.msk [vmem:[%s2318 + $0x28] sm:$0xff] %vm180, %v2380
      %2409 = vst.msk [vmem:[%s2318 + $0x30] sm:$0xff] %vm180, %v2381
      %2410 = vst.msk [vmem:[%s2318 + $0x38] sm:$0xff] %vm180, %v2382
      %2411 = vst.msk [vmem:[%s2318 + $0x40] sm:$0xff] %vm180, %v2383
      %2412 = vst.msk [vmem:[%s2318 + $0x48] sm:$0xff] %vm180, %v2384
      %2413 = vst.msk [vmem:[%s2318 + $0x50] sm:$0xff] %vm180, %v2385
      %2414 = vst.msk [vmem:[%s2318 + $0x58] sm:$0xff] %vm180, %v2386
      %2415 = vst.msk [vmem:[%s2318 + $0x60] sm:$0xff] %vm180, %v2387
      %2416 = vst.msk [vmem:[%s2318 + $0x68] sm:$0xff] %vm180, %v2388
      %2417 = vst.msk [vmem:[%s2318 + $0x70] sm:$0xff] %vm180, %v2389
      %2418 = vst.msk [vmem:[%s2318 + $0x78] sm:$0xff] %vm180, %v2390
      %2419 = vst.msk [vmem:[%s2318 + $0x80] sm:$0xff] %vm180, %v2391
      %2420 = vst.msk [vmem:[%s2318 + $0x88] sm:$0xff] %vm180, %v2392
      %2421 = vst.msk [vmem:[%s2318 + $0x90] sm:$0xff] %vm180, %v2393
      %2422 = vst.msk [vmem:[%s2318 + $0x98] sm:$0xff] %vm180, %v2394
      %2423 = vst.msk [vmem:[%s2318 + $0xa0] sm:$0xff] %vm180, %v2395
      %2424 = vst.msk [vmem:[%s2318 + $0xa8] sm:$0xff] %vm180, %v2396
      %2425 = vst.msk [vmem:[%s2318 + $0xb0] sm:$0xff] %vm180, %v2397
      %2426 = vst.msk [vmem:[%s2318 + $0xb8] sm:$0xff] %vm180, %v2398
      %2427 = vst.msk [vmem:[%s2318 + $0xc0] sm:$0xff] %vm180, %v2399
      %2428 = vst.msk [vmem:[%s2318 + $0xc8] sm:$0xff] %vm180, %v2400
      %2429 = vst.msk [vmem:[%s2318 + $0xd0] sm:$0xff] %vm180, %v2401
      %2430 = vst.msk [vmem:[%s2318 + $0xd8] sm:$0xff] %vm180, %v2402
      %v2431 = vld [vmem:[%s1932] sm:$0xff]
      %v2432 = vld [vmem:[%s1932 + $0x8] sm:$0xff]
      %v2433 = vld [vmem:[%s1932 + $0x10] sm:$0xff]
      %v2434 = vld [vmem:[%s1932 + $0x18] sm:$0xff]
      %v2435 = vld [vmem:[%s1932 + $0x20] sm:$0xff]
      %v2436 = vld [vmem:[%s1932 + $0x28] sm:$0xff]
      %v2437 = vld [vmem:[%s1932 + $0x30] sm:$0xff]
      %v2438 = vld [vmem:[%s1932 + $0x38] sm:$0xff]
      %v2439 = vld [vmem:[%s1932 + $0x40] sm:$0xff]
      %v2440 = vld [vmem:[%s1932 + $0x48] sm:$0xff]
      %v2441 = vld [vmem:[%s1932 + $0x50] sm:$0xff]
      %v2442 = vld [vmem:[%s1932 + $0x58] sm:$0xff]
      %v2443 = vld [vmem:[%s1932 + $0x60] sm:$0xff]
      %v2444 = vld [vmem:[%s1932 + $0x68] sm:$0xff]
      %v2445 = vld [vmem:[%s1932 + $0x70] sm:$0xff]
      %v2446 = vld [vmem:[%s1932 + $0x78] sm:$0xff]
      %v2447 = vld [vmem:[%s1932 + $0x80] sm:$0xff]
      %v2448 = vld [vmem:[%s1932 + $0x88] sm:$0xff]
      %v2449 = vld [vmem:[%s1932 + $0x90] sm:$0xff]
      %v2450 = vld [vmem:[%s1932 + $0x98] sm:$0xff]
      %v2451 = vld [vmem:[%s1932 + $0xa0] sm:$0xff]
      %v2452 = vld [vmem:[%s1932 + $0xa8] sm:$0xff]
      %v2453 = vld [vmem:[%s1932 + $0xb0] sm:$0xff]
      %v2454 = vld [vmem:[%s1932 + $0xb8] sm:$0xff]
      %v2455 = vld [vmem:[%s1932 + $0xc0] sm:$0xff]
      %v2456 = vld [vmem:[%s1932 + $0xc8] sm:$0xff]
      %v2457 = vld [vmem:[%s1932 + $0xd0] sm:$0xff]
      %v2458 = vld [vmem:[%s1932 + $0xd8] sm:$0xff]
      %v2459 = vld [vmem:[%s1932 + $0xe0] sm:$0xff]
      %v2460 = vld [vmem:[%s1932 + $0xe8] sm:$0xff]
      %v2461 = vld [vmem:[%s1932 + $0xf0] sm:$0xff]
      %v2462 = vld [vmem:[%s1932 + $0xf8] sm:$0xff]
      %2463 = vst.msk [vmem:[#allocation2] sm:$0xff] %vm180, %v2431
      %2464 = vst.msk [vmem:[#allocation2 + $0x8] sm:$0xff] %vm180, %v2432
      %2465 = vst.msk [vmem:[#allocation2 + $0x10] sm:$0xff] %vm180, %v2433
      %2466 = vst.msk [vmem:[#allocation2 + $0x18] sm:$0xff] %vm180, %v2434
      %2467 = vst.msk [vmem:[#allocation2 + $0x20] sm:$0xff] %vm180, %v2435
      %2468 = vst.msk [vmem:[#allocation2 + $0x28] sm:$0xff] %vm180, %v2436
      %2469 = vst.msk [vmem:[#allocation2 + $0x30] sm:$0xff] %vm180, %v2437
      %2470 = vst.msk [vmem:[#allocation2 + $0x38] sm:$0xff] %vm180, %v2438
      %2471 = vst.msk [vmem:[#allocation2 + $0x40] sm:$0xff] %vm180, %v2439
      %2472 = vst.msk [vmem:[#allocation2 + $0x48] sm:$0xff] %vm180, %v2440
      %2473 = vst.msk [vmem:[#allocation2 + $0x50] sm:$0xff] %vm180, %v2441
      %2474 = vst.msk [vmem:[#allocation2 + $0x58] sm:$0xff] %vm180, %v2442
      %2475 = vst.msk [vmem:[#allocation2 + $0x60] sm:$0xff] %vm180, %v2443
      %2476 = vst.msk [vmem:[#allocation2 + $0x68] sm:$0xff] %vm180, %v2444
      %2477 = vst.msk [vmem:[#allocation2 + $0x70] sm:$0xff] %vm180, %v2445
      %2478 = vst.msk [vmem:[#allocation2 + $0x78] sm:$0xff] %vm180, %v2446
      %2479 = vst.msk [vmem:[#allocation2 + $0x80] sm:$0xff] %vm180, %v2447
      %2480 = vst.msk [vmem:[#allocation2 + $0x88] sm:$0xff] %vm180, %v2448
      %2481 = vst.msk [vmem:[#allocation2 + $0x90] sm:$0xff] %vm180, %v2449
      %2482 = vst.msk [vmem:[#allocation2 + $0x98] sm:$0xff] %vm180, %v2450
      %2483 = vst.msk [vmem:[#allocation2 + $0xa0] sm:$0xff] %vm180, %v2451
      %2484 = vst.msk [vmem:[#allocation2 + $0xa8] sm:$0xff] %vm180, %v2452
      %2485 = vst.msk [vmem:[#allocation2 + $0xb0] sm:$0xff] %vm180, %v2453
      %2486 = vst.msk [vmem:[#allocation2 + $0xb8] sm:$0xff] %vm180, %v2454
      %2487 = vst.msk [vmem:[#allocation2 + $0xc0] sm:$0xff] %vm180, %v2455
      %2488 = vst.msk [vmem:[#allocation2 + $0xc8] sm:$0xff] %vm180, %v2456
      %2489 = vst.msk [vmem:[#allocation2 + $0xd0] sm:$0xff] %vm180, %v2457
      %2490 = vst.msk [vmem:[#allocation2 + $0xd8] sm:$0xff] %vm180, %v2458
      %2491 = vst.msk [vmem:[#allocation2 + $0xe0] sm:$0xff] %vm180, %v2459
      %2492 = vst.msk [vmem:[#allocation2 + $0xe8] sm:$0xff] %vm180, %v2460
      %2493 = vst.msk [vmem:[#allocation2 + $0xf0] sm:$0xff] %vm180, %v2461
      %2494 = vst.msk [vmem:[#allocation2 + $0xf8] sm:$0xff] %vm180, %v2462
      %v2495 = vld [vmem:[#allocation2] sm:$0xff]
      %v2496 = vld [vmem:[#allocation2 + $0x8] sm:$0x7f]
      %v2497 = vld [vmem:[#allocation2 + $0x10] sm:$0xff]
      %v2498 = vld [vmem:[#allocation2 + $0x18] sm:$0x7f]
      %v2499 = vld [vmem:[#allocation2 + $0x20] sm:$0xff]
      %v2500 = vld [vmem:[#allocation2 + $0x28] sm:$0x7f]
      %v2501 = vld [vmem:[#allocation2 + $0x30] sm:$0xff]
      %v2502 = vld [vmem:[#allocation2 + $0x38] sm:$0x7f]
      %v2503 = vld [vmem:[#allocation2 + $0x40] sm:$0xff]
      %v2504 = vld [vmem:[#allocation2 + $0x48] sm:$0x7f]
      %v2505 = vld [vmem:[#allocation2 + $0x50] sm:$0xff]
      %v2506 = vld [vmem:[#allocation2 + $0x58] sm:$0x7f]
      %v2507 = vld [vmem:[#allocation2 + $0x60] sm:$0xff]
      %v2508 = vld [vmem:[#allocation2 + $0x68] sm:$0x7f]
      %v2509 = vld [vmem:[#allocation2 + $0x70] sm:$0xff]
      %v2510 = vld [vmem:[#allocation2 + $0x78] sm:$0x7f]
      %v2511 = vld [vmem:[#allocation2 + $0x80] sm:$0xff]
      %v2512 = vld [vmem:[#allocation2 + $0x88] sm:$0x7f]
      %v2513 = vld [vmem:[#allocation2 + $0x90] sm:$0xff]
      %v2514 = vld [vmem:[#allocation2 + $0x98] sm:$0x7f]
      %v2515 = vld [vmem:[#allocation2 + $0xa0] sm:$0xff]
      %v2516 = vld [vmem:[#allocation2 + $0xa8] sm:$0x7f]
      %v2517 = vld [vmem:[#allocation2 + $0xb0] sm:$0xff]
      %v2518 = vld [vmem:[#allocation2 + $0xb8] sm:$0x7f]
      %v2519 = vld [vmem:[#allocation2 + $0xc0] sm:$0xff]
      %v2520 = vld [vmem:[#allocation2 + $0xc8] sm:$0x7f]
      %v2521 = vld [vmem:[#allocation2 + $0xd0] sm:$0xff]
      %v2522 = vld [vmem:[#allocation2 + $0xd8] sm:$0x7f]
      %v2523 = vld [vmem:[#allocation2 + $0xe0] sm:$0xff]
      %v2524 = vld [vmem:[#allocation2 + $0xe8] sm:$0x7f]
      %v2525 = vld [vmem:[#allocation2 + $0xf0] sm:$0xff]
      %v2526 = vld [vmem:[#allocation2 + $0xf8] sm:$0x7f]
      %v2527 = vld [vmem:[%s1932 + $0x1] sm:$0xff]
      %v2528 = vld [vmem:[%s1932 + $0x9] sm:$0x7f]
      %v2529 = vld [vmem:[%s1932 + $0x11] sm:$0xff]
      %v2530 = vld [vmem:[%s1932 + $0x19] sm:$0x7f]
      %v2531 = vld [vmem:[%s1932 + $0x21] sm:$0xff]
      %v2532 = vld [vmem:[%s1932 + $0x29] sm:$0x7f]
      %v2533 = vld [vmem:[%s1932 + $0x31] sm:$0xff]
      %v2534 = vld [vmem:[%s1932 + $0x39] sm:$0x7f]
      %v2535 = vld [vmem:[%s1932 + $0x41] sm:$0xff]
      %v2536 = vld [vmem:[%s1932 + $0x49] sm:$0x7f]
      %v2537 = vld [vmem:[%s1932 + $0x51] sm:$0xff]
      %v2538 = vld [vmem:[%s1932 + $0x59] sm:$0x7f]
      %v2539 = vld [vmem:[%s1932 + $0x61] sm:$0xff]
      %v2540 = vld [vmem:[%s1932 + $0x69] sm:$0x7f]
      %v2541 = vld [vmem:[%s1932 + $0x71] sm:$0xff]
      %v2542 = vld [vmem:[%s1932 + $0x79] sm:$0x7f]
      %v2543 = vld [vmem:[%s1932 + $0x81] sm:$0xff]
      %v2544 = vld [vmem:[%s1932 + $0x89] sm:$0x7f]
      %v2545 = vld [vmem:[%s1932 + $0x91] sm:$0xff]
      %v2546 = vld [vmem:[%s1932 + $0x99] sm:$0x7f]
      %v2547 = vld [vmem:[%s1932 + $0xa1] sm:$0xff]
      %v2548 = vld [vmem:[%s1932 + $0xa9] sm:$0x7f]
      %v2549 = vld [vmem:[%s1932 + $0xb1] sm:$0xff]
      %v2550 = vld [vmem:[%s1932 + $0xb9] sm:$0x7f]
      %v2551 = vld [vmem:[%s1932 + $0xc1] sm:$0xff]
      %v2552 = vld [vmem:[%s1932 + $0xc9] sm:$0x7f]
      %v2553 = vld [vmem:[%s1932 + $0xd1] sm:$0xff]
      %v2554 = vld [vmem:[%s1932 + $0xd9] sm:$0x7f]
      %v2555 = vld [vmem:[%s1932 + $0xe1] sm:$0xff]
      %v2556 = vld [vmem:[%s1932 + $0xe9] sm:$0x7f]
      %v2557 = vld [vmem:[%s1932 + $0xf1] sm:$0xff]
      %v2558 = vld [vmem:[%s1932 + $0xf9] sm:$0x7f]
      %v2559 = vmax.f32 %v2495, %v2527
      %v2560 = vmax.f32 %v2496, %v2528
      %v2561 = vmax.f32 %v2497, %v2529
      %v2562 = vmax.f32 %v2498, %v2530
      %v2563 = vmax.f32 %v2499, %v2531
      %v2564 = vmax.f32 %v2500, %v2532
      %v2565 = vmax.f32 %v2501, %v2533
      %v2566 = vmax.f32 %v2502, %v2534
      %v2567 = vmax.f32 %v2503, %v2535
      %v2568 = vmax.f32 %v2504, %v2536
      %v2569 = vmax.f32 %v2505, %v2537
      %v2570 = vmax.f32 %v2506, %v2538
      %v2571 = vmax.f32 %v2507, %v2539
      %v2572 = vmax.f32 %v2508, %v2540
      %v2573 = vmax.f32 %v2509, %v2541
      %v2574 = vmax.f32 %v2510, %v2542
      %v2575 = vmax.f32 %v2511, %v2543
      %v2576 = vmax.f32 %v2512, %v2544
      %v2577 = vmax.f32 %v2513, %v2545
      %v2578 = vmax.f32 %v2514, %v2546
      %v2579 = vmax.f32 %v2515, %v2547
      %v2580 = vmax.f32 %v2516, %v2548
      %v2581 = vmax.f32 %v2517, %v2549
      %v2582 = vmax.f32 %v2518, %v2550
      %v2583 = vmax.f32 %v2519, %v2551
      %v2584 = vmax.f32 %v2520, %v2552
      %v2585 = vmax.f32 %v2521, %v2553
      %v2586 = vmax.f32 %v2522, %v2554
      %v2587 = vmax.f32 %v2523, %v2555
      %v2588 = vmax.f32 %v2524, %v2556
      %v2589 = vmax.f32 %v2525, %v2557
      %v2590 = vmax.f32 %v2526, %v2558
      %2591 = vst.msk [vmem:[#allocation2] sm:$0xff] %vm180, %v2559
      %2592 = vst.msk [vmem:[#allocation2 + $0x8] sm:$0x7f] %vm374, %v2560
      %2593 = vst.msk [vmem:[#allocation2 + $0x10] sm:$0xff] %vm180, %v2561
      %2594 = vst.msk [vmem:[#allocation2 + $0x18] sm:$0x7f] %vm374, %v2562
      %2595 = vst.msk [vmem:[#allocation2 + $0x20] sm:$0xff] %vm180, %v2563
      %2596 = vst.msk [vmem:[#allocation2 + $0x28] sm:$0x7f] %vm374, %v2564
      %2597 = vst.msk [vmem:[#allocation2 + $0x30] sm:$0xff] %vm180, %v2565
      %2598 = vst.msk [vmem:[#allocation2 + $0x38] sm:$0x7f] %vm374, %v2566
      %2599 = vst.msk [vmem:[#allocation2 + $0x40] sm:$0xff] %vm180, %v2567
      %2600 = vst.msk [vmem:[#allocation2 + $0x48] sm:$0x7f] %vm374, %v2568
      %2601 = vst.msk [vmem:[#allocation2 + $0x50] sm:$0xff] %vm180, %v2569
      %2602 = vst.msk [vmem:[#allocation2 + $0x58] sm:$0x7f] %vm374, %v2570
      %2603 = vst.msk [vmem:[#allocation2 + $0x60] sm:$0xff] %vm180, %v2571
      %2604 = vst.msk [vmem:[#allocation2 + $0x68] sm:$0x7f] %vm374, %v2572
      %2605 = vst.msk [vmem:[#allocation2 + $0x70] sm:$0xff] %vm180, %v2573
      %2606 = vst.msk [vmem:[#allocation2 + $0x78] sm:$0x7f] %vm374, %v2574
      %2607 = vst.msk [vmem:[#allocation2 + $0x80] sm:$0xff] %vm180, %v2575
      %2608 = vst.msk [vmem:[#allocation2 + $0x88] sm:$0x7f] %vm374, %v2576
      %2609 = vst.msk [vmem:[#allocation2 + $0x90] sm:$0xff] %vm180, %v2577
      %2610 = vst.msk [vmem:[#allocation2 + $0x98] sm:$0x7f] %vm374, %v2578
      %2611 = vst.msk [vmem:[#allocation2 + $0xa0] sm:$0xff] %vm180, %v2579
      %2612 = vst.msk [vmem:[#allocation2 + $0xa8] sm:$0x7f] %vm374, %v2580
      %2613 = vst.msk [vmem:[#allocation2 + $0xb0] sm:$0xff] %vm180, %v2581
      %2614 = vst.msk [vmem:[#allocation2 + $0xb8] sm:$0x7f] %vm374, %v2582
      %2615 = vst.msk [vmem:[#allocation2 + $0xc0] sm:$0xff] %vm180, %v2583
      %2616 = vst.msk [vmem:[#allocation2 + $0xc8] sm:$0x7f] %vm374, %v2584
      %2617 = vst.msk [vmem:[#allocation2 + $0xd0] sm:$0xff] %vm180, %v2585
      %2618 = vst.msk [vmem:[#allocation2 + $0xd8] sm:$0x7f] %vm374, %v2586
      %2619 = vst.msk [vmem:[#allocation2 + $0xe0] sm:$0xff] %vm180, %v2587
      %2620 = vst.msk [vmem:[#allocation2 + $0xe8] sm:$0x7f] %vm374, %v2588
      %2621 = vst.msk [vmem:[#allocation2 + $0xf0] sm:$0xff] %vm180, %v2589
      %2622 = vst.msk [vmem:[#allocation2 + $0xf8] sm:$0x7f] %vm374, %v2590
      %v2623 = vld [vmem:[#allocation2 + $0x1] sm:$0xff]
      %v2624 = vld [vmem:[#allocation2 + $0x9] sm:$0x7f]
      %v2625 = vld [vmem:[#allocation2 + $0x11] sm:$0xff]
      %v2626 = vld [vmem:[#allocation2 + $0x19] sm:$0x7f]
      %v2627 = vld [vmem:[#allocation2 + $0x21] sm:$0xff]
      %v2628 = vld [vmem:[#allocation2 + $0x29] sm:$0x7f]
      %v2629 = vld [vmem:[#allocation2 + $0x31] sm:$0xff]
      %v2630 = vld [vmem:[#allocation2 + $0x39] sm:$0x7f]
      %v2631 = vld [vmem:[#allocation2 + $0x41] sm:$0xff]
      %v2632 = vld [vmem:[#allocation2 + $0x49] sm:$0x7f]
      %v2633 = vld [vmem:[#allocation2 + $0x51] sm:$0xff]
      %v2634 = vld [vmem:[#allocation2 + $0x59] sm:$0x7f]
      %v2635 = vld [vmem:[#allocation2 + $0x61] sm:$0xff]
      %v2636 = vld [vmem:[#allocation2 + $0x69] sm:$0x7f]
      %v2637 = vld [vmem:[#allocation2 + $0x71] sm:$0xff]
      %v2638 = vld [vmem:[#allocation2 + $0x79] sm:$0x7f]
      %v2639 = vld [vmem:[#allocation2 + $0x81] sm:$0xff]
      %v2640 = vld [vmem:[#allocation2 + $0x89] sm:$0x7f]
      %v2641 = vld [vmem:[#allocation2 + $0x91] sm:$0xff]
      %v2642 = vld [vmem:[#allocation2 + $0x99] sm:$0x7f]
      %v2643 = vld [vmem:[#allocation2 + $0xa1] sm:$0xff]
      %v2644 = vld [vmem:[#allocation2 + $0xa9] sm:$0x7f]
      %v2645 = vld [vmem:[#allocation2 + $0xb1] sm:$0xff]
      %v2646 = vld [vmem:[#allocation2 + $0xb9] sm:$0x7f]
      %v2647 = vld [vmem:[#allocation2 + $0xc1] sm:$0xff]
      %v2648 = vld [vmem:[#allocation2 + $0xc9] sm:$0x7f]
      %v2649 = vld [vmem:[#allocation2 + $0xd1] sm:$0xff]
      %v2650 = vld [vmem:[#allocation2 + $0xd9] sm:$0x7f]
      %v2651 = vld [vmem:[#allocation2 + $0xe1] sm:$0xff]
      %v2652 = vld [vmem:[#allocation2 + $0xe9] sm:$0x7f]
      %v2653 = vld [vmem:[#allocation2 + $0xf1] sm:$0xff]
      %v2654 = vld [vmem:[#allocation2 + $0xf9] sm:$0x7f]
      %v2655 = vld [vmem:[%s1932] sm:$0xff]
      %v2656 = vld [vmem:[%s1932 + $0x8] sm:$0x7f]
      %v2657 = vld [vmem:[%s1932 + $0x10] sm:$0xff]
      %v2658 = vld [vmem:[%s1932 + $0x18] sm:$0x7f]
      %v2659 = vld [vmem:[%s1932 + $0x20] sm:$0xff]
      %v2660 = vld [vmem:[%s1932 + $0x28] sm:$0x7f]
      %v2661 = vld [vmem:[%s1932 + $0x30] sm:$0xff]
      %v2662 = vld [vmem:[%s1932 + $0x38] sm:$0x7f]
      %v2663 = vld [vmem:[%s1932 + $0x40] sm:$0xff]
      %v2664 = vld [vmem:[%s1932 + $0x48] sm:$0x7f]
      %v2665 = vld [vmem:[%s1932 + $0x50] sm:$0xff]
      %v2666 = vld [vmem:[%s1932 + $0x58] sm:$0x7f]
      %v2667 = vld [vmem:[%s1932 + $0x60] sm:$0xff]
      %v2668 = vld [vmem:[%s1932 + $0x68] sm:$0x7f]
      %v2669 = vld [vmem:[%s1932 + $0x70] sm:$0xff]
      %v2670 = vld [vmem:[%s1932 + $0x78] sm:$0x7f]
      %v2671 = vld [vmem:[%s1932 + $0x80] sm:$0xff]
      %v2672 = vld [vmem:[%s1932 + $0x88] sm:$0x7f]
      %v2673 = vld [vmem:[%s1932 + $0x90] sm:$0xff]
      %v2674 = vld [vmem:[%s1932 + $0x98] sm:$0x7f]
      %v2675 = vld [vmem:[%s1932 + $0xa0] sm:$0xff]
      %v2676 = vld [vmem:[%s1932 + $0xa8] sm:$0x7f]
      %v2677 = vld [vmem:[%s1932 + $0xb0] sm:$0xff]
      %v2678 = vld [vmem:[%s1932 + $0xb8] sm:$0x7f]
      %v2679 = vld [vmem:[%s1932 + $0xc0] sm:$0xff]
      %v2680 = vld [vmem:[%s1932 + $0xc8] sm:$0x7f]
      %v2681 = vld [vmem:[%s1932 + $0xd0] sm:$0xff]
      %v2682 = vld [vmem:[%s1932 + $0xd8] sm:$0x7f]
      %v2683 = vld [vmem:[%s1932 + $0xe0] sm:$0xff]
      %v2684 = vld [vmem:[%s1932 + $0xe8] sm:$0x7f]
      %v2685 = vld [vmem:[%s1932 + $0xf0] sm:$0xff]
      %v2686 = vld [vmem:[%s1932 + $0xf8] sm:$0x7f]
      %v2687 = vmax.f32 %v2623, %v2655
      %v2688 = vmax.f32 %v2624, %v2656
      %v2689 = vmax.f32 %v2625, %v2657
      %v2690 = vmax.f32 %v2626, %v2658
      %v2691 = vmax.f32 %v2627, %v2659
      %v2692 = vmax.f32 %v2628, %v2660
      %v2693 = vmax.f32 %v2629, %v2661
      %v2694 = vmax.f32 %v2630, %v2662
      %v2695 = vmax.f32 %v2631, %v2663
      %v2696 = vmax.f32 %v2632, %v2664
      %v2697 = vmax.f32 %v2633, %v2665
      %v2698 = vmax.f32 %v2634, %v2666
      %v2699 = vmax.f32 %v2635, %v2667
      %v2700 = vmax.f32 %v2636, %v2668
      %v2701 = vmax.f32 %v2637, %v2669
      %v2702 = vmax.f32 %v2638, %v2670
      %v2703 = vmax.f32 %v2639, %v2671
      %v2704 = vmax.f32 %v2640, %v2672
      %v2705 = vmax.f32 %v2641, %v2673
      %v2706 = vmax.f32 %v2642, %v2674
      %v2707 = vmax.f32 %v2643, %v2675
      %v2708 = vmax.f32 %v2644, %v2676
      %v2709 = vmax.f32 %v2645, %v2677
      %v2710 = vmax.f32 %v2646, %v2678
      %v2711 = vmax.f32 %v2647, %v2679
      %v2712 = vmax.f32 %v2648, %v2680
      %v2713 = vmax.f32 %v2649, %v2681
      %v2714 = vmax.f32 %v2650, %v2682
      %v2715 = vmax.f32 %v2651, %v2683
      %v2716 = vmax.f32 %v2652, %v2684
      %v2717 = vmax.f32 %v2653, %v2685
      %v2718 = vmax.f32 %v2654, %v2686
      %2719 = vst.msk [vmem:[#allocation2 + $0x1] sm:$0xff] %vm180, %v2687
      %2720 = vst.msk [vmem:[#allocation2 + $0x9] sm:$0x7f] %vm374, %v2688
      %2721 = vst.msk [vmem:[#allocation2 + $0x11] sm:$0xff] %vm180, %v2689
      %2722 = vst.msk [vmem:[#allocation2 + $0x19] sm:$0x7f] %vm374, %v2690
      %2723 = vst.msk [vmem:[#allocation2 + $0x21] sm:$0xff] %vm180, %v2691
      %2724 = vst.msk [vmem:[#allocation2 + $0x29] sm:$0x7f] %vm374, %v2692
      %2725 = vst.msk [vmem:[#allocation2 + $0x31] sm:$0xff] %vm180, %v2693
      %2726 = vst.msk [vmem:[#allocation2 + $0x39] sm:$0x7f] %vm374, %v2694
      %2727 = vst.msk [vmem:[#allocation2 + $0x41] sm:$0xff] %vm180, %v2695
      %2728 = vst.msk [vmem:[#allocation2 + $0x49] sm:$0x7f] %vm374, %v2696
      %2729 = vst.msk [vmem:[#allocation2 + $0x51] sm:$0xff] %vm180, %v2697
      %2730 = vst.msk [vmem:[#allocation2 + $0x59] sm:$0x7f] %vm374, %v2698
      %2731 = vst.msk [vmem:[#allocation2 + $0x61] sm:$0xff] %vm180, %v2699
      %2732 = vst.msk [vmem:[#allocation2 + $0x69] sm:$0x7f] %vm374, %v2700
      %2733 = vst.msk [vmem:[#allocation2 + $0x71] sm:$0xff] %vm180, %v2701
      %2734 = vst.msk [vmem:[#allocation2 + $0x79] sm:$0x7f] %vm374, %v2702
      %2735 = vst.msk [vmem:[#allocation2 + $0x81] sm:$0xff] %vm180, %v2703
      %2736 = vst.msk [vmem:[#allocation2 + $0x89] sm:$0x7f] %vm374, %v2704
      %2737 = vst.msk [vmem:[#allocation2 + $0x91] sm:$0xff] %vm180, %v2705
      %2738 = vst.msk [vmem:[#allocation2 + $0x99] sm:$0x7f] %vm374, %v2706
      %2739 = vst.msk [vmem:[#allocation2 + $0xa1] sm:$0xff] %vm180, %v2707
      %2740 = vst.msk [vmem:[#allocation2 + $0xa9] sm:$0x7f] %vm374, %v2708
      %2741 = vst.msk [vmem:[#allocation2 + $0xb1] sm:$0xff] %vm180, %v2709
      %2742 = vst.msk [vmem:[#allocation2 + $0xb9] sm:$0x7f] %vm374, %v2710
      %2743 = vst.msk [vmem:[#allocation2 + $0xc1] sm:$0xff] %vm180, %v2711
      %2744 = vst.msk [vmem:[#allocation2 + $0xc9] sm:$0x7f] %vm374, %v2712
      %2745 = vst.msk [vmem:[#allocation2 + $0xd1] sm:$0xff] %vm180, %v2713
      %2746 = vst.msk [vmem:[#allocation2 + $0xd9] sm:$0x7f] %vm374, %v2714
      %2747 = vst.msk [vmem:[#allocation2 + $0xe1] sm:$0xff] %vm180, %v2715
      %2748 = vst.msk [vmem:[#allocation2 + $0xe9] sm:$0x7f] %vm374, %v2716
      %2749 = vst.msk [vmem:[#allocation2 + $0xf1] sm:$0xff] %vm180, %v2717
      %2750 = vst.msk [vmem:[#allocation2 + $0xf9] sm:$0x7f] %vm374, %v2718
      %v2751 = vld [vmem:[#allocation2] sm:$0xff]
      %v2752 = vld [vmem:[#allocation2 + $0x8] sm:$0x3f]
      %v2753 = vld [vmem:[#allocation2 + $0x10] sm:$0xff]
      %v2754 = vld [vmem:[#allocation2 + $0x18] sm:$0x3f]
      %v2755 = vld [vmem:[#allocation2 + $0x20] sm:$0xff]
      %v2756 = vld [vmem:[#allocation2 + $0x28] sm:$0x3f]
      %v2757 = vld [vmem:[#allocation2 + $0x30] sm:$0xff]
      %v2758 = vld [vmem:[#allocation2 + $0x38] sm:$0x3f]
      %v2759 = vld [vmem:[#allocation2 + $0x40] sm:$0xff]
      %v2760 = vld [vmem:[#allocation2 + $0x48] sm:$0x3f]
      %v2761 = vld [vmem:[#allocation2 + $0x50] sm:$0xff]
      %v2762 = vld [vmem:[#allocation2 + $0x58] sm:$0x3f]
      %v2763 = vld [vmem:[#allocation2 + $0x60] sm:$0xff]
      %v2764 = vld [vmem:[#allocation2 + $0x68] sm:$0x3f]
      %v2765 = vld [vmem:[#allocation2 + $0x70] sm:$0xff]
      %v2766 = vld [vmem:[#allocation2 + $0x78] sm:$0x3f]
      %v2767 = vld [vmem:[#allocation2 + $0x80] sm:$0xff]
      %v2768 = vld [vmem:[#allocation2 + $0x88] sm:$0x3f]
      %v2769 = vld [vmem:[#allocation2 + $0x90] sm:$0xff]
      %v2770 = vld [vmem:[#allocation2 + $0x98] sm:$0x3f]
      %v2771 = vld [vmem:[#allocation2 + $0xa0] sm:$0xff]
      %v2772 = vld [vmem:[#allocation2 + $0xa8] sm:$0x3f]
      %v2773 = vld [vmem:[#allocation2 + $0xb0] sm:$0xff]
      %v2774 = vld [vmem:[#allocation2 + $0xb8] sm:$0x3f]
      %v2775 = vld [vmem:[#allocation2 + $0xc0] sm:$0xff]
      %v2776 = vld [vmem:[#allocation2 + $0xc8] sm:$0x3f]
      %v2777 = vld [vmem:[#allocation2 + $0xd0] sm:$0xff]
      %v2778 = vld [vmem:[#allocation2 + $0xd8] sm:$0x3f]
      %v2779 = vld [vmem:[#allocation2 + $0xe0] sm:$0xff]
      %v2780 = vld [vmem:[#allocation2 + $0xe8] sm:$0x3f]
      %v2781 = vld [vmem:[#allocation2 + $0xf0] sm:$0xff]
      %v2782 = vld [vmem:[#allocation2 + $0xf8] sm:$0x3f]
      %v2783 = vld [vmem:[%s1932 + $0x2] sm:$0xff]
      %v2784 = vld [vmem:[%s1932 + $0xa] sm:$0x3f]
      %v2785 = vld [vmem:[%s1932 + $0x12] sm:$0xff]
      %v2786 = vld [vmem:[%s1932 + $0x1a] sm:$0x3f]
      %v2787 = vld [vmem:[%s1932 + $0x22] sm:$0xff]
      %v2788 = vld [vmem:[%s1932 + $0x2a] sm:$0x3f]
      %v2789 = vld [vmem:[%s1932 + $0x32] sm:$0xff]
      %v2790 = vld [vmem:[%s1932 + $0x3a] sm:$0x3f]
      %v2791 = vld [vmem:[%s1932 + $0x42] sm:$0xff]
      %v2792 = vld [vmem:[%s1932 + $0x4a] sm:$0x3f]
      %v2793 = vld [vmem:[%s1932 + $0x52] sm:$0xff]
      %v2794 = vld [vmem:[%s1932 + $0x5a] sm:$0x3f]
      %v2795 = vld [vmem:[%s1932 + $0x62] sm:$0xff]
      %v2796 = vld [vmem:[%s1932 + $0x6a] sm:$0x3f]
      %v2797 = vld [vmem:[%s1932 + $0x72] sm:$0xff]
      %v2798 = vld [vmem:[%s1932 + $0x7a] sm:$0x3f]
      %v2799 = vld [vmem:[%s1932 + $0x82] sm:$0xff]
      %v2800 = vld [vmem:[%s1932 + $0x8a] sm:$0x3f]
      %v2801 = vld [vmem:[%s1932 + $0x92] sm:$0xff]
      %v2802 = vld [vmem:[%s1932 + $0x9a] sm:$0x3f]
      %v2803 = vld [vmem:[%s1932 + $0xa2] sm:$0xff]
      %v2804 = vld [vmem:[%s1932 + $0xaa] sm:$0x3f]
      %v2805 = vld [vmem:[%s1932 + $0xb2] sm:$0xff]
      %v2806 = vld [vmem:[%s1932 + $0xba] sm:$0x3f]
      %v2807 = vld [vmem:[%s1932 + $0xc2] sm:$0xff]
      %v2808 = vld [vmem:[%s1932 + $0xca] sm:$0x3f]
      %v2809 = vld [vmem:[%s1932 + $0xd2] sm:$0xff]
      %v2810 = vld [vmem:[%s1932 + $0xda] sm:$0x3f]
      %v2811 = vld [vmem:[%s1932 + $0xe2] sm:$0xff]
      %v2812 = vld [vmem:[%s1932 + $0xea] sm:$0x3f]
      %v2813 = vld [vmem:[%s1932 + $0xf2] sm:$0xff]
      %v2814 = vld [vmem:[%s1932 + $0xfa] sm:$0x3f]
      %v2815 = vmax.f32 %v2751, %v2783
      %v2816 = vmax.f32 %v2752, %v2784
      %v2817 = vmax.f32 %v2753, %v2785
      %v2818 = vmax.f32 %v2754, %v2786
      %v2819 = vmax.f32 %v2755, %v2787
      %v2820 = vmax.f32 %v2756, %v2788
      %v2821 = vmax.f32 %v2757, %v2789
      %v2822 = vmax.f32 %v2758, %v2790
      %v2823 = vmax.f32 %v2759, %v2791
      %v2824 = vmax.f32 %v2760, %v2792
      %v2825 = vmax.f32 %v2761, %v2793
      %v2826 = vmax.f32 %v2762, %v2794
      %v2827 = vmax.f32 %v2763, %v2795
      %v2828 = vmax.f32 %v2764, %v2796
      %v2829 = vmax.f32 %v2765, %v2797
      %v2830 = vmax.f32 %v2766, %v2798
      %v2831 = vmax.f32 %v2767, %v2799
      %v2832 = vmax.f32 %v2768, %v2800
      %v2833 = vmax.f32 %v2769, %v2801
      %v2834 = vmax.f32 %v2770, %v2802
      %v2835 = vmax.f32 %v2771, %v2803
      %v2836 = vmax.f32 %v2772, %v2804
      %v2837 = vmax.f32 %v2773, %v2805
      %v2838 = vmax.f32 %v2774, %v2806
      %v2839 = vmax.f32 %v2775, %v2807
      %v2840 = vmax.f32 %v2776, %v2808
      %v2841 = vmax.f32 %v2777, %v2809
      %v2842 = vmax.f32 %v2778, %v2810
      %v2843 = vmax.f32 %v2779, %v2811
      %v2844 = vmax.f32 %v2780, %v2812
      %v2845 = vmax.f32 %v2781, %v2813
      %v2846 = vmax.f32 %v2782, %v2814
      %2847 = vst.msk [vmem:[#allocation2] sm:$0xff] %vm180, %v2815
      %2848 = vst.msk [vmem:[#allocation2 + $0x8] sm:$0x3f] %vm631, %v2816
      %2849 = vst.msk [vmem:[#allocation2 + $0x10] sm:$0xff] %vm180, %v2817
      %2850 = vst.msk [vmem:[#allocation2 + $0x18] sm:$0x3f] %vm631, %v2818
      %2851 = vst.msk [vmem:[#allocation2 + $0x20] sm:$0xff] %vm180, %v2819
      %2852 = vst.msk [vmem:[#allocation2 + $0x28] sm:$0x3f] %vm631, %v2820
      %2853 = vst.msk [vmem:[#allocation2 + $0x30] sm:$0xff] %vm180, %v2821
      %2854 = vst.msk [vmem:[#allocation2 + $0x38] sm:$0x3f] %vm631, %v2822
      %2855 = vst.msk [vmem:[#allocation2 + $0x40] sm:$0xff] %vm180, %v2823
      %2856 = vst.msk [vmem:[#allocation2 + $0x48] sm:$0x3f] %vm631, %v2824
      %2857 = vst.msk [vmem:[#allocation2 + $0x50] sm:$0xff] %vm180, %v2825
      %2858 = vst.msk [vmem:[#allocation2 + $0x58] sm:$0x3f] %vm631, %v2826
      %2859 = vst.msk [vmem:[#allocation2 + $0x60] sm:$0xff] %vm180, %v2827
      %2860 = vst.msk [vmem:[#allocation2 + $0x68] sm:$0x3f] %vm631, %v2828
      %2861 = vst.msk [vmem:[#allocation2 + $0x70] sm:$0xff] %vm180, %v2829
      %2862 = vst.msk [vmem:[#allocation2 + $0x78] sm:$0x3f] %vm631, %v2830
      %2863 = vst.msk [vmem:[#allocation2 + $0x80] sm:$0xff] %vm180, %v2831
      %2864 = vst.msk [vmem:[#allocation2 + $0x88] sm:$0x3f] %vm631, %v2832
      %2865 = vst.msk [vmem:[#allocation2 + $0x90] sm:$0xff] %vm180, %v2833
      %2866 = vst.msk [vmem:[#allocation2 + $0x98] sm:$0x3f] %vm631, %v2834
      %2867 = vst.msk [vmem:[#allocation2 + $0xa0] sm:$0xff] %vm180, %v2835
      %2868 = vst.msk [vmem:[#allocation2 + $0xa8] sm:$0x3f] %vm631, %v2836
      %2869 = vst.msk [vmem:[#allocation2 + $0xb0] sm:$0xff] %vm180, %v2837
      %2870 = vst.msk [vmem:[#allocation2 + $0xb8] sm:$0x3f] %vm631, %v2838
      %2871 = vst.msk [vmem:[#allocation2 + $0xc0] sm:$0xff] %vm180, %v2839
      %2872 = vst.msk [vmem:[#allocation2 + $0xc8] sm:$0x3f] %vm631, %v2840
      %2873 = vst.msk [vmem:[#allocation2 + $0xd0] sm:$0xff] %vm180, %v2841
      %2874 = vst.msk [vmem:[#allocation2 + $0xd8] sm:$0x3f] %vm631, %v2842
      %2875 = vst.msk [vmem:[#allocation2 + $0xe0] sm:$0xff] %vm180, %v2843
      %2876 = vst.msk [vmem:[#allocation2 + $0xe8] sm:$0x3f] %vm631, %v2844
      %2877 = vst.msk [vmem:[#allocation2 + $0xf0] sm:$0xff] %vm180, %v2845
      %2878 = vst.msk [vmem:[#allocation2 + $0xf8] sm:$0x3f] %vm631, %v2846
      %v2879 = vld [vmem:[#allocation2 + $0x2] sm:$0xff]
      %v2880 = vld [vmem:[#allocation2 + $0xa] sm:$0x3f]
      %v2881 = vld [vmem:[#allocation2 + $0x12] sm:$0xff]
      %v2882 = vld [vmem:[#allocation2 + $0x1a] sm:$0x3f]
      %v2883 = vld [vmem:[#allocation2 + $0x22] sm:$0xff]
      %v2884 = vld [vmem:[#allocation2 + $0x2a] sm:$0x3f]
      %v2885 = vld [vmem:[#allocation2 + $0x32] sm:$0xff]
      %v2886 = vld [vmem:[#allocation2 + $0x3a] sm:$0x3f]
      %v2887 = vld [vmem:[#allocation2 + $0x42] sm:$0xff]
      %v2888 = vld [vmem:[#allocation2 + $0x4a] sm:$0x3f]
      %v2889 = vld [vmem:[#allocation2 + $0x52] sm:$0xff]
      %v2890 = vld [vmem:[#allocation2 + $0x5a] sm:$0x3f]
      %v2891 = vld [vmem:[#allocation2 + $0x62] sm:$0xff]
      %v2892 = vld [vmem:[#allocation2 + $0x6a] sm:$0x3f]
      %v2893 = vld [vmem:[#allocation2 + $0x72] sm:$0xff]
      %v2894 = vld [vmem:[#allocation2 + $0x7a] sm:$0x3f]
      %v2895 = vld [vmem:[#allocation2 + $0x82] sm:$0xff]
      %v2896 = vld [vmem:[#allocation2 + $0x8a] sm:$0x3f]
      %v2897 = vld [vmem:[#allocation2 + $0x92] sm:$0xff]
      %v2898 = vld [vmem:[#allocation2 + $0x9a] sm:$0x3f]
      %v2899 = vld [vmem:[#allocation2 + $0xa2] sm:$0xff]
      %v2900 = vld [vmem:[#allocation2 + $0xaa] sm:$0x3f]
      %v2901 = vld [vmem:[#allocation2 + $0xb2] sm:$0xff]
      %v2902 = vld [vmem:[#allocation2 + $0xba] sm:$0x3f]
      %v2903 = vld [vmem:[#allocation2 + $0xc2] sm:$0xff]
      %v2904 = vld [vmem:[#allocation2 + $0xca] sm:$0x3f]
      %v2905 = vld [vmem:[#allocation2 + $0xd2] sm:$0xff]
      %v2906 = vld [vmem:[#allocation2 + $0xda] sm:$0x3f]
      %v2907 = vld [vmem:[#allocation2 + $0xe2] sm:$0xff]
      %v2908 = vld [vmem:[#allocation2 + $0xea] sm:$0x3f]
      %v2909 = vld [vmem:[#allocation2 + $0xf2] sm:$0xff]
      %v2910 = vld [vmem:[#allocation2 + $0xfa] sm:$0x3f]
      %v2911 = vld [vmem:[%s1932] sm:$0xff]
      %v2912 = vld [vmem:[%s1932 + $0x8] sm:$0x3f]
      %v2913 = vld [vmem:[%s1932 + $0x10] sm:$0xff]
      %v2914 = vld [vmem:[%s1932 + $0x18] sm:$0x3f]
      %v2915 = vld [vmem:[%s1932 + $0x20] sm:$0xff]
      %v2916 = vld [vmem:[%s1932 + $0x28] sm:$0x3f]
      %v2917 = vld [vmem:[%s1932 + $0x30] sm:$0xff]
      %v2918 = vld [vmem:[%s1932 + $0x38] sm:$0x3f]
      %v2919 = vld [vmem:[%s1932 + $0x40] sm:$0xff]
      %v2920 = vld [vmem:[%s1932 + $0x48] sm:$0x3f]
      %v2921 = vld [vmem:[%s1932 + $0x50] sm:$0xff]
      %v2922 = vld [vmem:[%s1932 + $0x58] sm:$0x3f]
      %v2923 = vld [vmem:[%s1932 + $0x60] sm:$0xff]
      %v2924 = vld [vmem:[%s1932 + $0x68] sm:$0x3f]
      %v2925 = vld [vmem:[%s1932 + $0x70] sm:$0xff]
      %v2926 = vld [vmem:[%s1932 + $0x78] sm:$0x3f]
      %v2927 = vld [vmem:[%s1932 + $0x80] sm:$0xff]
      %v2928 = vld [vmem:[%s1932 + $0x88] sm:$0x3f]
      %v2929 = vld [vmem:[%s1932 + $0x90] sm:$0xff]
      %v2930 = vld [vmem:[%s1932 + $0x98] sm:$0x3f]
      %v2931 = vld [vmem:[%s1932 + $0xa0] sm:$0xff]
      %v2932 = vld [vmem:[%s1932 + $0xa8] sm:$0x3f]
      %v2933 = vld [vmem:[%s1932 + $0xb0] sm:$0xff]
      %v2934 = vld [vmem:[%s1932 + $0xb8] sm:$0x3f]
      %v2935 = vld [vmem:[%s1932 + $0xc0] sm:$0xff]
      %v2936 = vld [vmem:[%s1932 + $0xc8] sm:$0x3f]
      %v2937 = vld [vmem:[%s1932 + $0xd0] sm:$0xff]
      %v2938 = vld [vmem:[%s1932 + $0xd8] sm:$0x3f]
      %v2939 = vld [vmem:[%s1932 + $0xe0] sm:$0xff]
      %v2940 = vld [vmem:[%s1932 + $0xe8] sm:$0x3f]
      %v2941 = vld [vmem:[%s1932 + $0xf0] sm:$0xff]
      %v2942 = vld [vmem:[%s1932 + $0xf8] sm:$0x3f]
      %v2943 = vmax.f32 %v2879, %v2911
      %v2944 = vmax.f32 %v2880, %v2912
      %v2945 = vmax.f32 %v2881, %v2913
      %v2946 = vmax.f32 %v2882, %v2914
      %v2947 = vmax.f32 %v2883, %v2915
      %v2948 = vmax.f32 %v2884, %v2916
      %v2949 = vmax.f32 %v2885, %v2917
      %v2950 = vmax.f32 %v2886, %v2918
      %v2951 = vmax.f32 %v2887, %v2919
      %v2952 = vmax.f32 %v2888, %v2920
      %v2953 = vmax.f32 %v2889, %v2921
      %v2954 = vmax.f32 %v2890, %v2922
      %v2955 = vmax.f32 %v2891, %v2923
      %v2956 = vmax.f32 %v2892, %v2924
      %v2957 = vmax.f32 %v2893, %v2925
      %v2958 = vmax.f32 %v2894, %v2926
      %v2959 = vmax.f32 %v2895, %v2927
      %v2960 = vmax.f32 %v2896, %v2928
      %v2961 = vmax.f32 %v2897, %v2929
      %v2962 = vmax.f32 %v2898, %v2930
      %v2963 = vmax.f32 %v2899, %v2931
      %v2964 = vmax.f32 %v2900, %v2932
      %v2965 = vmax.f32 %v2901, %v2933
      %v2966 = vmax.f32 %v2902, %v2934
      %v2967 = vmax.f32 %v2903, %v2935
      %v2968 = vmax.f32 %v2904, %v2936
      %v2969 = vmax.f32 %v2905, %v2937
      %v2970 = vmax.f32 %v2906, %v2938
      %v2971 = vmax.f32 %v2907, %v2939
      %v2972 = vmax.f32 %v2908, %v2940
      %v2973 = vmax.f32 %v2909, %v2941
      %v2974 = vmax.f32 %v2910, %v2942
      %2975 = vst.msk [vmem:[#allocation2 + $0x2] sm:$0xff] %vm180, %v2943
      %2976 = vst.msk [vmem:[#allocation2 + $0xa] sm:$0x3f] %vm631, %v2944
      %2977 = vst.msk [vmem:[#allocation2 + $0x12] sm:$0xff] %vm180, %v2945
      %2978 = vst.msk [vmem:[#allocation2 + $0x1a] sm:$0x3f] %vm631, %v2946
      %2979 = vst.msk [vmem:[#allocation2 + $0x22] sm:$0xff] %vm180, %v2947
      %2980 = vst.msk [vmem:[#allocation2 + $0x2a] sm:$0x3f] %vm631, %v2948
      %2981 = vst.msk [vmem:[#allocation2 + $0x32] sm:$0xff] %vm180, %v2949
      %2982 = vst.msk [vmem:[#allocation2 + $0x3a] sm:$0x3f] %vm631, %v2950
      %2983 = vst.msk [vmem:[#allocation2 + $0x42] sm:$0xff] %vm180, %v2951
      %2984 = vst.msk [vmem:[#allocation2 + $0x4a] sm:$0x3f] %vm631, %v2952
      %2985 = vst.msk [vmem:[#allocation2 + $0x52] sm:$0xff] %vm180, %v2953
      %2986 = vst.msk [vmem:[#allocation2 + $0x5a] sm:$0x3f] %vm631, %v2954
      %2987 = vst.msk [vmem:[#allocation2 + $0x62] sm:$0xff] %vm180, %v2955
      %2988 = vst.msk [vmem:[#allocation2 + $0x6a] sm:$0x3f] %vm631, %v2956
      %2989 = vst.msk [vmem:[#allocation2 + $0x72] sm:$0xff] %vm180, %v2957
      %2990 = vst.msk [vmem:[#allocation2 + $0x7a] sm:$0x3f] %vm631, %v2958
      %2991 = vst.msk [vmem:[#allocation2 + $0x82] sm:$0xff] %vm180, %v2959
      %2992 = vst.msk [vmem:[#allocation2 + $0x8a] sm:$0x3f] %vm631, %v2960
      %2993 = vst.msk [vmem:[#allocation2 + $0x92] sm:$0xff] %vm180, %v2961
      %2994 = vst.msk [vmem:[#allocation2 + $0x9a] sm:$0x3f] %vm631, %v2962
      %2995 = vst.msk [vmem:[#allocation2 + $0xa2] sm:$0xff] %vm180, %v2963
      %2996 = vst.msk [vmem:[#allocation2 + $0xaa] sm:$0x3f] %vm631, %v2964
      %2997 = vst.msk [vmem:[#allocation2 + $0xb2] sm:$0xff] %vm180, %v2965
      %2998 = vst.msk [vmem:[#allocation2 + $0xba] sm:$0x3f] %vm631, %v2966
      %2999 = vst.msk [vmem:[#allocation2 + $0xc2] sm:$0xff] %vm180, %v2967
      %3000 = vst.msk [vmem:[#allocation2 + $0xca] sm:$0x3f] %vm631, %v2968
      %3001 = vst.msk [vmem:[#allocation2 + $0xd2] sm:$0xff] %vm180, %v2969
      %3002 = vst.msk [vmem:[#allocation2 + $0xda] sm:$0x3f] %vm631, %v2970
      %3003 = vst.msk [vmem:[#allocation2 + $0xe2] sm:$0xff] %vm180, %v2971
      %3004 = vst.msk [vmem:[#allocation2 + $0xea] sm:$0x3f] %vm631, %v2972
      %3005 = vst.msk [vmem:[#allocation2 + $0xf2] sm:$0xff] %vm180, %v2973
      %3006 = vst.msk [vmem:[#allocation2 + $0xfa] sm:$0x3f] %vm631, %v2974
      %v3007 = vld [vmem:[#allocation2] sm:$0xff]
      %v3008 = vld [vmem:[#allocation2 + $0x8] sm:$0xff]
      %v3009 = vld [vmem:[#allocation2 + $0x10] sm:$0xff]
      %v3010 = vld [vmem:[#allocation2 + $0x18] sm:$0xff]
      %v3011 = vld [vmem:[#allocation2 + $0x20] sm:$0xff]
      %v3012 = vld [vmem:[#allocation2 + $0x28] sm:$0xff]
      %v3013 = vld [vmem:[#allocation2 + $0x30] sm:$0xff]
      %v3014 = vld [vmem:[#allocation2 + $0x38] sm:$0xff]
      %v3015 = vld [vmem:[#allocation2 + $0x40] sm:$0xff]
      %v3016 = vld [vmem:[#allocation2 + $0x48] sm:$0xff]
      %v3017 = vld [vmem:[#allocation2 + $0x50] sm:$0xff]
      %v3018 = vld [vmem:[#allocation2 + $0x58] sm:$0xff]
      %v3019 = vld [vmem:[#allocation2 + $0x60] sm:$0xff]
      %v3020 = vld [vmem:[#allocation2 + $0x68] sm:$0xff]
      %v3021 = vld [vmem:[#allocation2 + $0x70] sm:$0xff]
      %v3022 = vld [vmem:[#allocation2 + $0x78] sm:$0xff]
      %v3023 = vld [vmem:[#allocation2 + $0x80] sm:$0xff]
      %v3024 = vld [vmem:[#allocation2 + $0x88] sm:$0xff]
      %v3025 = vld [vmem:[#allocation2 + $0x90] sm:$0xff]
      %v3026 = vld [vmem:[#allocation2 + $0x98] sm:$0xff]
      %v3027 = vld [vmem:[#allocation2 + $0xa0] sm:$0xff]
      %v3028 = vld [vmem:[#allocation2 + $0xa8] sm:$0xff]
      %v3029 = vld [vmem:[#allocation2 + $0xb0] sm:$0xff]
      %v3030 = vld [vmem:[#allocation2 + $0xb8] sm:$0xff]
      %v3031 = vld [vmem:[#allocation2 + $0xc0] sm:$0xff]
      %v3032 = vld [vmem:[#allocation2 + $0xc8] sm:$0xff]
      %v3033 = vld [vmem:[#allocation2 + $0xd0] sm:$0xff]
      %v3034 = vld [vmem:[#allocation2 + $0xd8] sm:$0xff]
      %v3035 = vld [vmem:[#allocation2 + $0xe0] sm:$0xff]
      %v3036 = vld [vmem:[#allocation2 + $0xe8] sm:$0xff]
      %v3037 = vld [vmem:[#allocation2 + $0xf0] sm:$0xff]
      %v3038 = vld [vmem:[#allocation2 + $0xf8] sm:$0xff]
      %s3039 = scalar_lea.vmem %s147, 768
      %3040 = vst.msk [vmem:[%s3039] sm:$0xff] %vm180, %v3007
      %3041 = vst.msk [vmem:[%s3039 + $0x8] sm:$0xff] %vm180, %v3008
      %3042 = vst.msk [vmem:[%s3039 + $0x10] sm:$0xff] %vm180, %v3009
      %3043 = vst.msk [vmem:[%s3039 + $0x18] sm:$0xff] %vm180, %v3010
      %3044 = vst.msk [vmem:[%s3039 + $0x20] sm:$0xff] %vm180, %v3011
      %3045 = vst.msk [vmem:[%s3039 + $0x28] sm:$0xff] %vm180, %v3012
      %3046 = vst.msk [vmem:[%s3039 + $0x30] sm:$0xff] %vm180, %v3013
      %3047 = vst.msk [vmem:[%s3039 + $0x38] sm:$0xff] %vm180, %v3014
      %3048 = vst.msk [vmem:[%s3039 + $0x40] sm:$0xff] %vm180, %v3015
      %3049 = vst.msk [vmem:[%s3039 + $0x48] sm:$0xff] %vm180, %v3016
      %3050 = vst.msk [vmem:[%s3039 + $0x50] sm:$0xff] %vm180, %v3017
      %3051 = vst.msk [vmem:[%s3039 + $0x58] sm:$0xff] %vm180, %v3018
      %3052 = vst.msk [vmem:[%s3039 + $0x60] sm:$0xff] %vm180, %v3019
      %3053 = vst.msk [vmem:[%s3039 + $0x68] sm:$0xff] %vm180, %v3020
      %3054 = vst.msk [vmem:[%s3039 + $0x70] sm:$0xff] %vm180, %v3021
      %3055 = vst.msk [vmem:[%s3039 + $0x78] sm:$0xff] %vm180, %v3022
      %3056 = vst.msk [vmem:[%s3039 + $0x80] sm:$0xff] %vm180, %v3023
      %3057 = vst.msk [vmem:[%s3039 + $0x88] sm:$0xff] %vm180, %v3024
      %3058 = vst.msk [vmem:[%s3039 + $0x90] sm:$0xff] %vm180, %v3025
      %3059 = vst.msk [vmem:[%s3039 + $0x98] sm:$0xff] %vm180, %v3026
      %3060 = vst.msk [vmem:[%s3039 + $0xa0] sm:$0xff] %vm180, %v3027
      %3061 = vst.msk [vmem:[%s3039 + $0xa8] sm:$0xff] %vm180, %v3028
      %3062 = vst.msk [vmem:[%s3039 + $0xb0] sm:$0xff] %vm180, %v3029
      %3063 = vst.msk [vmem:[%s3039 + $0xb8] sm:$0xff] %vm180, %v3030
      %3064 = vst.msk [vmem:[%s3039 + $0xc0] sm:$0xff] %vm180, %v3031
      %3065 = vst.msk [vmem:[%s3039 + $0xc8] sm:$0xff] %vm180, %v3032
      %3066 = vst.msk [vmem:[%s3039 + $0xd0] sm:$0xff] %vm180, %v3033
      %3067 = vst.msk [vmem:[%s3039 + $0xd8] sm:$0xff] %vm180, %v3034
      %3068 = vst.msk [vmem:[%s3039 + $0xe0] sm:$0xff] %vm180, %v3035
      %3069 = vst.msk [vmem:[%s3039 + $0xe8] sm:$0xff] %vm180, %v3036
      %3070 = vst.msk [vmem:[%s3039 + $0xf0] sm:$0xff] %vm180, %v3037
      %3071 = vst.msk [vmem:[%s3039 + $0xf8] sm:$0xff] %vm180, %v3038
      %v3072 = vld [vmem:[%s3039] sm:$0xff]
      %v3073 = vld [vmem:[%s3039 + $0x8] sm:$0xff]
      %v3074 = vld [vmem:[%s3039 + $0x10] sm:$0xff]
      %v3075 = vld [vmem:[%s3039 + $0x18] sm:$0xff]
      %v3076 = vld [vmem:[%s3039 + $0x20] sm:$0xff]
      %v3077 = vld [vmem:[%s3039 + $0x28] sm:$0xff]
      %v3078 = vld [vmem:[%s3039 + $0x30] sm:$0xff]
      %v3079 = vld [vmem:[%s3039 + $0x38] sm:$0xff]
      %v3080 = vld [vmem:[%s3039 + $0x40] sm:$0xff]
      %v3081 = vld [vmem:[%s3039 + $0x48] sm:$0xff]
      %v3082 = vld [vmem:[%s3039 + $0x50] sm:$0xff]
      %v3083 = vld [vmem:[%s3039 + $0x58] sm:$0xff]
      %v3084 = vld [vmem:[%s3039 + $0x60] sm:$0xff]
      %v3085 = vld [vmem:[%s3039 + $0x68] sm:$0xff]
      %v3086 = vld [vmem:[%s3039 + $0x70] sm:$0xff]
      %v3087 = vld [vmem:[%s3039 + $0x78] sm:$0xff]
      %v3088 = vld [vmem:[%s3039 + $0x80] sm:$0xff]
      %v3089 = vld [vmem:[%s3039 + $0x88] sm:$0xff]
      %v3090 = vld [vmem:[%s3039 + $0x90] sm:$0xff]
      %v3091 = vld [vmem:[%s3039 + $0x98] sm:$0xff]
      %v3092 = vld [vmem:[%s3039 + $0xa0] sm:$0xff]
      %v3093 = vld [vmem:[%s3039 + $0xa8] sm:$0xff]
      %v3094 = vld [vmem:[%s3039 + $0xb0] sm:$0xff]
      %v3095 = vld [vmem:[%s3039 + $0xb8] sm:$0xff]
      %v3096 = vld [vmem:[%s3039 + $0xc0] sm:$0xff]
      %v3097 = vld [vmem:[%s3039 + $0xc8] sm:$0xff]
      %v3098 = vld [vmem:[%s3039 + $0xd0] sm:$0xff]
      %v3099 = vld [vmem:[%s3039 + $0xd8] sm:$0xff]
      %v3100 = vld [vmem:[%s3039 + $0xe0] sm:$0xff]
      %v3101 = vld [vmem:[%s3039 + $0xe8] sm:$0xff]
      %v3102 = vld [vmem:[%s886] sm:$0xff]
      %v3103 = vld [vmem:[%s886 + $0x8] sm:$0xff]
      %v3104 = vld [vmem:[%s886 + $0x10] sm:$0xff]
      %v3105 = vld [vmem:[%s886 + $0x18] sm:$0xff]
      %v3106 = vld [vmem:[%s886 + $0x20] sm:$0xff]
      %v3107 = vld [vmem:[%s886 + $0x28] sm:$0xff]
      %v3108 = vld [vmem:[%s886 + $0x30] sm:$0xff]
      %v3109 = vld [vmem:[%s886 + $0x38] sm:$0xff]
      %v3110 = vld [vmem:[%s886 + $0x40] sm:$0xff]
      %v3111 = vld [vmem:[%s886 + $0x48] sm:$0xff]
      %v3112 = vld [vmem:[%s886 + $0x50] sm:$0xff]
      %v3113 = vld [vmem:[%s886 + $0x58] sm:$0xff]
      %v3114 = vld [vmem:[%s886 + $0x60] sm:$0xff]
      %v3115 = vld [vmem:[%s886 + $0x68] sm:$0xff]
      %v3116 = vld [vmem:[%s886 + $0x70] sm:$0xff]
      %v3117 = vld [vmem:[%s886 + $0x78] sm:$0xff]
      %v3118 = vld [vmem:[%s886 + $0x80] sm:$0xff]
      %v3119 = vld [vmem:[%s886 + $0x88] sm:$0xff]
      %v3120 = vld [vmem:[%s886 + $0x90] sm:$0xff]
      %v3121 = vld [vmem:[%s886 + $0x98] sm:$0xff]
      %v3122 = vld [vmem:[%s886 + $0xa0] sm:$0xff]
      %v3123 = vld [vmem:[%s886 + $0xa8] sm:$0xff]
      %v3124 = vld [vmem:[%s886 + $0xb0] sm:$0xff]
      %v3125 = vld [vmem:[%s886 + $0xb8] sm:$0xff]
      %v3126 = vld [vmem:[%s886 + $0xc0] sm:$0xff]
      %v3127 = vld [vmem:[%s886 + $0xc8] sm:$0xff]
      %v3128 = vld [vmem:[%s886 + $0xd0] sm:$0xff]
      %v3129 = vld [vmem:[%s886 + $0xd8] sm:$0xff]
      %v3130 = vld [vmem:[%s886 + $0xe0] sm:$0xff]
      %v3131 = vld [vmem:[%s886 + $0xe8] sm:$0xff]
      %v3132 = vmax.f32 %v3072, %v3102
      %v3133 = vmax.f32 %v3073, %v3103
      %v3134 = vmax.f32 %v3074, %v3104
      %v3135 = vmax.f32 %v3075, %v3105
      %v3136 = vmax.f32 %v3076, %v3106
      %v3137 = vmax.f32 %v3077, %v3107
      %v3138 = vmax.f32 %v3078, %v3108
      %v3139 = vmax.f32 %v3079, %v3109
      %v3140 = vmax.f32 %v3080, %v3110
      %v3141 = vmax.f32 %v3081, %v3111
      %v3142 = vmax.f32 %v3082, %v3112
      %v3143 = vmax.f32 %v3083, %v3113
      %v3144 = vmax.f32 %v3084, %v3114
      %v3145 = vmax.f32 %v3085, %v3115
      %v3146 = vmax.f32 %v3086, %v3116
      %v3147 = vmax.f32 %v3087, %v3117
      %v3148 = vmax.f32 %v3088, %v3118
      %v3149 = vmax.f32 %v3089, %v3119
      %v3150 = vmax.f32 %v3090, %v3120
      %v3151 = vmax.f32 %v3091, %v3121
      %v3152 = vmax.f32 %v3092, %v3122
      %v3153 = vmax.f32 %v3093, %v3123
      %v3154 = vmax.f32 %v3094, %v3124
      %v3155 = vmax.f32 %v3095, %v3125
      %v3156 = vmax.f32 %v3096, %v3126
      %v3157 = vmax.f32 %v3097, %v3127
      %v3158 = vmax.f32 %v3098, %v3128
      %v3159 = vmax.f32 %v3099, %v3129
      %v3160 = vmax.f32 %v3100, %v3130
      %v3161 = vmax.f32 %v3101, %v3131
      %3162 = vst.msk [vmem:[%s3039] sm:$0xff] %vm180, %v3132
      %3163 = vst.msk [vmem:[%s3039 + $0x8] sm:$0xff] %vm180, %v3133
      %3164 = vst.msk [vmem:[%s3039 + $0x10] sm:$0xff] %vm180, %v3134
      %3165 = vst.msk [vmem:[%s3039 + $0x18] sm:$0xff] %vm180, %v3135
      %3166 = vst.msk [vmem:[%s3039 + $0x20] sm:$0xff] %vm180, %v3136
      %3167 = vst.msk [vmem:[%s3039 + $0x28] sm:$0xff] %vm180, %v3137
      %3168 = vst.msk [vmem:[%s3039 + $0x30] sm:$0xff] %vm180, %v3138
      %3169 = vst.msk [vmem:[%s3039 + $0x38] sm:$0xff] %vm180, %v3139
      %3170 = vst.msk [vmem:[%s3039 + $0x40] sm:$0xff] %vm180, %v3140
      %3171 = vst.msk [vmem:[%s3039 + $0x48] sm:$0xff] %vm180, %v3141
      %3172 = vst.msk [vmem:[%s3039 + $0x50] sm:$0xff] %vm180, %v3142
      %3173 = vst.msk [vmem:[%s3039 + $0x58] sm:$0xff] %vm180, %v3143
      %3174 = vst.msk [vmem:[%s3039 + $0x60] sm:$0xff] %vm180, %v3144
      %3175 = vst.msk [vmem:[%s3039 + $0x68] sm:$0xff] %vm180, %v3145
      %3176 = vst.msk [vmem:[%s3039 + $0x70] sm:$0xff] %vm180, %v3146
      %3177 = vst.msk [vmem:[%s3039 + $0x78] sm:$0xff] %vm180, %v3147
      %3178 = vst.msk [vmem:[%s3039 + $0x80] sm:$0xff] %vm180, %v3148
      %3179 = vst.msk [vmem:[%s3039 + $0x88] sm:$0xff] %vm180, %v3149
      %3180 = vst.msk [vmem:[%s3039 + $0x90] sm:$0xff] %vm180, %v3150
      %3181 = vst.msk [vmem:[%s3039 + $0x98] sm:$0xff] %vm180, %v3151
      %3182 = vst.msk [vmem:[%s3039 + $0xa0] sm:$0xff] %vm180, %v3152
      %3183 = vst.msk [vmem:[%s3039 + $0xa8] sm:$0xff] %vm180, %v3153
      %3184 = vst.msk [vmem:[%s3039 + $0xb0] sm:$0xff] %vm180, %v3154
      %3185 = vst.msk [vmem:[%s3039 + $0xb8] sm:$0xff] %vm180, %v3155
      %3186 = vst.msk [vmem:[%s3039 + $0xc0] sm:$0xff] %vm180, %v3156
      %3187 = vst.msk [vmem:[%s3039 + $0xc8] sm:$0xff] %vm180, %v3157
      %3188 = vst.msk [vmem:[%s3039 + $0xd0] sm:$0xff] %vm180, %v3158
      %3189 = vst.msk [vmem:[%s3039 + $0xd8] sm:$0xff] %vm180, %v3159
      %3190 = vst.msk [vmem:[%s3039 + $0xe0] sm:$0xff] %vm180, %v3160
      %3191 = vst.msk [vmem:[%s3039 + $0xe8] sm:$0xff] %vm180, %v3161
      %s3192 = scalar_lea.vmem %s147, 784
      %v3193 = vld [vmem:[%s3192] sm:$0xff]
      %v3194 = vld [vmem:[%s3192 + $0x8] sm:$0xff]
      %v3195 = vld [vmem:[%s3192 + $0x10] sm:$0xff]
      %v3196 = vld [vmem:[%s3192 + $0x18] sm:$0xff]
      %v3197 = vld [vmem:[%s3192 + $0x20] sm:$0xff]
      %v3198 = vld [vmem:[%s3192 + $0x28] sm:$0xff]
      %v3199 = vld [vmem:[%s3192 + $0x30] sm:$0xff]
      %v3200 = vld [vmem:[%s3192 + $0x38] sm:$0xff]
      %v3201 = vld [vmem:[%s3192 + $0x40] sm:$0xff]
      %v3202 = vld [vmem:[%s3192 + $0x48] sm:$0xff]
      %v3203 = vld [vmem:[%s3192 + $0x50] sm:$0xff]
      %v3204 = vld [vmem:[%s3192 + $0x58] sm:$0xff]
      %v3205 = vld [vmem:[%s3192 + $0x60] sm:$0xff]
      %v3206 = vld [vmem:[%s3192 + $0x68] sm:$0xff]
      %v3207 = vld [vmem:[%s3192 + $0x70] sm:$0xff]
      %v3208 = vld [vmem:[%s3192 + $0x78] sm:$0xff]
      %v3209 = vld [vmem:[%s3192 + $0x80] sm:$0xff]
      %v3210 = vld [vmem:[%s3192 + $0x88] sm:$0xff]
      %v3211 = vld [vmem:[%s3192 + $0x90] sm:$0xff]
      %v3212 = vld [vmem:[%s3192 + $0x98] sm:$0xff]
      %v3213 = vld [vmem:[%s3192 + $0xa0] sm:$0xff]
      %v3214 = vld [vmem:[%s3192 + $0xa8] sm:$0xff]
      %v3215 = vld [vmem:[%s3192 + $0xb0] sm:$0xff]
      %v3216 = vld [vmem:[%s3192 + $0xb8] sm:$0xff]
      %v3217 = vld [vmem:[%s3192 + $0xc0] sm:$0xff]
      %v3218 = vld [vmem:[%s3192 + $0xc8] sm:$0xff]
      %v3219 = vld [vmem:[%s3192 + $0xd0] sm:$0xff]
      %v3220 = vld [vmem:[%s3192 + $0xd8] sm:$0xff]
      %v3221 = vld [vmem:[%s3192 + $0xe0] sm:$0xff]
      %v3222 = vld [vmem:[%s3192 + $0xe8] sm:$0xff]
      %v3223 = vld [vmem:[#allocation2] sm:$0xff]
      %v3224 = vld [vmem:[#allocation2 + $0x8] sm:$0xff]
      %v3225 = vld [vmem:[#allocation2 + $0x10] sm:$0xff]
      %v3226 = vld [vmem:[#allocation2 + $0x18] sm:$0xff]
      %v3227 = vld [vmem:[#allocation2 + $0x20] sm:$0xff]
      %v3228 = vld [vmem:[#allocation2 + $0x28] sm:$0xff]
      %v3229 = vld [vmem:[#allocation2 + $0x30] sm:$0xff]
      %v3230 = vld [vmem:[#allocation2 + $0x38] sm:$0xff]
      %v3231 = vld [vmem:[#allocation2 + $0x40] sm:$0xff]
      %v3232 = vld [vmem:[#allocation2 + $0x48] sm:$0xff]
      %v3233 = vld [vmem:[#allocation2 + $0x50] sm:$0xff]
      %v3234 = vld [vmem:[#allocation2 + $0x58] sm:$0xff]
      %v3235 = vld [vmem:[#allocation2 + $0x60] sm:$0xff]
      %v3236 = vld [vmem:[#allocation2 + $0x68] sm:$0xff]
      %v3237 = vld [vmem:[#allocation2 + $0x70] sm:$0xff]
      %v3238 = vld [vmem:[#allocation2 + $0x78] sm:$0xff]
      %v3239 = vld [vmem:[#allocation2 + $0x80] sm:$0xff]
      %v3240 = vld [vmem:[#allocation2 + $0x88] sm:$0xff]
      %v3241 = vld [vmem:[#allocation2 + $0x90] sm:$0xff]
      %v3242 = vld [vmem:[#allocation2 + $0x98] sm:$0xff]
      %v3243 = vld [vmem:[#allocation2 + $0xa0] sm:$0xff]
      %v3244 = vld [vmem:[#allocation2 + $0xa8] sm:$0xff]
      %v3245 = vld [vmem:[#allocation2 + $0xb0] sm:$0xff]
      %v3246 = vld [vmem:[#allocation2 + $0xb8] sm:$0xff]
      %v3247 = vld [vmem:[#allocation2 + $0xc0] sm:$0xff]
      %v3248 = vld [vmem:[#allocation2 + $0xc8] sm:$0xff]
      %v3249 = vld [vmem:[#allocation2 + $0xd0] sm:$0xff]
      %v3250 = vld [vmem:[#allocation2 + $0xd8] sm:$0xff]
      %v3251 = vld [vmem:[#allocation2 + $0xe0] sm:$0xff]
      %v3252 = vld [vmem:[#allocation2 + $0xe8] sm:$0xff]
      %v3253 = vmax.f32 %v3193, %v3223
      %v3254 = vmax.f32 %v3194, %v3224
      %v3255 = vmax.f32 %v3195, %v3225
      %v3256 = vmax.f32 %v3196, %v3226
      %v3257 = vmax.f32 %v3197, %v3227
      %v3258 = vmax.f32 %v3198, %v3228
      %v3259 = vmax.f32 %v3199, %v3229
      %v3260 = vmax.f32 %v3200, %v3230
      %v3261 = vmax.f32 %v3201, %v3231
      %v3262 = vmax.f32 %v3202, %v3232
      %v3263 = vmax.f32 %v3203, %v3233
      %v3264 = vmax.f32 %v3204, %v3234
      %v3265 = vmax.f32 %v3205, %v3235
      %v3266 = vmax.f32 %v3206, %v3236
      %v3267 = vmax.f32 %v3207, %v3237
      %v3268 = vmax.f32 %v3208, %v3238
      %v3269 = vmax.f32 %v3209, %v3239
      %v3270 = vmax.f32 %v3210, %v3240
      %v3271 = vmax.f32 %v3211, %v3241
      %v3272 = vmax.f32 %v3212, %v3242
      %v3273 = vmax.f32 %v3213, %v3243
      %v3274 = vmax.f32 %v3214, %v3244
      %v3275 = vmax.f32 %v3215, %v3245
      %v3276 = vmax.f32 %v3216, %v3246
      %v3277 = vmax.f32 %v3217, %v3247
      %v3278 = vmax.f32 %v3218, %v3248
      %v3279 = vmax.f32 %v3219, %v3249
      %v3280 = vmax.f32 %v3220, %v3250
      %v3281 = vmax.f32 %v3221, %v3251
      %v3282 = vmax.f32 %v3222, %v3252
      %3283 = vst.msk [vmem:[%s3192] sm:$0xff] %vm180, %v3253
      %3284 = vst.msk [vmem:[%s3192 + $0x8] sm:$0xff] %vm180, %v3254
      %3285 = vst.msk [vmem:[%s3192 + $0x10] sm:$0xff] %vm180, %v3255
      %3286 = vst.msk [vmem:[%s3192 + $0x18] sm:$0xff] %vm180, %v3256
      %3287 = vst.msk [vmem:[%s3192 + $0x20] sm:$0xff] %vm180, %v3257
      %3288 = vst.msk [vmem:[%s3192 + $0x28] sm:$0xff] %vm180, %v3258
      %3289 = vst.msk [vmem:[%s3192 + $0x30] sm:$0xff] %vm180, %v3259
      %3290 = vst.msk [vmem:[%s3192 + $0x38] sm:$0xff] %vm180, %v3260
      %3291 = vst.msk [vmem:[%s3192 + $0x40] sm:$0xff] %vm180, %v3261
      %3292 = vst.msk [vmem:[%s3192 + $0x48] sm:$0xff] %vm180, %v3262
      %3293 = vst.msk [vmem:[%s3192 + $0x50] sm:$0xff] %vm180, %v3263
      %3294 = vst.msk [vmem:[%s3192 + $0x58] sm:$0xff] %vm180, %v3264
      %3295 = vst.msk [vmem:[%s3192 + $0x60] sm:$0xff] %vm180, %v3265
      %3296 = vst.msk [vmem:[%s3192 + $0x68] sm:$0xff] %vm180, %v3266
      %3297 = vst.msk [vmem:[%s3192 + $0x70] sm:$0xff] %vm180, %v3267
      %3298 = vst.msk [vmem:[%s3192 + $0x78] sm:$0xff] %vm180, %v3268
      %3299 = vst.msk [vmem:[%s3192 + $0x80] sm:$0xff] %vm180, %v3269
      %3300 = vst.msk [vmem:[%s3192 + $0x88] sm:$0xff] %vm180, %v3270
      %3301 = vst.msk [vmem:[%s3192 + $0x90] sm:$0xff] %vm180, %v3271
      %3302 = vst.msk [vmem:[%s3192 + $0x98] sm:$0xff] %vm180, %v3272
      %3303 = vst.msk [vmem:[%s3192 + $0xa0] sm:$0xff] %vm180, %v3273
      %3304 = vst.msk [vmem:[%s3192 + $0xa8] sm:$0xff] %vm180, %v3274
      %3305 = vst.msk [vmem:[%s3192 + $0xb0] sm:$0xff] %vm180, %v3275
      %3306 = vst.msk [vmem:[%s3192 + $0xb8] sm:$0xff] %vm180, %v3276
      %3307 = vst.msk [vmem:[%s3192 + $0xc0] sm:$0xff] %vm180, %v3277
      %3308 = vst.msk [vmem:[%s3192 + $0xc8] sm:$0xff] %vm180, %v3278
      %3309 = vst.msk [vmem:[%s3192 + $0xd0] sm:$0xff] %vm180, %v3279
      %3310 = vst.msk [vmem:[%s3192 + $0xd8] sm:$0xff] %vm180, %v3280
      %3311 = vst.msk [vmem:[%s3192 + $0xe0] sm:$0xff] %vm180, %v3281
      %3312 = vst.msk [vmem:[%s3192 + $0xe8] sm:$0xff] %vm180, %v3282
      %v3313 = vld [vmem:[%s3039] sm:$0xff]
      %v3314 = vld [vmem:[%s3039 + $0x8] sm:$0xff]
      %v3315 = vld [vmem:[%s3039 + $0x10] sm:$0xff]
      %v3316 = vld [vmem:[%s3039 + $0x18] sm:$0xff]
      %v3317 = vld [vmem:[%s3039 + $0x20] sm:$0xff]
      %v3318 = vld [vmem:[%s3039 + $0x28] sm:$0xff]
      %v3319 = vld [vmem:[%s3039 + $0x30] sm:$0xff]
      %v3320 = vld [vmem:[%s3039 + $0x38] sm:$0xff]
      %v3321 = vld [vmem:[%s3039 + $0x40] sm:$0xff]
      %v3322 = vld [vmem:[%s3039 + $0x48] sm:$0xff]
      %v3323 = vld [vmem:[%s3039 + $0x50] sm:$0xff]
      %v3324 = vld [vmem:[%s3039 + $0x58] sm:$0xff]
      %v3325 = vld [vmem:[%s3039 + $0x60] sm:$0xff]
      %v3326 = vld [vmem:[%s3039 + $0x68] sm:$0xff]
      %v3327 = vld [vmem:[%s3039 + $0x70] sm:$0xff]
      %v3328 = vld [vmem:[%s3039 + $0x78] sm:$0xff]
      %v3329 = vld [vmem:[%s3039 + $0x80] sm:$0xff]
      %v3330 = vld [vmem:[%s3039 + $0x88] sm:$0xff]
      %v3331 = vld [vmem:[%s3039 + $0x90] sm:$0xff]
      %v3332 = vld [vmem:[%s3039 + $0x98] sm:$0xff]
      %v3333 = vld [vmem:[%s3039 + $0xa0] sm:$0xff]
      %v3334 = vld [vmem:[%s3039 + $0xa8] sm:$0xff]
      %v3335 = vld [vmem:[%s3039 + $0xb0] sm:$0xff]
      %v3336 = vld [vmem:[%s3039 + $0xb8] sm:$0xff]
      %v3337 = vld [vmem:[%s3039 + $0xc0] sm:$0xff]
      %v3338 = vld [vmem:[%s3039 + $0xc8] sm:$0xff]
      %v3339 = vld [vmem:[%s3039 + $0xd0] sm:$0xff]
      %v3340 = vld [vmem:[%s3039 + $0xd8] sm:$0xff]
      %v3341 = vld [vmem:[%s1126] sm:$0xff]
      %v3342 = vld [vmem:[%s1126 + $0x8] sm:$0xff]
      %v3343 = vld [vmem:[%s1126 + $0x10] sm:$0xff]
      %v3344 = vld [vmem:[%s1126 + $0x18] sm:$0xff]
      %v3345 = vld [vmem:[%s1126 + $0x20] sm:$0xff]
      %v3346 = vld [vmem:[%s1126 + $0x28] sm:$0xff]
      %v3347 = vld [vmem:[%s1126 + $0x30] sm:$0xff]
      %v3348 = vld [vmem:[%s1126 + $0x38] sm:$0xff]
      %v3349 = vld [vmem:[%s1126 + $0x40] sm:$0xff]
      %v3350 = vld [vmem:[%s1126 + $0x48] sm:$0xff]
      %v3351 = vld [vmem:[%s1126 + $0x50] sm:$0xff]
      %v3352 = vld [vmem:[%s1126 + $0x58] sm:$0xff]
      %v3353 = vld [vmem:[%s1126 + $0x60] sm:$0xff]
      %v3354 = vld [vmem:[%s1126 + $0x68] sm:$0xff]
      %v3355 = vld [vmem:[%s1126 + $0x70] sm:$0xff]
      %v3356 = vld [vmem:[%s1126 + $0x78] sm:$0xff]
      %v3357 = vld [vmem:[%s1126 + $0x80] sm:$0xff]
      %v3358 = vld [vmem:[%s1126 + $0x88] sm:$0xff]
      %v3359 = vld [vmem:[%s1126 + $0x90] sm:$0xff]
      %v3360 = vld [vmem:[%s1126 + $0x98] sm:$0xff]
      %v3361 = vld [vmem:[%s1126 + $0xa0] sm:$0xff]
      %v3362 = vld [vmem:[%s1126 + $0xa8] sm:$0xff]
      %v3363 = vld [vmem:[%s1126 + $0xb0] sm:$0xff]
      %v3364 = vld [vmem:[%s1126 + $0xb8] sm:$0xff]
      %v3365 = vld [vmem:[%s1126 + $0xc0] sm:$0xff]
      %v3366 = vld [vmem:[%s1126 + $0xc8] sm:$0xff]
      %v3367 = vld [vmem:[%s1126 + $0xd0] sm:$0xff]
      %v3368 = vld [vmem:[%s1126 + $0xd8] sm:$0xff]
      %v3369 = vmax.f32 %v3313, %v3341
      %v3370 = vmax.f32 %v3314, %v3342
      %v3371 = vmax.f32 %v3315, %v3343
      %v3372 = vmax.f32 %v3316, %v3344
      %v3373 = vmax.f32 %v3317, %v3345
      %v3374 = vmax.f32 %v3318, %v3346
      %v3375 = vmax.f32 %v3319, %v3347
      %v3376 = vmax.f32 %v3320, %v3348
      %v3377 = vmax.f32 %v3321, %v3349
      %v3378 = vmax.f32 %v3322, %v3350
      %v3379 = vmax.f32 %v3323, %v3351
      %v3380 = vmax.f32 %v3324, %v3352
      %v3381 = vmax.f32 %v3325, %v3353
      %v3382 = vmax.f32 %v3326, %v3354
      %v3383 = vmax.f32 %v3327, %v3355
      %v3384 = vmax.f32 %v3328, %v3356
      %v3385 = vmax.f32 %v3329, %v3357
      %v3386 = vmax.f32 %v3330, %v3358
      %v3387 = vmax.f32 %v3331, %v3359
      %v3388 = vmax.f32 %v3332, %v3360
      %v3389 = vmax.f32 %v3333, %v3361
      %v3390 = vmax.f32 %v3334, %v3362
      %v3391 = vmax.f32 %v3335, %v3363
      %v3392 = vmax.f32 %v3336, %v3364
      %v3393 = vmax.f32 %v3337, %v3365
      %v3394 = vmax.f32 %v3338, %v3366
      %v3395 = vmax.f32 %v3339, %v3367
      %v3396 = vmax.f32 %v3340, %v3368
      %3397 = vst.msk [vmem:[%s3039] sm:$0xff] %vm180, %v3369
      %3398 = vst.msk [vmem:[%s3039 + $0x8] sm:$0xff] %vm180, %v3370
      %3399 = vst.msk [vmem:[%s3039 + $0x10] sm:$0xff] %vm180, %v3371
      %3400 = vst.msk [vmem:[%s3039 + $0x18] sm:$0xff] %vm180, %v3372
      %3401 = vst.msk [vmem:[%s3039 + $0x20] sm:$0xff] %vm180, %v3373
      %3402 = vst.msk [vmem:[%s3039 + $0x28] sm:$0xff] %vm180, %v3374
      %3403 = vst.msk [vmem:[%s3039 + $0x30] sm:$0xff] %vm180, %v3375
      %3404 = vst.msk [vmem:[%s3039 + $0x38] sm:$0xff] %vm180, %v3376
      %3405 = vst.msk [vmem:[%s3039 + $0x40] sm:$0xff] %vm180, %v3377
      %3406 = vst.msk [vmem:[%s3039 + $0x48] sm:$0xff] %vm180, %v3378
      %3407 = vst.msk [vmem:[%s3039 + $0x50] sm:$0xff] %vm180, %v3379
      %3408 = vst.msk [vmem:[%s3039 + $0x58] sm:$0xff] %vm180, %v3380
      %3409 = vst.msk [vmem:[%s3039 + $0x60] sm:$0xff] %vm180, %v3381
      %3410 = vst.msk [vmem:[%s3039 + $0x68] sm:$0xff] %vm180, %v3382
      %3411 = vst.msk [vmem:[%s3039 + $0x70] sm:$0xff] %vm180, %v3383
      %3412 = vst.msk [vmem:[%s3039 + $0x78] sm:$0xff] %vm180, %v3384
      %3413 = vst.msk [vmem:[%s3039 + $0x80] sm:$0xff] %vm180, %v3385
      %3414 = vst.msk [vmem:[%s3039 + $0x88] sm:$0xff] %vm180, %v3386
      %3415 = vst.msk [vmem:[%s3039 + $0x90] sm:$0xff] %vm180, %v3387
      %3416 = vst.msk [vmem:[%s3039 + $0x98] sm:$0xff] %vm180, %v3388
      %3417 = vst.msk [vmem:[%s3039 + $0xa0] sm:$0xff] %vm180, %v3389
      %3418 = vst.msk [vmem:[%s3039 + $0xa8] sm:$0xff] %vm180, %v3390
      %3419 = vst.msk [vmem:[%s3039 + $0xb0] sm:$0xff] %vm180, %v3391
      %3420 = vst.msk [vmem:[%s3039 + $0xb8] sm:$0xff] %vm180, %v3392
      %3421 = vst.msk [vmem:[%s3039 + $0xc0] sm:$0xff] %vm180, %v3393
      %3422 = vst.msk [vmem:[%s3039 + $0xc8] sm:$0xff] %vm180, %v3394
      %3423 = vst.msk [vmem:[%s3039 + $0xd0] sm:$0xff] %vm180, %v3395
      %3424 = vst.msk [vmem:[%s3039 + $0xd8] sm:$0xff] %vm180, %v3396
      %s3425 = scalar_lea.vmem %s147, 800
      %v3426 = vld [vmem:[%s3425] sm:$0xff]
      %v3427 = vld [vmem:[%s3425 + $0x8] sm:$0xff]
      %v3428 = vld [vmem:[%s3425 + $0x10] sm:$0xff]
      %v3429 = vld [vmem:[%s3425 + $0x18] sm:$0xff]
      %v3430 = vld [vmem:[%s3425 + $0x20] sm:$0xff]
      %v3431 = vld [vmem:[%s3425 + $0x28] sm:$0xff]
      %v3432 = vld [vmem:[%s3425 + $0x30] sm:$0xff]
      %v3433 = vld [vmem:[%s3425 + $0x38] sm:$0xff]
      %v3434 = vld [vmem:[%s3425 + $0x40] sm:$0xff]
      %v3435 = vld [vmem:[%s3425 + $0x48] sm:$0xff]
      %v3436 = vld [vmem:[%s3425 + $0x50] sm:$0xff]
      %v3437 = vld [vmem:[%s3425 + $0x58] sm:$0xff]
      %v3438 = vld [vmem:[%s3425 + $0x60] sm:$0xff]
      %v3439 = vld [vmem:[%s3425 + $0x68] sm:$0xff]
      %v3440 = vld [vmem:[%s3425 + $0x70] sm:$0xff]
      %v3441 = vld [vmem:[%s3425 + $0x78] sm:$0xff]
      %v3442 = vld [vmem:[%s3425 + $0x80] sm:$0xff]
      %v3443 = vld [vmem:[%s3425 + $0x88] sm:$0xff]
      %v3444 = vld [vmem:[%s3425 + $0x90] sm:$0xff]
      %v3445 = vld [vmem:[%s3425 + $0x98] sm:$0xff]
      %v3446 = vld [vmem:[%s3425 + $0xa0] sm:$0xff]
      %v3447 = vld [vmem:[%s3425 + $0xa8] sm:$0xff]
      %v3448 = vld [vmem:[%s3425 + $0xb0] sm:$0xff]
      %v3449 = vld [vmem:[%s3425 + $0xb8] sm:$0xff]
      %v3450 = vld [vmem:[%s3425 + $0xc0] sm:$0xff]
      %v3451 = vld [vmem:[%s3425 + $0xc8] sm:$0xff]
      %v3452 = vld [vmem:[%s3425 + $0xd0] sm:$0xff]
      %v3453 = vld [vmem:[%s3425 + $0xd8] sm:$0xff]
      %v3454 = vld [vmem:[#allocation2] sm:$0xff]
      %v3455 = vld [vmem:[#allocation2 + $0x8] sm:$0xff]
      %v3456 = vld [vmem:[#allocation2 + $0x10] sm:$0xff]
      %v3457 = vld [vmem:[#allocation2 + $0x18] sm:$0xff]
      %v3458 = vld [vmem:[#allocation2 + $0x20] sm:$0xff]
      %v3459 = vld [vmem:[#allocation2 + $0x28] sm:$0xff]
      %v3460 = vld [vmem:[#allocation2 + $0x30] sm:$0xff]
      %v3461 = vld [vmem:[#allocation2 + $0x38] sm:$0xff]
      %v3462 = vld [vmem:[#allocation2 + $0x40] sm:$0xff]
      %v3463 = vld [vmem:[#allocation2 + $0x48] sm:$0xff]
      %v3464 = vld [vmem:[#allocation2 + $0x50] sm:$0xff]
      %v3465 = vld [vmem:[#allocation2 + $0x58] sm:$0xff]
      %v3466 = vld [vmem:[#allocation2 + $0x60] sm:$0xff]
      %v3467 = vld [vmem:[#allocation2 + $0x68] sm:$0xff]
      %v3468 = vld [vmem:[#allocation2 + $0x70] sm:$0xff]
      %v3469 = vld [vmem:[#allocation2 + $0x78] sm:$0xff]
      %v3470 = vld [vmem:[#allocation2 + $0x80] sm:$0xff]
      %v3471 = vld [vmem:[#allocation2 + $0x88] sm:$0xff]
      %v3472 = vld [vmem:[#allocation2 + $0x90] sm:$0xff]
      %v3473 = vld [vmem:[#allocation2 + $0x98] sm:$0xff]
      %v3474 = vld [vmem:[#allocation2 + $0xa0] sm:$0xff]
      %v3475 = vld [vmem:[#allocation2 + $0xa8] sm:$0xff]
      %v3476 = vld [vmem:[#allocation2 + $0xb0] sm:$0xff]
      %v3477 = vld [vmem:[#allocation2 + $0xb8] sm:$0xff]
      %v3478 = vld [vmem:[#allocation2 + $0xc0] sm:$0xff]
      %v3479 = vld [vmem:[#allocation2 + $0xc8] sm:$0xff]
      %v3480 = vld [vmem:[#allocation2 + $0xd0] sm:$0xff]
      %v3481 = vld [vmem:[#allocation2 + $0xd8] sm:$0xff]
      %v3482 = vmax.f32 %v3426, %v3454
      %v3483 = vmax.f32 %v3427, %v3455
      %v3484 = vmax.f32 %v3428, %v3456
      %v3485 = vmax.f32 %v3429, %v3457
      %v3486 = vmax.f32 %v3430, %v3458
      %v3487 = vmax.f32 %v3431, %v3459
      %v3488 = vmax.f32 %v3432, %v3460
      %v3489 = vmax.f32 %v3433, %v3461
      %v3490 = vmax.f32 %v3434, %v3462
      %v3491 = vmax.f32 %v3435, %v3463
      %v3492 = vmax.f32 %v3436, %v3464
      %v3493 = vmax.f32 %v3437, %v3465
      %v3494 = vmax.f32 %v3438, %v3466
      %v3495 = vmax.f32 %v3439, %v3467
      %v3496 = vmax.f32 %v3440, %v3468
      %v3497 = vmax.f32 %v3441, %v3469
      %v3498 = vmax.f32 %v3442, %v3470
      %v3499 = vmax.f32 %v3443, %v3471
      %v3500 = vmax.f32 %v3444, %v3472
      %v3501 = vmax.f32 %v3445, %v3473
      %v3502 = vmax.f32 %v3446, %v3474
      %v3503 = vmax.f32 %v3447, %v3475
      %v3504 = vmax.f32 %v3448, %v3476
      %v3505 = vmax.f32 %v3449, %v3477
      %v3506 = vmax.f32 %v3450, %v3478
      %v3507 = vmax.f32 %v3451, %v3479
      %v3508 = vmax.f32 %v3452, %v3480
      %v3509 = vmax.f32 %v3453, %v3481
      %3510 = vst.msk [vmem:[%s3425] sm:$0xff] %vm180, %v3482
      %3511 = vst.msk [vmem:[%s3425 + $0x8] sm:$0xff] %vm180, %v3483
      %3512 = vst.msk [vmem:[%s3425 + $0x10] sm:$0xff] %vm180, %v3484
      %3513 = vst.msk [vmem:[%s3425 + $0x18] sm:$0xff] %vm180, %v3485
      %3514 = vst.msk [vmem:[%s3425 + $0x20] sm:$0xff] %vm180, %v3486
      %3515 = vst.msk [vmem:[%s3425 + $0x28] sm:$0xff] %vm180, %v3487
      %3516 = vst.msk [vmem:[%s3425 + $0x30] sm:$0xff] %vm180, %v3488
      %3517 = vst.msk [vmem:[%s3425 + $0x38] sm:$0xff] %vm180, %v3489
      %3518 = vst.msk [vmem:[%s3425 + $0x40] sm:$0xff] %vm180, %v3490
      %3519 = vst.msk [vmem:[%s3425 + $0x48] sm:$0xff] %vm180, %v3491
      %3520 = vst.msk [vmem:[%s3425 + $0x50] sm:$0xff] %vm180, %v3492
      %3521 = vst.msk [vmem:[%s3425 + $0x58] sm:$0xff] %vm180, %v3493
      %3522 = vst.msk [vmem:[%s3425 + $0x60] sm:$0xff] %vm180, %v3494
      %3523 = vst.msk [vmem:[%s3425 + $0x68] sm:$0xff] %vm180, %v3495
      %3524 = vst.msk [vmem:[%s3425 + $0x70] sm:$0xff] %vm180, %v3496
      %3525 = vst.msk [vmem:[%s3425 + $0x78] sm:$0xff] %vm180, %v3497
      %3526 = vst.msk [vmem:[%s3425 + $0x80] sm:$0xff] %vm180, %v3498
      %3527 = vst.msk [vmem:[%s3425 + $0x88] sm:$0xff] %vm180, %v3499
      %3528 = vst.msk [vmem:[%s3425 + $0x90] sm:$0xff] %vm180, %v3500
      %3529 = vst.msk [vmem:[%s3425 + $0x98] sm:$0xff] %vm180, %v3501
      %3530 = vst.msk [vmem:[%s3425 + $0xa0] sm:$0xff] %vm180, %v3502
      %3531 = vst.msk [vmem:[%s3425 + $0xa8] sm:$0xff] %vm180, %v3503
      %3532 = vst.msk [vmem:[%s3425 + $0xb0] sm:$0xff] %vm180, %v3504
      %3533 = vst.msk [vmem:[%s3425 + $0xb8] sm:$0xff] %vm180, %v3505
      %3534 = vst.msk [vmem:[%s3425 + $0xc0] sm:$0xff] %vm180, %v3506
      %3535 = vst.msk [vmem:[%s3425 + $0xc8] sm:$0xff] %vm180, %v3507
      %3536 = vst.msk [vmem:[%s3425 + $0xd0] sm:$0xff] %vm180, %v3508
      %3537 = vst.msk [vmem:[%s3425 + $0xd8] sm:$0xff] %vm180, %v3509
      %p3538 = scmp.lt.s32.totalorder %s16, 1
      %s3539 = scalar_select %p3538, %s16, 1
      %p3540 = scmp.lt.s32.totalorder %s17, 0
      %s3541 = scalar_select %p3540, %s17, 0
      %s3542 = smul.addr %s3539, 128
      %s3543 = sadd.s32 %s3541, %s3542
      %s3544 = smul.addr %s3543, 8
      %s3545 = scalar_lea.vmem %s1, %s3544
      // Predicated region
      $region25: #{tpu_custom_call.1} parent=23 // pred_check
        %p3546 = pneg %p72
      $region26: #{tpu_custom_call.1} parent=23 // pred_check_branch
        %3548 = sbr.rel (%p3546) target = $region28
      $region27: #{tpu_custom_call.1} parent=23 // pred_region
        _
      $region28: #{tpu_custom_call.1} parent=23 // pred_fallthru
        _
    $region24: #{tpu_custom_call.1} parent=5 // pred_fallthru
      _
    %p3549 = scmp.le.s32.totalorder 2, %s7
    // Predicated region
    $region29: #{tpu_custom_call.1} parent=5 // pred_check
      %p3550 = pneg %p3549
    $region30: #{tpu_custom_call.1} parent=5 // pred_check_branch
      %3552 = sbr.rel (%p3550) target = $region32
    $region31: #{tpu_custom_call.1} parent=5 // pred_region
      %s3553 = ssub.s32 %s7, 2
      // Predicated region
      $region33: #{tpu_custom_call.1} parent=31 // pred_check
        %p3554 = pneg %p78
      $region34: #{tpu_custom_call.1} parent=31 // pred_check_branch
        %3556 = sbr.rel (%p3554) target = $region36
      $region35: #{tpu_custom_call.1} parent=31 // pred_region
        %p3557 = scmp.lt.s32.totalorder %s18, 1
        %s3558 = scalar_select %p3557, %s18, 1
        %p3559 = scmp.lt.s32.totalorder %s19, 0
        %s3560 = scalar_select %p3559, %s19, 0
        %s3561 = smul.addr %s3558, 128
        %s3562 = sadd.s32 %s3560, %s3561
        %s3563 = smul.addr %s3562, 8
        %s3564 = scalar_lea.vmem %s1, %s3563
      $region36: #{tpu_custom_call.1} parent=31 // pred_fallthru
        _
    $region32: #{tpu_custom_call.1} parent=5 // pred_fallthru
      _
  $region6: #{tpu_custom_call.1} parent=0 // loop_footer
    %s11 = sadd.s32 1, %s7
  $region7: #{tpu_custom_call.1} parent=0 // loop_footer_branch
    %6 = sbr.rel target = $region3
  $region8: #{tpu_custom_call.1} parent=0 // loop_exit
    _

</llo_original>
